<compile_context>
chip_gen: v7x
topology: tpu7x:2x2x1
jax: 0.10.0
libtpu: 0.0.40
codegen_flags: <defaults>
</compile_context>

<pallas_src>
import math

import numpy as np
import jax
import jax.numpy as jnp
from jax.experimental import pallas as pl


# ----------------------------------------------------------------------------
# Fused encoder kernel
# ----------------------------------------------------------------------------
def encoder_kernel(
        x_ref, pf_ref, pr_ref,
        we_ref, be_ref,
        wg_ref, bg_ref, wg1_ref, bg1_ref, wg2_ref, bg2_ref,
        h0_ref, c0_ref,
        wih0_ref, whh0_ref, b0_ref,
        wih_ref, whh_ref, b_ref,
        wf_ref, wb_ref, bcomb_ref,
        sout_ref, g_ref, hn_ref, cn_ref, r0rev_ref):
    f32 = jnp.float32
    x = x_ref[...]                                       # (B, N, in_dim) f32
    B, N, in_dim = x.shape
    E = we_ref.shape[1]
    H = bcomb_ref.shape[1]
    L, Hp2, _ = wih_ref.shape                            # Hp2 = 2 * padded hidden
    Hp = Hp2 // 2
    T = N

    # --- edges[b,i,j] = ||x_i - x_j||^2 : VPU broadcast-diff, f32, no MXU ---
    # TODO(synk): utils.batch_pair_squared_dist source not provided; standard
    # squared Euclidean pairwise distance assumed.
    edges = jnp.zeros((B, N, N), f32)
    for d in range(in_dim):                              # in_dim is tiny & static
        col = x[:, :, d:d + 1]                           # (B, N, 1)
        row = jnp.sum(col, axis=-1)[:, None, :]          # (B, 1, N)
        diff = col - row                                 # (B, N, N)
        edges = edges + diff * diff

    # --- node embedding + 3 residual graph-conv stages (f32 throughout) ---
    def linear(h, w, b):
        din = h.shape[-1]
        y = jnp.dot(h.reshape(B * N, din), w, preferred_element_type=f32) + b
        return y.reshape(B, N, -1)

    g = linear(x, we_ref[...], be_ref[...])              # (B, N, E)
    for w_r, b_r in ((wg_ref, bg_ref), (wg1_ref, bg1_ref), (wg2_ref, bg2_ref)):
        lin = linear(g, w_r[...], b_r[...])              # (B, N, H)
        agg = jnp.einsum("bnm,bme->bne", edges, lin, preferred_element_type=f32)
        g = g + jax.nn.relu(agg)
    g_ref[...] = g

    # --- layer-0 merged input sequence: time-major [fwd | rev], zero padded ---
    g_flat = g.reshape(B * N, E)                         # batch-major rows b*N + t
    if Hp > E:
        g_flat = jnp.concatenate(
            [g_flat, jnp.zeros((B * N, Hp - E), f32)], axis=-1)      # (B*N, Hp)
    layer_in = jnp.concatenate(
        [jnp.dot(pf_ref[...], g_flat, preferred_element_type=f32),   # time-major
         jnp.dot(pr_ref[...], g_flat, preferred_element_type=f32)],  # time-reversed
        axis=-1)                                         # (T*B, 2*Hp)
    seed_x = layer_in[(T - 1) * B:T * B, :]              # [g[:, -1, :] | g[:, 0, :]]

    def cell(gates, c_prev):
        # merged gate layout, each block 2*Hp (= one 128-lane vreg) wide:
        # [ i | f | o | g ], each block = [fwd(Hp) | rev(Hp)]
        sg = jax.nn.sigmoid(gates[:, :3 * Hp2])
        i = sg[:, 0 * Hp2:1 * Hp2]
        f = sg[:, 1 * Hp2:2 * Hp2]
        o = sg[:, 2 * Hp2:3 * Hp2]
        gg = jnp.tanh(gates[:, 3 * Hp2:])
        c = f * c_prev + i * gg
        return o * jnp.tanh(c), c

    for l in range(L):                                   # L is static -> unrolled
        wih0 = wih0_ref[l]
        whh0 = whh0_ref[l]
        b0 = b0_ref[l]
        wih = wih_ref[l]
        whh = whh_ref[l]
        bl = b_ref[l]

        # fused rnn0 / rnn0_reversed seed step (single timestep, both dirs)
        gates0 = (jnp.dot(seed_x, wih0, preferred_element_type=f32)
                  + jnp.dot(h0_ref[l], whh0, preferred_element_type=f32) + b0)
        h, c = cell(gates0, c0_ref[l])
        seed_x = h                                       # next layer's seed / final `_`

        # hoisted input projection for the whole sequence (one matmul per layer)
        xproj = jnp.dot(layer_in, wih, preferred_element_type=f32) + bl  # (T*B, 4*Hp2)

        # unrolled merged recurrence; only h @ Whh + gate math per step
        hs = []
        for t in range(T):
            gates = xproj[t * B:(t + 1) * B, :] + jnp.dot(
                h, whh, preferred_element_type=f32)
            h, c = cell(gates, c)
            hs.append(h)

        hn_ref[l, :, :] = h[:, :H] + h[:, Hp:Hp + H]     # fwd + rev (reference)
        cn_ref[l, :, :] = c[:, :H] + c[:, Hp:Hp + H]
        layer_in = jnp.concatenate(hs, axis=0)           # (T*B, 2*Hp), feeds next layer

    # --- combine epilogue, LAST layer only: tanh(Wf h_t + Wb h_rev[T-1-t]) ---
    cf = jnp.dot(layer_in, wf_ref[...], preferred_element_type=f32)      # (T*B, H)
    cb = jnp.dot(layer_in, wb_ref[...], preferred_element_type=f32)      # (T*B, H)
    bcomb = bcomb_ref[...]
    pieces = [cf[t * B:(t + 1) * B, :]
              + cb[(T - 1 - t) * B:(T - t) * B, :] + bcomb
              for t in range(T)]
    sout_ref[...] = jnp.tanh(jnp.concatenate(pieces, axis=-1))           # (B, N*H)

    r0rev_ref[...] = seed_x[:, Hp:Hp + H]                # rnn0_reversed output (`_`)


# ----------------------------------------------------------------------------
# Parameter init (PyTorch-style uniform bounds, f32 masters) + direction merge
# ----------------------------------------------------------------------------
def _linear_init(key, fan_in, fan_out):
    k1, k2 = jax.random.split(key)
    bound = 1.0 / math.sqrt(fan_in)
    w = jax.random.uniform(k1, (fan_in, fan_out), jnp.float32, -bound, bound)
    b = jax.random.uniform(k2, (1, fan_out), jnp.float32, -bound, bound)
    return w, b


def _lstm_dir_init(key, input_size, hidden, n_layers):
    layers = []
    bound = 1.0 / math.sqrt(hidden)
    for l in range(n_layers):
        key, k1, k2, k3, k4 = jax.random.split(key, 5)
        in_sz = input_size if l == 0 else hidden
        wih = jax.random.uniform(k1, (in_sz, 4 * hidden), jnp.float32, -bound, bound)
        whh = jax.random.uniform(k2, (hidden, 4 * hidden), jnp.float32, -bound, bound)
        b_ih = jax.random.uniform(k3, (1, 4 * hidden), jnp.float32, -bound, bound)
        b_hh = jax.random.uniform(k4, (1, 4 * hidden), jnp.float32, -bound, bound)
        layers.append(dict(wih=wih, whh=whh, b=b_ih + b_hh))
    return layers


def _merge_pad_weight(wf, wr, in_pad, h_pad):
    """Merge two per-direction PyTorch-layout LSTM weights (in, 4H) into one
    zero-padded block-diagonal (2*in_pad, 8*h_pad) matrix; gate blocks ordered
    [i | f | o | g], each block laid out [fwd(h_pad) | rev(h_pad)]."""
    in_real, four_h = wf.shape
    H = four_h // 4
    out = jnp.zeros((2 * in_pad, 8 * h_pad), jnp.float32)
    for idx, k in enumerate((0, 1, 3, 2)):               # PyTorch gate order i,f,g,o
        out = out.at[:in_real,
                     idx * 2 * h_pad:idx * 2 * h_pad + H].set(wf[:, k * H:(k + 1) * H])
        out = out.at[in_pad:in_pad + in_real,
                     idx * 2 * h_pad + h_pad:idx * 2 * h_pad + h_pad + H].set(
                         wr[:, k * H:(k + 1) * H])
    return out


def _merge_pad_bias(bfwd, brev, h_pad):
    H = bfwd.shape[1] // 4
    out = jnp.zeros((1, 8 * h_pad), jnp.float32)
    for idx, k in enumerate((0, 1, 3, 2)):
        out = out.at[:, idx * 2 * h_pad:idx * 2 * h_pad + H].set(
            bfwd[:, k * H:(k + 1) * H])
        out = out.at[:, idx * 2 * h_pad + h_pad:idx * 2 * h_pad + h_pad + H].set(
            brev[:, k * H:(k + 1) * H])
    return out


def init_encoder_params(key, input_dim, embedding_dim, hidden_dim, n_rnn_layers):
    assert embedding_dim == hidden_dim, "residual GCN requires embedding_dim == hidden_dim"
    H = hidden_dim
    h_pad = ((H + 63) // 64) * 64      # per-direction padded width; 2*h_pad % 128 == 0
    keys = jax.random.split(key, 10)

    We, be = _linear_init(keys[0], input_dim, embedding_dim)
    Wg, bg = _linear_init(keys[1], embedding_dim, hidden_dim)
    Wg1, bg1 = _linear_init(keys[2], hidden_dim, hidden_dim)
    Wg2, bg2 = _linear_init(keys[3], hidden_dim, hidden_dim)
    Wf, bf = _linear_init(keys[4], hidden_dim, hidden_dim)
    Wb, bb = _linear_init(keys[5], hidden_dim, hidden_dim)

    rnn0 = _lstm_dir_init(keys[6], embedding_dim, hidden_dim, n_rnn_layers)
    rnn = _lstm_dir_init(keys[7], embedding_dim, hidden_dim, n_rnn_layers)
    rnn0_r = _lstm_dir_init(keys[8], embedding_dim, hidden_dim, n_rnn_layers)
    rnn_r = _lstm_dir_init(keys[9], embedding_dim, hidden_dim, n_rnn_layers)

    wih0, whh0, b0, wih, whh, b = [], [], [], [], [], []
    for l in range(n_rnn_layers):
        wih0.append(_merge_pad_weight(rnn0[l]["wih"], rnn0_r[l]["wih"], h_pad, h_pad))
        whh0.append(_merge_pad_weight(rnn0[l]["whh"], rnn0_r[l]["whh"], h_pad, h_pad))
        b0.append(_merge_pad_bias(rnn0[l]["b"], rnn0_r[l]["b"], h_pad))
        wih.append(_merge_pad_weight(rnn[l]["wih"], rnn_r[l]["wih"], h_pad, h_pad))
        whh.append(_merge_pad_weight(rnn[l]["whh"], rnn_r[l]["whh"], h_pad, h_pad))
        b.append(_merge_pad_bias(rnn[l]["b"], rnn_r[l]["b"], h_pad))

    Wf_pad = jnp.zeros((2 * h_pad, H), jnp.float32).at[:H, :].set(Wf)
    Wb_pad = jnp.zeros((2 * h_pad, H), jnp.float32).at[h_pad:h_pad + H, :].set(Wb)

    return dict(
        We=We, be=be, Wg=Wg, bg=bg, Wg1=Wg1, bg1=bg1, Wg2=Wg2, bg2=bg2,
        wih0=jnp.stack(wih0), whh0=jnp.stack(whh0), b0=jnp.stack(b0),
        wih=jnp.stack(wih), whh=jnp.stack(whh), b=jnp.stack(b),
        Wf=Wf_pad, Wb=Wb_pad, bcomb=bf + bb,
    )


# ----------------------------------------------------------------------------
# Encoder forward (mirrors the PyTorch module) -- single fused pallas_call
# ----------------------------------------------------------------------------
def encoder_forward(params, x, hidden=None):
    B, N, _ = x.shape
    E = params["We"].shape[1]
    H = params["bcomb"].shape[1]
    L, hp2, _ = params["wih"].shape
    hp = hp2 // 2

    # merged initial states for the rnn0 seed step: forward half from `hidden`
    # (or zeros); reversed branch always starts from zeros (reference behaviour).
    h0 = jnp.zeros((L, B, hp2), jnp.float32)
    c0 = jnp.zeros((L, B, hp2), jnp.float32)
    if hidden is not None:
        h_in, _c_in = hidden
        h_rep = jnp.broadcast_to(h_in[None].astype(jnp.float32), (L, B, H))
        h0 = h0.at[:, :, :H].set(h_rep)
        c0 = c0.at[:, :, :H].set(h_rep)   # reproduces `c0 = h0.detach()` in the reference

    # constant gather matrices: batch-major row b*N+t -> time-major row t*B+b,
    # and the same with time reversed.  Trace-time numpy constants, applied on
    # the MXU inside the kernel (replaces host-side transpose / flip / concat).
    r = np.arange(N * B)
    t_idx, b_idx = r // B, r % B
    pf = np.zeros((N * B, B * N), np.float32)
    pr = np.zeros((N * B, B * N), np.float32)
    pf[r, b_idx * N + t_idx] = 1.0
    pr[r, b_idx * N + (N - 1 - t_idx)] = 1.0

    out_shapes = (
        jax.ShapeDtypeStruct((B, N * H), jnp.float32),   # s_out, lane-dense slab
        jax.ShapeDtypeStruct((B, N, E), jnp.float32),    # g_embedding
        jax.ShapeDtypeStruct((L, B, H), jnp.float32),    # h_n (fwd + rev)
        jax.ShapeDtypeStruct((L, B, H), jnp.float32),    # c_n (fwd + rev)
        jax.ShapeDtypeStruct((B, H), jnp.float32),       # rnn0_reversed output (`_`)
    )
    sout, g, hn, cn, r0rev = pl.pallas_call(
        encoder_kernel,
        out_shape=out_shapes,
        # NOTE: no grid -- the whole problem fits comfortably in VMEM at these
        # shapes.  For production-size B, add a batch grid with
        # dimension_semantics=("parallel",) (and halve block sizes on v7x's
        # 64 MiB VMEM).
    )(x, pf, pr,
      params["We"], params["be"],
      params["Wg"], params["bg"], params["Wg1"], params["bg1"],
      params["Wg2"], params["bg2"],
      h0, c0,
      params["wih0"], params["whh0"], params["b0"],
      params["wih"], params["whh"], params["b"],
      params["Wf"], params["Wb"], params["bcomb"])

    s_out = sout.reshape(B, N, H)
    return s_out, (hn, cn), r0rev[:, None, :], g


# ----------------------------------------------------------------------------
if __name__ == "__main__":
    key = jax.random.PRNGKey(0)
    k_param, k_x = jax.random.split(key)

    B, N = 2, 8                        # batch, n_nodes (== sequence length)
    input_dim = 2                      # TSP coordinates
    embedding_dim = hidden_dim = 32    # residual GCN requires embedding == hidden
    n_rnn_layers = 1

    params = init_encoder_params(k_param, input_dim, embedding_dim,
                                 hidden_dim, n_rnn_layers)
    x = jax.random.uniform(k_x, (B, N, input_dim), jnp.float32)

    fwd = jax.jit(encoder_forward)
    s_out, (h_n, c_n), rnn0_rev_out, g_embedding = fwd(params, x)
    jax.block_until_ready((s_out, h_n, c_n, rnn0_rev_out, g_embedding))

    assert s_out.shape == (B, N, hidden_dim)
    assert h_n.shape == (n_rnn_layers, B, hidden_dim)
    assert c_n.shape == (n_rnn_layers, B, hidden_dim)
    assert rnn0_rev_out.shape == (B, 1, hidden_dim)
    assert g_embedding.shape == (B, N, embedding_dim)
    assert bool(jnp.all(jnp.isfinite(s_out)))
    assert bool(jnp.all(jnp.isfinite(h_n))) and bool(jnp.all(jnp.isfinite(c_n)))
    assert bool(jnp.all(jnp.isfinite(rnn0_rev_out)))
    assert bool(jnp.all(jnp.isfinite(g_embedding)))

    print("KERNEL_OK")
</pallas_src>

<mosaic_0001>
module attributes {stable_mosaic.version = 11 : i64} {
  func.func @encoder_kernel(%arg0: memref<2x8x2xf32, #tpu.memory_space<vmem>>, %arg1: memref<16x16xf32, #tpu.memory_space<vmem>>, %arg2: memref<16x16xf32, #tpu.memory_space<vmem>>, %arg3: memref<2x32xf32, #tpu.memory_space<vmem>>, %arg4: memref<1x32xf32, #tpu.memory_space<vmem>>, %arg5: memref<32x32xf32, #tpu.memory_space<vmem>>, %arg6: memref<1x32xf32, #tpu.memory_space<vmem>>, %arg7: memref<32x32xf32, #tpu.memory_space<vmem>>, %arg8: memref<1x32xf32, #tpu.memory_space<vmem>>, %arg9: memref<32x32xf32, #tpu.memory_space<vmem>>, %arg10: memref<1x32xf32, #tpu.memory_space<vmem>>, %arg11: memref<1x2x128xf32, #tpu.memory_space<vmem>>, %arg12: memref<1x2x128xf32, #tpu.memory_space<vmem>>, %arg13: memref<1x128x512xf32, #tpu.memory_space<vmem>>, %arg14: memref<1x128x512xf32, #tpu.memory_space<vmem>>, %arg15: memref<1x1x512xf32, #tpu.memory_space<vmem>>, %arg16: memref<1x128x512xf32, #tpu.memory_space<vmem>>, %arg17: memref<1x128x512xf32, #tpu.memory_space<vmem>>, %arg18: memref<1x1x512xf32, #tpu.memory_space<vmem>>, %arg19: memref<128x32xf32, #tpu.memory_space<vmem>>, %arg20: memref<128x32xf32, #tpu.memory_space<vmem>>, %arg21: memref<1x32xf32, #tpu.memory_space<vmem>>, %arg22: memref<2x256xf32, #tpu.memory_space<vmem>>, %arg23: memref<2x8x32xf32, #tpu.memory_space<vmem>>, %arg24: memref<1x2x32xf32, #tpu.memory_space<vmem>>, %arg25: memref<1x2x32xf32, #tpu.memory_space<vmem>>, %arg26: memref<2x32xf32, #tpu.memory_space<vmem>>) attributes {dimension_semantics = [], scalar_prefetch = 0 : i64, scratch_operands = 0 : i64, tpu.core_type = #tpu.core_type<tc>} {
    %c0 = arith.constant 0 : index
    %c0_0 = arith.constant 0 : index
    %c0_1 = arith.constant 0 : index
    %0 = vector.load %arg0[%c0, %c0_0, %c0_1] : memref<2x8x2xf32, #tpu.memory_space<vmem>>, vector<2x8x2xf32>
    %cst = arith.constant 0.000000e+00 : f32
    %1 = vector.broadcast %cst : f32 to vector<2x8x8xf32>
    %2 = vector.extract_strided_slice %0 {offsets = [0, 0, 0], sizes = [2, 8, 1], strides = [1, 1, 1]} : vector<2x8x2xf32> to vector<2x8x1xf32>
    %cst_2 = arith.constant dense<0.000000e+00> : vector<2x8xf32>
    %3 = vector.multi_reduction <add>, %2, %cst_2 [2] : vector<2x8x1xf32> to vector<2x8xf32>
    %4 = vector.shape_cast %3 : vector<2x8xf32> to vector<2x1x8xf32>
    %5 = vector.broadcast %2 : vector<2x8x1xf32> to vector<2x8x8xf32>
    %6 = vector.broadcast %4 : vector<2x1x8xf32> to vector<2x8x8xf32>
    %7 = arith.subf %5, %6 : vector<2x8x8xf32>
    %8 = arith.mulf %7, %7 : vector<2x8x8xf32>
    %9 = arith.addf %1, %8 : vector<2x8x8xf32>
    %10 = vector.extract_strided_slice %0 {offsets = [0, 0, 1], sizes = [2, 8, 1], strides = [1, 1, 1]} : vector<2x8x2xf32> to vector<2x8x1xf32>
    %cst_3 = arith.constant dense<0.000000e+00> : vector<2x8xf32>
    %11 = vector.multi_reduction <add>, %10, %cst_3 [2] : vector<2x8x1xf32> to vector<2x8xf32>
    %12 = vector.shape_cast %11 : vector<2x8xf32> to vector<2x1x8xf32>
    %13 = vector.broadcast %10 : vector<2x8x1xf32> to vector<2x8x8xf32>
    %14 = vector.broadcast %12 : vector<2x1x8xf32> to vector<2x8x8xf32>
    %15 = arith.subf %13, %14 : vector<2x8x8xf32>
    %16 = arith.mulf %15, %15 : vector<2x8x8xf32>
    %17 = arith.addf %9, %16 : vector<2x8x8xf32>
    %c0_4 = arith.constant 0 : index
    %c0_5 = arith.constant 0 : index
    %18 = vector.load %arg3[%c0_4, %c0_5] : memref<2x32xf32, #tpu.memory_space<vmem>>, vector<2x32xf32>
    %c0_6 = arith.constant 0 : index
    %c0_7 = arith.constant 0 : index
    %19 = vector.load %arg4[%c0_6, %c0_7] : memref<1x32xf32, #tpu.memory_space<vmem>>, vector<1x32xf32>
    %20 = vector.shape_cast %0 : vector<2x8x2xf32> to vector<16x2xf32>
    %cst_8 = arith.constant dense<0.000000e+00> : vector<16x32xf32>
    %21 = tpu.matmul %20, %18, %cst_8 {dimension_numbers = #tpu.dot_dimension_numbers<[1], [0], [0], [1], [0, 0, 1, 1], [], []>} : vector<16x2xf32>, vector<2x32xf32>, vector<16x32xf32> -> vector<16x32xf32>
    %22 = vector.broadcast %19 : vector<1x32xf32> to vector<16x32xf32>
    %23 = arith.addf %21, %22 : vector<16x32xf32>
    %24 = vector.shape_cast %23 : vector<16x32xf32> to vector<2x8x32xf32>
    %c0_9 = arith.constant 0 : index
    %c0_10 = arith.constant 0 : index
    %25 = vector.load %arg5[%c0_9, %c0_10] : memref<32x32xf32, #tpu.memory_space<vmem>>, vector<32x32xf32>
    %c0_11 = arith.constant 0 : index
    %c0_12 = arith.constant 0 : index
    %26 = vector.load %arg6[%c0_11, %c0_12] : memref<1x32xf32, #tpu.memory_space<vmem>>, vector<1x32xf32>
    %27 = vector.shape_cast %24 : vector<2x8x32xf32> to vector<16x32xf32>
    %cst_13 = arith.constant dense<0.000000e+00> : vector<16x32xf32>
    %28 = tpu.matmul %27, %25, %cst_13 {dimension_numbers = #tpu.dot_dimension_numbers<[1], [0], [0], [1], [0, 0, 1, 1], [], []>} : vector<16x32xf32>, vector<32x32xf32>, vector<16x32xf32> -> vector<16x32xf32>
    %29 = vector.broadcast %26 : vector<1x32xf32> to vector<16x32xf32>
    %30 = arith.addf %28, %29 : vector<16x32xf32>
    %31 = vector.shape_cast %30 : vector<16x32xf32> to vector<2x8x32xf32>
    "tpu.trace_start"() <{level = 10 : i32, message = "bnm,bme->bne"}> : () -> ()
    %cst_14 = arith.constant dense<0.000000e+00> : vector<2x8x32xf32>
    %32 = tpu.matmul %17, %31, %cst_14 {dimension_numbers = #tpu.dot_dimension_numbers<[2], [1], [1], [2], [0, 0, 0, 1, 1, 2], [0], [0]>} : vector<2x8x8xf32>, vector<2x8x32xf32>, vector<2x8x32xf32> -> vector<2x8x32xf32>
    "tpu.trace_stop"() : () -> ()
    %cst_15 = arith.constant 0.000000e+00 : f32
    %33 = vector.broadcast %cst_15 : f32 to vector<2x8x32xf32>
    %34 = arith.maximumf %32, %33 : vector<2x8x32xf32>
    %35 = arith.addf %24, %34 : vector<2x8x32xf32>
    %c0_16 = arith.constant 0 : index
    %c0_17 = arith.constant 0 : index
    %36 = vector.load %arg7[%c0_16, %c0_17] : memref<32x32xf32, #tpu.memory_space<vmem>>, vector<32x32xf32>
    %c0_18 = arith.constant 0 : index
    %c0_19 = arith.constant 0 : index
    %37 = vector.load %arg8[%c0_18, %c0_19] : memref<1x32xf32, #tpu.memory_space<vmem>>, vector<1x32xf32>
    %38 = vector.shape_cast %35 : vector<2x8x32xf32> to vector<16x32xf32>
    %cst_20 = arith.constant dense<0.000000e+00> : vector<16x32xf32>
    %39 = tpu.matmul %38, %36, %cst_20 {dimension_numbers = #tpu.dot_dimension_numbers<[1], [0], [0], [1], [0, 0, 1, 1], [], []>} : vector<16x32xf32>, vector<32x32xf32>, vector<16x32xf32> -> vector<16x32xf32>
    %40 = vector.broadcast %37 : vector<1x32xf32> to vector<16x32xf32>
    %41 = arith.addf %39, %40 : vector<16x32xf32>
    %42 = vector.shape_cast %41 : vector<16x32xf32> to vector<2x8x32xf32>
    "tpu.trace_start"() <{level = 10 : i32, message = "bnm,bme->bne"}> : () -> ()
    %cst_21 = arith.constant dense<0.000000e+00> : vector<2x8x32xf32>
    %43 = tpu.matmul %17, %42, %cst_21 {dimension_numbers = #tpu.dot_dimension_numbers<[2], [1], [1], [2], [0, 0, 0, 1, 1, 2], [0], [0]>} : vector<2x8x8xf32>, vector<2x8x32xf32>, vector<2x8x32xf32> -> vector<2x8x32xf32>
    "tpu.trace_stop"() : () -> ()
    %cst_22 = arith.constant 0.000000e+00 : f32
    %44 = vector.broadcast %cst_22 : f32 to vector<2x8x32xf32>
    %45 = arith.maximumf %43, %44 : vector<2x8x32xf32>
    %46 = arith.addf %35, %45 : vector<2x8x32xf32>
    %c0_23 = arith.constant 0 : index
    %c0_24 = arith.constant 0 : index
    %47 = vector.load %arg9[%c0_23, %c0_24] : memref<32x32xf32, #tpu.memory_space<vmem>>, vector<32x32xf32>
    %c0_25 = arith.constant 0 : index
    %c0_26 = arith.constant 0 : index
    %48 = vector.load %arg10[%c0_25, %c0_26] : memref<1x32xf32, #tpu.memory_space<vmem>>, vector<1x32xf32>
    %49 = vector.shape_cast %46 : vector<2x8x32xf32> to vector<16x32xf32>
    %cst_27 = arith.constant dense<0.000000e+00> : vector<16x32xf32>
    %50 = tpu.matmul %49, %47, %cst_27 {dimension_numbers = #tpu.dot_dimension_numbers<[1], [0], [0], [1], [0, 0, 1, 1], [], []>} : vector<16x32xf32>, vector<32x32xf32>, vector<16x32xf32> -> vector<16x32xf32>
    %51 = vector.broadcast %48 : vector<1x32xf32> to vector<16x32xf32>
    %52 = arith.addf %50, %51 : vector<16x32xf32>
    %53 = vector.shape_cast %52 : vector<16x32xf32> to vector<2x8x32xf32>
    "tpu.trace_start"() <{level = 10 : i32, message = "bnm,bme->bne"}> : () -> ()
    %cst_28 = arith.constant dense<0.000000e+00> : vector<2x8x32xf32>
    %54 = tpu.matmul %17, %53, %cst_28 {dimension_numbers = #tpu.dot_dimension_numbers<[2], [1], [1], [2], [0, 0, 0, 1, 1, 2], [0], [0]>} : vector<2x8x8xf32>, vector<2x8x32xf32>, vector<2x8x32xf32> -> vector<2x8x32xf32>
    "tpu.trace_stop"() : () -> ()
    %cst_29 = arith.constant 0.000000e+00 : f32
    %55 = vector.broadcast %cst_29 : f32 to vector<2x8x32xf32>
    %56 = arith.maximumf %54, %55 : vector<2x8x32xf32>
    %57 = arith.addf %46, %56 : vector<2x8x32xf32>
    %c0_30 = arith.constant 0 : index
    %c0_31 = arith.constant 0 : index
    %c0_32 = arith.constant 0 : index
    %58 = vector.load %arg23[%c0_30, %c0_31, %c0_32] : memref<2x8x32xf32, #tpu.memory_space<vmem>>, vector<2x8x32xf32>
    tpu.vector_store %arg23[%c0_30, %c0_31, %c0_32], %57 {strides = array<i32>} : memref<2x8x32xf32, #tpu.memory_space<vmem>>, vector<2x8x32xf32>,
    %59 = vector.shape_cast %57 : vector<2x8x32xf32> to vector<16x32xf32>
    %cst_33 = arith.constant 0.000000e+00 : f32
    %60 = vector.broadcast %cst_33 : f32 to vector<16x32xf32>
    %61 = tpu.concatenate %59, %60 in 1 : vector<16x32xf32>, vector<16x32xf32> -> vector<16x64xf32>
    %c0_34 = arith.constant 0 : index
    %c0_35 = arith.constant 0 : index
    %62 = vector.load %arg1[%c0_34, %c0_35] : memref<16x16xf32, #tpu.memory_space<vmem>>, vector<16x16xf32>
    %cst_36 = arith.constant dense<0.000000e+00> : vector<16x64xf32>
    %63 = tpu.matmul %62, %61, %cst_36 {dimension_numbers = #tpu.dot_dimension_numbers<[1], [0], [0], [1], [0, 0, 1, 1], [], []>} : vector<16x16xf32>, vector<16x64xf32>, vector<16x64xf32> -> vector<16x64xf32>
    %c0_37 = arith.constant 0 : index
    %c0_38 = arith.constant 0 : index
    %64 = vector.load %arg2[%c0_37, %c0_38] : memref<16x16xf32, #tpu.memory_space<vmem>>, vector<16x16xf32>
    %cst_39 = arith.constant dense<0.000000e+00> : vector<16x64xf32>
    %65 = tpu.matmul %64, %61, %cst_39 {dimension_numbers = #tpu.dot_dimension_numbers<[1], [0], [0], [1], [0, 0, 1, 1], [], []>} : vector<16x16xf32>, vector<16x64xf32>, vector<16x64xf32> -> vector<16x64xf32>
    %66 = tpu.concatenate %63, %65 in 1 : vector<16x64xf32>, vector<16x64xf32> -> vector<16x128xf32>
    %67 = vector.extract_strided_slice %66 {offsets = [14, 0], sizes = [2, 128], strides = [1, 1]} : vector<16x128xf32> to vector<2x128xf32>
    %c0_40 = arith.constant 0 : index
    %c0_41 = arith.constant 0 : index
    %c0_42 = arith.constant 0 : index
    %68 = vector.load %arg13[%c0_40, %c0_41, %c0_42] : memref<1x128x512xf32, #tpu.memory_space<vmem>>, vector<1x128x512xf32>
    %69 = vector.shape_cast %68 : vector<1x128x512xf32> to vector<128x512xf32>
    %c0_43 = arith.constant 0 : index
    %c0_44 = arith.constant 0 : index
    %c0_45 = arith.constant 0 : index
    %70 = vector.load %arg14[%c0_43, %c0_44, %c0_45] : memref<1x128x512xf32, #tpu.memory_space<vmem>>, vector<1x128x512xf32>
    %71 = vector.shape_cast %70 : vector<1x128x512xf32> to vector<128x512xf32>
    %c0_46 = arith.constant 0 : index
    %c0_47 = arith.constant 0 : index
    %c0_48 = arith.constant 0 : index
    %72 = vector.load %arg15[%c0_46, %c0_47, %c0_48] : memref<1x1x512xf32, #tpu.memory_space<vmem>>, vector<1x1x512xf32>
    %73 = vector.shape_cast %72 : vector<1x1x512xf32> to vector<1x512xf32>
    %c0_49 = arith.constant 0 : index
    %c0_50 = arith.constant 0 : index
    %c0_51 = arith.constant 0 : index
    %74 = vector.load %arg16[%c0_49, %c0_50, %c0_51] : memref<1x128x512xf32, #tpu.memory_space<vmem>>, vector<1x128x512xf32>
    %75 = vector.shape_cast %74 : vector<1x128x512xf32> to vector<128x512xf32>
    %c0_52 = arith.constant 0 : index
    %c0_53 = arith.constant 0 : index
    %c0_54 = arith.constant 0 : index
    %76 = vector.load %arg17[%c0_52, %c0_53, %c0_54] : memref<1x128x512xf32, #tpu.memory_space<vmem>>, vector<1x128x512xf32>
    %77 = vector.shape_cast %76 : vector<1x128x512xf32> to vector<128x512xf32>
    %c0_55 = arith.constant 0 : index
    %c0_56 = arith.constant 0 : index
    %c0_57 = arith.constant 0 : index
    %78 = vector.load %arg18[%c0_55, %c0_56, %c0_57] : memref<1x1x512xf32, #tpu.memory_space<vmem>>, vector<1x1x512xf32>
    %79 = vector.shape_cast %78 : vector<1x1x512xf32> to vector<1x512xf32>
    %cst_58 = arith.constant dense<0.000000e+00> : vector<2x512xf32>
    %80 = tpu.matmul %67, %69, %cst_58 {dimension_numbers = #tpu.dot_dimension_numbers<[1], [0], [0], [1], [0, 0, 1, 1], [], []>} : vector<2x128xf32>, vector<128x512xf32>, vector<2x512xf32> -> vector<2x512xf32>
    %c0_59 = arith.constant 0 : index
    %c0_60 = arith.constant 0 : index
    %c0_61 = arith.constant 0 : index
    %81 = vector.load %arg11[%c0_59, %c0_60, %c0_61] : memref<1x2x128xf32, #tpu.memory_space<vmem>>, vector<1x2x128xf32>
    %82 = vector.shape_cast %81 : vector<1x2x128xf32> to vector<2x128xf32>
    %cst_62 = arith.constant dense<0.000000e+00> : vector<2x512xf32>
    %83 = tpu.matmul %82, %71, %cst_62 {dimension_numbers = #tpu.dot_dimension_numbers<[1], [0], [0], [1], [0, 0, 1, 1], [], []>} : vector<2x128xf32>, vector<128x512xf32>, vector<2x512xf32> -> vector<2x512xf32>
    %84 = arith.addf %80, %83 : vector<2x512xf32>
    %85 = vector.broadcast %73 : vector<1x512xf32> to vector<2x512xf32>
    %86 = arith.addf %84, %85 : vector<2x512xf32>
    %c0_63 = arith.constant 0 : index
    %c0_64 = arith.constant 0 : index
    %c0_65 = arith.constant 0 : index
    %87 = vector.load %arg12[%c0_63, %c0_64, %c0_65] : memref<1x2x128xf32, #tpu.memory_space<vmem>>, vector<1x2x128xf32>
    %88 = vector.shape_cast %87 : vector<1x2x128xf32> to vector<2x128xf32>
    %89 = vector.extract_strided_slice %86 {offsets = [0, 0], sizes = [2, 384], strides = [1, 1]} : vector<2x512xf32> to vector<2x384xf32>
    %90 = arith.negf %89 : vector<2x384xf32>
    %91 = math.exp %90 : vector<2x384xf32>
    %cst_66 = arith.constant 1.000000e+00 : f32
    %92 = vector.broadcast %cst_66 : f32 to vector<2x384xf32>
    %93 = arith.addf %92, %91 : vector<2x384xf32>
    %94 = arith.divf %92, %93 : vector<2x384xf32>
    %95 = vector.extract_strided_slice %94 {offsets = [0, 0], sizes = [2, 128], strides = [1, 1]} : vector<2x384xf32> to vector<2x128xf32>
    %96 = vector.extract_strided_slice %94 {offsets = [0, 128], sizes = [2, 128], strides = [1, 1]} : vector<2x384xf32> to vector<2x128xf32>
    %97 = vector.extract_strided_slice %94 {offsets = [0, 256], sizes = [2, 128], strides = [1, 1]} : vector<2x384xf32> to vector<2x128xf32>
    %98 = vector.extract_strided_slice %86 {offsets = [0, 384], sizes = [2, 128], strides = [1, 1]} : vector<2x512xf32> to vector<2x128xf32>
    %99 = math.tanh %98 : vector<2x128xf32>
    %100 = arith.mulf %96, %88 : vector<2x128xf32>
    %101 = arith.mulf %95, %99 : vector<2x128xf32>
    %102 = arith.addf %100, %101 : vector<2x128xf32>
    %103 = math.tanh %102 : vector<2x128xf32>
    %104 = arith.mulf %97, %103 : vector<2x128xf32>
    %cst_67 = arith.constant dense<0.000000e+00> : vector<16x512xf32>
    %105 = tpu.matmul %66, %75, %cst_67 {dimension_numbers = #tpu.dot_dimension_numbers<[1], [0], [0], [1], [0, 0, 1, 1], [], []>} : vector<16x128xf32>, vector<128x512xf32>, vector<16x512xf32> -> vector<16x512xf32>
    %106 = vector.broadcast %79 : vector<1x512xf32> to vector<16x512xf32>
    %107 = arith.addf %105, %106 : vector<16x512xf32>
    %108 = vector.extract_strided_slice %107 {offsets = [0, 0], sizes = [2, 512], strides = [1, 1]} : vector<16x512xf32> to vector<2x512xf32>
    %cst_68 = arith.constant dense<0.000000e+00> : vector<2x512xf32>
    %109 = tpu.matmul %104, %77, %cst_68 {dimension_numbers = #tpu.dot_dimension_numbers<[1], [0], [0], [1], [0, 0, 1, 1], [], []>} : vector<2x128xf32>, vector<128x512xf32>, vector<2x512xf32> -> vector<2x512xf32>
    %110 = arith.addf %108, %109 : vector<2x512xf32>
    %111 = vector.extract_strided_slice %110 {offsets = [0, 0], sizes = [2, 384], strides = [1, 1]} : vector<2x512xf32> to vector<2x384xf32>
    %112 = arith.negf %111 : vector<2x384xf32>
    %113 = math.exp %112 : vector<2x384xf32>
    %cst_69 = arith.constant 1.000000e+00 : f32
    %114 = vector.broadcast %cst_69 : f32 to vector<2x384xf32>
    %115 = arith.addf %114, %113 : vector<2x384xf32>
    %116 = arith.divf %114, %115 : vector<2x384xf32>
    %117 = vector.extract_strided_slice %116 {offsets = [0, 0], sizes = [2, 128], strides = [1, 1]} : vector<2x384xf32> to vector<2x128xf32>
    %118 = vector.extract_strided_slice %116 {offsets = [0, 128], sizes = [2, 128], strides = [1, 1]} : vector<2x384xf32> to vector<2x128xf32>
    %119 = vector.extract_strided_slice %116 {offsets = [0, 256], sizes = [2, 128], strides = [1, 1]} : vector<2x384xf32> to vector<2x128xf32>
    %120 = vector.extract_strided_slice %110 {offsets = [0, 384], sizes = [2, 128], strides = [1, 1]} : vector<2x512xf32> to vector<2x128xf32>
    %121 = math.tanh %120 : vector<2x128xf32>
    %122 = arith.mulf %118, %102 : vector<2x128xf32>
    %123 = arith.mulf %117, %121 : vector<2x128xf32>
    %124 = arith.addf %122, %123 : vector<2x128xf32>
    %125 = math.tanh %124 : vector<2x128xf32>
    %126 = arith.mulf %119, %125 : vector<2x128xf32>
    %127 = vector.extract_strided_slice %107 {offsets = [2, 0], sizes = [2, 512], strides = [1, 1]} : vector<16x512xf32> to vector<2x512xf32>
    %cst_70 = arith.constant dense<0.000000e+00> : vector<2x512xf32>
    %128 = tpu.matmul %126, %77, %cst_70 {dimension_numbers = #tpu.dot_dimension_numbers<[1], [0], [0], [1], [0, 0, 1, 1], [], []>} : vector<2x128xf32>, vector<128x512xf32>, vector<2x512xf32> -> vector<2x512xf32>
    %129 = arith.addf %127, %128 : vector<2x512xf32>
    %130 = vector.extract_strided_slice %129 {offsets = [0, 0], sizes = [2, 384], strides = [1, 1]} : vector<2x512xf32> to vector<2x384xf32>
    %131 = arith.negf %130 : vector<2x384xf32>
    %132 = math.exp %131 : vector<2x384xf32>
    %cst_71 = arith.constant 1.000000e+00 : f32
    %133 = vector.broadcast %cst_71 : f32 to vector<2x384xf32>
    %134 = arith.addf %133, %132 : vector<2x384xf32>
    %135 = arith.divf %133, %134 : vector<2x384xf32>
    %136 = vector.extract_strided_slice %135 {offsets = [0, 0], sizes = [2, 128], strides = [1, 1]} : vector<2x384xf32> to vector<2x128xf32>
    %137 = vector.extract_strided_slice %135 {offsets = [0, 128], sizes = [2, 128], strides = [1, 1]} : vector<2x384xf32> to vector<2x128xf32>
    %138 = vector.extract_strided_slice %135 {offsets = [0, 256], sizes = [2, 128], strides = [1, 1]} : vector<2x384xf32> to vector<2x128xf32>
    %139 = vector.extract_strided_slice %129 {offsets = [0, 384], sizes = [2, 128], strides = [1, 1]} : vector<2x512xf32> to vector<2x128xf32>
    %140 = math.tanh %139 : vector<2x128xf32>
    %141 = arith.mulf %137, %124 : vector<2x128xf32>
    %142 = arith.mulf %136, %140 : vector<2x128xf32>
    %143 = arith.addf %141, %142 : vector<2x128xf32>
    %144 = math.tanh %143 : vector<2x128xf32>
    %145 = arith.mulf %138, %144 : vector<2x128xf32>
    %146 = vector.extract_strided_slice %107 {offsets = [4, 0], sizes = [2, 512], strides = [1, 1]} : vector<16x512xf32> to vector<2x512xf32>
    %cst_72 = arith.constant dense<0.000000e+00> : vector<2x512xf32>
    %147 = tpu.matmul %145, %77, %cst_72 {dimension_numbers = #tpu.dot_dimension_numbers<[1], [0], [0], [1], [0, 0, 1, 1], [], []>} : vector<2x128xf32>, vector<128x512xf32>, vector<2x512xf32> -> vector<2x512xf32>
    %148 = arith.addf %146, %147 : vector<2x512xf32>
    %149 = vector.extract_strided_slice %148 {offsets = [0, 0], sizes = [2, 384], strides = [1, 1]} : vector<2x512xf32> to vector<2x384xf32>
    %150 = arith.negf %149 : vector<2x384xf32>
    %151 = math.exp %150 : vector<2x384xf32>
    %cst_73 = arith.constant 1.000000e+00 : f32
    %152 = vector.broadcast %cst_73 : f32 to vector<2x384xf32>
    %153 = arith.addf %152, %151 : vector<2x384xf32>
    %154 = arith.divf %152, %153 : vector<2x384xf32>
    %155 = vector.extract_strided_slice %154 {offsets = [0, 0], sizes = [2, 128], strides = [1, 1]} : vector<2x384xf32> to vector<2x128xf32>
    %156 = vector.extract_strided_slice %154 {offsets = [0, 128], sizes = [2, 128], strides = [1, 1]} : vector<2x384xf32> to vector<2x128xf32>
    %157 = vector.extract_strided_slice %154 {offsets = [0, 256], sizes = [2, 128], strides = [1, 1]} : vector<2x384xf32> to vector<2x128xf32>
    %158 = vector.extract_strided_slice %148 {offsets = [0, 384], sizes = [2, 128], strides = [1, 1]} : vector<2x512xf32> to vector<2x128xf32>
    %159 = math.tanh %158 : vector<2x128xf32>
    %160 = arith.mulf %156, %143 : vector<2x128xf32>
    %161 = arith.mulf %155, %159 : vector<2x128xf32>
    %162 = arith.addf %160, %161 : vector<2x128xf32>
    %163 = math.tanh %162 : vector<2x128xf32>
    %164 = arith.mulf %157, %163 : vector<2x128xf32>
    %165 = vector.extract_strided_slice %107 {offsets = [6, 0], sizes = [2, 512], strides = [1, 1]} : vector<16x512xf32> to vector<2x512xf32>
    %cst_74 = arith.constant dense<0.000000e+00> : vector<2x512xf32>
    %166 = tpu.matmul %164, %77, %cst_74 {dimension_numbers = #tpu.dot_dimension_numbers<[1], [0], [0], [1], [0, 0, 1, 1], [], []>} : vector<2x128xf32>, vector<128x512xf32>, vector<2x512xf32> -> vector<2x512xf32>
    %167 = arith.addf %165, %166 : vector<2x512xf32>
    %168 = vector.extract_strided_slice %167 {offsets = [0, 0], sizes = [2, 384], strides = [1, 1]} : vector<2x512xf32> to vector<2x384xf32>
    %169 = arith.negf %168 : vector<2x384xf32>
    %170 = math.exp %169 : vector<2x384xf32>
    %cst_75 = arith.constant 1.000000e+00 : f32
    %171 = vector.broadcast %cst_75 : f32 to vector<2x384xf32>
    %172 = arith.addf %171, %170 : vector<2x384xf32>
    %173 = arith.divf %171, %172 : vector<2x384xf32>
    %174 = vector.extract_strided_slice %173 {offsets = [0, 0], sizes = [2, 128], strides = [1, 1]} : vector<2x384xf32> to vector<2x128xf32>
    %175 = vector.extract_strided_slice %173 {offsets = [0, 128], sizes = [2, 128], strides = [1, 1]} : vector<2x384xf32> to vector<2x128xf32>
    %176 = vector.extract_strided_slice %173 {offsets = [0, 256], sizes = [2, 128], strides = [1, 1]} : vector<2x384xf32> to vector<2x128xf32>
    %177 = vector.extract_strided_slice %167 {offsets = [0, 384], sizes = [2, 128], strides = [1, 1]} : vector<2x512xf32> to vector<2x128xf32>
    %178 = math.tanh %177 : vector<2x128xf32>
    %179 = arith.mulf %175, %162 : vector<2x128xf32>
    %180 = arith.mulf %174, %178 : vector<2x128xf32>
    %181 = arith.addf %179, %180 : vector<2x128xf32>
    %182 = math.tanh %181 : vector<2x128xf32>
    %183 = arith.mulf %176, %182 : vector<2x128xf32>
    %184 = vector.extract_strided_slice %107 {offsets = [8, 0], sizes = [2, 512], strides = [1, 1]} : vector<16x512xf32> to vector<2x512xf32>
    %cst_76 = arith.constant dense<0.000000e+00> : vector<2x512xf32>
    %185 = tpu.matmul %183, %77, %cst_76 {dimension_numbers = #tpu.dot_dimension_numbers<[1], [0], [0], [1], [0, 0, 1, 1], [], []>} : vector<2x128xf32>, vector<128x512xf32>, vector<2x512xf32> -> vector<2x512xf32>
    %186 = arith.addf %184, %185 : vector<2x512xf32>
    %187 = vector.extract_strided_slice %186 {offsets = [0, 0], sizes = [2, 384], strides = [1, 1]} : vector<2x512xf32> to vector<2x384xf32>
    %188 = arith.negf %187 : vector<2x384xf32>
    %189 = math.exp %188 : vector<2x384xf32>
    %cst_77 = arith.constant 1.000000e+00 : f32
    %190 = vector.broadcast %cst_77 : f32 to vector<2x384xf32>
    %191 = arith.addf %190, %189 : vector<2x384xf32>
    %192 = arith.divf %190, %191 : vector<2x384xf32>
    %193 = vector.extract_strided_slice %192 {offsets = [0, 0], sizes = [2, 128], strides = [1, 1]} : vector<2x384xf32> to vector<2x128xf32>
    %194 = vector.extract_strided_slice %192 {offsets = [0, 128], sizes = [2, 128], strides = [1, 1]} : vector<2x384xf32> to vector<2x128xf32>
    %195 = vector.extract_strided_slice %192 {offsets = [0, 256], sizes = [2, 128], strides = [1, 1]} : vector<2x384xf32> to vector<2x128xf32>
    %196 = vector.extract_strided_slice %186 {offsets = [0, 384], sizes = [2, 128], strides = [1, 1]} : vector<2x512xf32> to vector<2x128xf32>
    %197 = math.tanh %196 : vector<2x128xf32>
    %198 = arith.mulf %194, %181 : vector<2x128xf32>
    %199 = arith.mulf %193, %197 : vector<2x128xf32>
    %200 = arith.addf %198, %199 : vector<2x128xf32>
    %201 = math.tanh %200 : vector<2x128xf32>
    %202 = arith.mulf %195, %201 : vector<2x128xf32>
    %203 = vector.extract_strided_slice %107 {offsets = [10, 0], sizes = [2, 512], strides = [1, 1]} : vector<16x512xf32> to vector<2x512xf32>
    %cst_78 = arith.constant dense<0.000000e+00> : vector<2x512xf32>
    %204 = tpu.matmul %202, %77, %cst_78 {dimension_numbers = #tpu.dot_dimension_numbers<[1], [0], [0], [1], [0, 0, 1, 1], [], []>} : vector<2x128xf32>, vector<128x512xf32>, vector<2x512xf32> -> vector<2x512xf32>
    %205 = arith.addf %203, %204 : vector<2x512xf32>
    %206 = vector.extract_strided_slice %205 {offsets = [0, 0], sizes = [2, 384], strides = [1, 1]} : vector<2x512xf32> to vector<2x384xf32>
    %207 = arith.negf %206 : vector<2x384xf32>
    %208 = math.exp %207 : vector<2x384xf32>
    %cst_79 = arith.constant 1.000000e+00 : f32
    %209 = vector.broadcast %cst_79 : f32 to vector<2x384xf32>
    %210 = arith.addf %209, %208 : vector<2x384xf32>
    %211 = arith.divf %209, %210 : vector<2x384xf32>
    %212 = vector.extract_strided_slice %211 {offsets = [0, 0], sizes = [2, 128], strides = [1, 1]} : vector<2x384xf32> to vector<2x128xf32>
    %213 = vector.extract_strided_slice %211 {offsets = [0, 128], sizes = [2, 128], strides = [1, 1]} : vector<2x384xf32> to vector<2x128xf32>
    %214 = vector.extract_strided_slice %211 {offsets = [0, 256], sizes = [2, 128], strides = [1, 1]} : vector<2x384xf32> to vector<2x128xf32>
    %215 = vector.extract_strided_slice %205 {offsets = [0, 384], sizes = [2, 128], strides = [1, 1]} : vector<2x512xf32> to vector<2x128xf32>
    %216 = math.tanh %215 : vector<2x128xf32>
    %217 = arith.mulf %213, %200 : vector<2x128xf32>
    %218 = arith.mulf %212, %216 : vector<2x128xf32>
    %219 = arith.addf %217, %218 : vector<2x128xf32>
    %220 = math.tanh %219 : vector<2x128xf32>
    %221 = arith.mulf %214, %220 : vector<2x128xf32>
    %222 = vector.extract_strided_slice %107 {offsets = [12, 0], sizes = [2, 512], strides = [1, 1]} : vector<16x512xf32> to vector<2x512xf32>
    %cst_80 = arith.constant dense<0.000000e+00> : vector<2x512xf32>
    %223 = tpu.matmul %221, %77, %cst_80 {dimension_numbers = #tpu.dot_dimension_numbers<[1], [0], [0], [1], [0, 0, 1, 1], [], []>} : vector<2x128xf32>, vector<128x512xf32>, vector<2x512xf32> -> vector<2x512xf32>
    %224 = arith.addf %222, %223 : vector<2x512xf32>
    %225 = vector.extract_strided_slice %224 {offsets = [0, 0], sizes = [2, 384], strides = [1, 1]} : vector<2x512xf32> to vector<2x384xf32>
    %226 = arith.negf %225 : vector<2x384xf32>
    %227 = math.exp %226 : vector<2x384xf32>
    %cst_81 = arith.constant 1.000000e+00 : f32
    %228 = vector.broadcast %cst_81 : f32 to vector<2x384xf32>
    %229 = arith.addf %228, %227 : vector<2x384xf32>
    %230 = arith.divf %228, %229 : vector<2x384xf32>
    %231 = vector.extract_strided_slice %230 {offsets = [0, 0], sizes = [2, 128], strides = [1, 1]} : vector<2x384xf32> to vector<2x128xf32>
    %232 = vector.extract_strided_slice %230 {offsets = [0, 128], sizes = [2, 128], strides = [1, 1]} : vector<2x384xf32> to vector<2x128xf32>
    %233 = vector.extract_strided_slice %230 {offsets = [0, 256], sizes = [2, 128], strides = [1, 1]} : vector<2x384xf32> to vector<2x128xf32>
    %234 = vector.extract_strided_slice %224 {offsets = [0, 384], sizes = [2, 128], strides = [1, 1]} : vector<2x512xf32> to vector<2x128xf32>
    %235 = math.tanh %234 : vector<2x128xf32>
    %236 = arith.mulf %232, %219 : vector<2x128xf32>
    %237 = arith.mulf %231, %235 : vector<2x128xf32>
    %238 = arith.addf %236, %237 : vector<2x128xf32>
    %239 = math.tanh %238 : vector<2x128xf32>
    %240 = arith.mulf %233, %239 : vector<2x128xf32>
    %241 = vector.extract_strided_slice %107 {offsets = [14, 0], sizes = [2, 512], strides = [1, 1]} : vector<16x512xf32> to vector<2x512xf32>
    %cst_82 = arith.constant dense<0.000000e+00> : vector<2x512xf32>
    %242 = tpu.matmul %240, %77, %cst_82 {dimension_numbers = #tpu.dot_dimension_numbers<[1], [0], [0], [1], [0, 0, 1, 1], [], []>} : vector<2x128xf32>, vector<128x512xf32>, vector<2x512xf32> -> vector<2x512xf32>
    %243 = arith.addf %241, %242 : vector<2x512xf32>
    %244 = vector.extract_strided_slice %243 {offsets = [0, 0], sizes = [2, 384], strides = [1, 1]} : vector<2x512xf32> to vector<2x384xf32>
    %245 = arith.negf %244 : vector<2x384xf32>
    %246 = math.exp %245 : vector<2x384xf32>
    %cst_83 = arith.constant 1.000000e+00 : f32
    %247 = vector.broadcast %cst_83 : f32 to vector<2x384xf32>
    %248 = arith.addf %247, %246 : vector<2x384xf32>
    %249 = arith.divf %247, %248 : vector<2x384xf32>
    %250 = vector.extract_strided_slice %249 {offsets = [0, 0], sizes = [2, 128], strides = [1, 1]} : vector<2x384xf32> to vector<2x128xf32>
    %251 = vector.extract_strided_slice %249 {offsets = [0, 128], sizes = [2, 128], strides = [1, 1]} : vector<2x384xf32> to vector<2x128xf32>
    %252 = vector.extract_strided_slice %249 {offsets = [0, 256], sizes = [2, 128], strides = [1, 1]} : vector<2x384xf32> to vector<2x128xf32>
    %253 = vector.extract_strided_slice %243 {offsets = [0, 384], sizes = [2, 128], strides = [1, 1]} : vector<2x512xf32> to vector<2x128xf32>
    %254 = math.tanh %253 : vector<2x128xf32>
    %255 = arith.mulf %251, %238 : vector<2x128xf32>
    %256 = arith.mulf %250, %254 : vector<2x128xf32>
    %257 = arith.addf %255, %256 : vector<2x128xf32>
    %258 = math.tanh %257 : vector<2x128xf32>
    %259 = arith.mulf %252, %258 : vector<2x128xf32>
    %260 = vector.extract_strided_slice %259 {offsets = [0, 0], sizes = [2, 32], strides = [1, 1]} : vector<2x128xf32> to vector<2x32xf32>
    %261 = vector.extract_strided_slice %259 {offsets = [0, 64], sizes = [2, 32], strides = [1, 1]} : vector<2x128xf32> to vector<2x32xf32>
    %262 = arith.addf %260, %261 : vector<2x32xf32>
    %c0_84 = arith.constant 0 : index
    %c0_85 = arith.constant 0 : index
    %c0_86 = arith.constant 0 : index
    %263 = vector.load %arg24[%c0_84, %c0_85, %c0_86] : memref<1x2x32xf32, #tpu.memory_space<vmem>>, vector<1x2x32xf32>
    %264 = vector.shape_cast %263 : vector<1x2x32xf32> to vector<2x32xf32>
    %265 = vector.shape_cast %262 : vector<2x32xf32> to vector<1x2x32xf32>
    tpu.vector_store %arg24[%c0_84, %c0_85, %c0_86], %265 {strides = array<i32>} : memref<1x2x32xf32, #tpu.memory_space<vmem>>, vector<1x2x32xf32>,
    %266 = vector.extract_strided_slice %257 {offsets = [0, 0], sizes = [2, 32], strides = [1, 1]} : vector<2x128xf32> to vector<2x32xf32>
    %267 = vector.extract_strided_slice %257 {offsets = [0, 64], sizes = [2, 32], strides = [1, 1]} : vector<2x128xf32> to vector<2x32xf32>
    %268 = arith.addf %266, %267 : vector<2x32xf32>
    %c0_87 = arith.constant 0 : index
    %c0_88 = arith.constant 0 : index
    %c0_89 = arith.constant 0 : index
    %269 = vector.load %arg25[%c0_87, %c0_88, %c0_89] : memref<1x2x32xf32, #tpu.memory_space<vmem>>, vector<1x2x32xf32>
    %270 = vector.shape_cast %269 : vector<1x2x32xf32> to vector<2x32xf32>
    %271 = vector.shape_cast %268 : vector<2x32xf32> to vector<1x2x32xf32>
    tpu.vector_store %arg25[%c0_87, %c0_88, %c0_89], %271 {strides = array<i32>} : memref<1x2x32xf32, #tpu.memory_space<vmem>>, vector<1x2x32xf32>,
    %272 = tpu.concatenate %126, %145, %164, %183, %202, %221, %240, %259 in 0 : vector<2x128xf32>, vector<2x128xf32>, vector<2x128xf32>, vector<2x128xf32>, vector<2x128xf32>, vector<2x128xf32>, vector<2x128xf32>, vector<2x128xf32> -> vector<16x128xf32>
    %c0_90 = arith.constant 0 : index
    %c0_91 = arith.constant 0 : index
    %273 = vector.load %arg19[%c0_90, %c0_91] : memref<128x32xf32, #tpu.memory_space<vmem>>, vector<128x32xf32>
    %cst_92 = arith.constant dense<0.000000e+00> : vector<16x32xf32>
    %274 = tpu.matmul %272, %273, %cst_92 {dimension_numbers = #tpu.dot_dimension_numbers<[1], [0], [0], [1], [0, 0, 1, 1], [], []>} : vector<16x128xf32>, vector<128x32xf32>, vector<16x32xf32> -> vector<16x32xf32>
    %c0_93 = arith.constant 0 : index
    %c0_94 = arith.constant 0 : index
    %275 = vector.load %arg20[%c0_93, %c0_94] : memref<128x32xf32, #tpu.memory_space<vmem>>, vector<128x32xf32>
    %cst_95 = arith.constant dense<0.000000e+00> : vector<16x32xf32>
    %276 = tpu.matmul %272, %275, %cst_95 {dimension_numbers = #tpu.dot_dimension_numbers<[1], [0], [0], [1], [0, 0, 1, 1], [], []>} : vector<16x128xf32>, vector<128x32xf32>, vector<16x32xf32> -> vector<16x32xf32>
    %c0_96 = arith.constant 0 : index
    %c0_97 = arith.constant 0 : index
    %277 = vector.load %arg21[%c0_96, %c0_97] : memref<1x32xf32, #tpu.memory_space<vmem>>, vector<1x32xf32>
    %278 = vector.extract_strided_slice %274 {offsets = [0, 0], sizes = [2, 32], strides = [1, 1]} : vector<16x32xf32> to vector<2x32xf32>
    %279 = vector.extract_strided_slice %276 {offsets = [14, 0], sizes = [2, 32], strides = [1, 1]} : vector<16x32xf32> to vector<2x32xf32>
    %280 = arith.addf %278, %279 : vector<2x32xf32>
    %281 = vector.broadcast %277 : vector<1x32xf32> to vector<2x32xf32>
    %282 = arith.addf %280, %281 : vector<2x32xf32>
    %283 = vector.extract_strided_slice %274 {offsets = [2, 0], sizes = [2, 32], strides = [1, 1]} : vector<16x32xf32> to vector<2x32xf32>
    %284 = vector.extract_strided_slice %276 {offsets = [12, 0], sizes = [2, 32], strides = [1, 1]} : vector<16x32xf32> to vector<2x32xf32>
    %285 = arith.addf %283, %284 : vector<2x32xf32>
    %286 = vector.broadcast %277 : vector<1x32xf32> to vector<2x32xf32>
    %287 = arith.addf %285, %286 : vector<2x32xf32>
    %288 = vector.extract_strided_slice %274 {offsets = [4, 0], sizes = [2, 32], strides = [1, 1]} : vector<16x32xf32> to vector<2x32xf32>
    %289 = vector.extract_strided_slice %276 {offsets = [10, 0], sizes = [2, 32], strides = [1, 1]} : vector<16x32xf32> to vector<2x32xf32>
    %290 = arith.addf %288, %289 : vector<2x32xf32>
    %291 = vector.broadcast %277 : vector<1x32xf32> to vector<2x32xf32>
    %292 = arith.addf %290, %291 : vector<2x32xf32>
    %293 = vector.extract_strided_slice %274 {offsets = [6, 0], sizes = [2, 32], strides = [1, 1]} : vector<16x32xf32> to vector<2x32xf32>
    %294 = vector.extract_strided_slice %276 {offsets = [8, 0], sizes = [2, 32], strides = [1, 1]} : vector<16x32xf32> to vector<2x32xf32>
    %295 = arith.addf %293, %294 : vector<2x32xf32>
    %296 = vector.broadcast %277 : vector<1x32xf32> to vector<2x32xf32>
    %297 = arith.addf %295, %296 : vector<2x32xf32>
    %298 = vector.extract_strided_slice %274 {offsets = [8, 0], sizes = [2, 32], strides = [1, 1]} : vector<16x32xf32> to vector<2x32xf32>
    %299 = vector.extract_strided_slice %276 {offsets = [6, 0], sizes = [2, 32], strides = [1, 1]} : vector<16x32xf32> to vector<2x32xf32>
    %300 = arith.addf %298, %299 : vector<2x32xf32>
    %301 = vector.broadcast %277 : vector<1x32xf32> to vector<2x32xf32>
    %302 = arith.addf %300, %301 : vector<2x32xf32>
    %303 = vector.extract_strided_slice %274 {offsets = [10, 0], sizes = [2, 32], strides = [1, 1]} : vector<16x32xf32> to vector<2x32xf32>
    %304 = vector.extract_strided_slice %276 {offsets = [4, 0], sizes = [2, 32], strides = [1, 1]} : vector<16x32xf32> to vector<2x32xf32>
    %305 = arith.addf %303, %304 : vector<2x32xf32>
    %306 = vector.broadcast %277 : vector<1x32xf32> to vector<2x32xf32>
    %307 = arith.addf %305, %306 : vector<2x32xf32>
    %308 = vector.extract_strided_slice %274 {offsets = [12, 0], sizes = [2, 32], strides = [1, 1]} : vector<16x32xf32> to vector<2x32xf32>
    %309 = vector.extract_strided_slice %276 {offsets = [2, 0], sizes = [2, 32], strides = [1, 1]} : vector<16x32xf32> to vector<2x32xf32>
    %310 = arith.addf %308, %309 : vector<2x32xf32>
    %311 = vector.broadcast %277 : vector<1x32xf32> to vector<2x32xf32>
    %312 = arith.addf %310, %311 : vector<2x32xf32>
    %313 = vector.extract_strided_slice %274 {offsets = [14, 0], sizes = [2, 32], strides = [1, 1]} : vector<16x32xf32> to vector<2x32xf32>
    %314 = vector.extract_strided_slice %276 {offsets = [0, 0], sizes = [2, 32], strides = [1, 1]} : vector<16x32xf32> to vector<2x32xf32>
    %315 = arith.addf %313, %314 : vector<2x32xf32>
    %316 = vector.broadcast %277 : vector<1x32xf32> to vector<2x32xf32>
    %317 = arith.addf %315, %316 : vector<2x32xf32>
    %318 = tpu.concatenate %282, %287, %292, %297, %302, %307, %312, %317 in 1 : vector<2x32xf32>, vector<2x32xf32>, vector<2x32xf32>, vector<2x32xf32>, vector<2x32xf32>, vector<2x32xf32>, vector<2x32xf32>, vector<2x32xf32> -> vector<2x256xf32>
    %319 = math.tanh %318 : vector<2x256xf32>
    %c0_98 = arith.constant 0 : index
    %c0_99 = arith.constant 0 : index
    %320 = vector.load %arg22[%c0_98, %c0_99] : memref<2x256xf32, #tpu.memory_space<vmem>>, vector<2x256xf32>
    tpu.vector_store %arg22[%c0_98, %c0_99], %319 {strides = array<i32>} : memref<2x256xf32, #tpu.memory_space<vmem>>, vector<2x256xf32>,
    %321 = vector.extract_strided_slice %104 {offsets = [0, 64], sizes = [2, 32], strides = [1, 1]} : vector<2x128xf32> to vector<2x32xf32>
    %c0_100 = arith.constant 0 : index
    %c0_101 = arith.constant 0 : index
    %322 = vector.load %arg26[%c0_100, %c0_101] : memref<2x32xf32, #tpu.memory_space<vmem>>, vector<2x32xf32>
    tpu.vector_store %arg26[%c0_100, %c0_101], %321 {strides = array<i32>} : memref<2x32xf32, #tpu.memory_space<vmem>>, vector<2x32xf32>,
    return
  }
}

</mosaic_0001>

<llo_original>
// kernel: encoder_forward.1
$region0: #{encoder_forward.1}
  #allocation0 [shape = 'u32[]', space=smem, size = 0x4, offset = 0x4, fixed_abs, tag = 'smem constant byte address 0x4 - core index']
  #allocation1 [shape = 'u32[144,128]{1,0:T(1,128)}', space=vmem, size = 0x12000, scoped, tag = 'internal scratch']
  %s0 = inlined_call_operand.vmem [shape: f32[2,8,2], index: 0, kind: input, shape index: {}]
  %s1 = inlined_call_operand.vmem [shape: f32[16,16], index: 1, kind: input, shape index: {}]
  %s2 = inlined_call_operand.vmem [shape: f32[16,16], index: 2, kind: input, shape index: {}]
  %s3 = inlined_call_operand.vmem [shape: f32[2,32], index: 3, kind: input, shape index: {}]
  %s4 = inlined_call_operand.vmem [shape: f32[1,32], index: 4, kind: input, shape index: {}]
  %s5 = inlined_call_operand.vmem [shape: f32[32,32], index: 5, kind: input, shape index: {}]
  %s6 = inlined_call_operand.vmem [shape: f32[1,32], index: 6, kind: input, shape index: {}]
  %s7 = inlined_call_operand.vmem [shape: f32[32,32], index: 7, kind: input, shape index: {}]
  %s8 = inlined_call_operand.vmem [shape: f32[1,32], index: 8, kind: input, shape index: {}]
  %s9 = inlined_call_operand.vmem [shape: f32[32,32], index: 9, kind: input, shape index: {}]
  %s10 = inlined_call_operand.vmem [shape: f32[1,32], index: 10, kind: input, shape index: {}]
  %s11 = inlined_call_operand.vmem [shape: f32[1,2,128], index: 11, kind: input, shape index: {}, may-alias: {11,12}]
  %s12 = inlined_call_operand.vmem [shape: f32[1,2,128], index: 12, kind: input, shape index: {}, may-alias: {11,12}]
  %s13 = inlined_call_operand.hbm [shape: f32[1,128,512], index: 13, kind: input, shape index: {}]
  %s14 = inlined_call_operand.hbm [shape: f32[1,128,512], index: 14, kind: input, shape index: {}]
  %s15 = inlined_call_operand.vmem [shape: f32[1,1,512], index: 15, kind: input, shape index: {}]
  %s16 = inlined_call_operand.hbm [shape: f32[1,128,512], index: 16, kind: input, shape index: {}]
  %s17 = inlined_call_operand.hbm [shape: f32[1,128,512], index: 17, kind: input, shape index: {}]
  %s18 = inlined_call_operand.vmem [shape: f32[1,1,512], index: 18, kind: input, shape index: {}]
  %s19 = inlined_call_operand.vmem [shape: f32[128,32], index: 19, kind: input, shape index: {}]
  %s20 = inlined_call_operand.vmem [shape: f32[128,32], index: 20, kind: input, shape index: {}]
  %s21 = inlined_call_operand.vmem [shape: f32[1,32], index: 21, kind: input, shape index: {}]
  %s22 = inlined_call_operand.vmem [shape: f32[2,256], index: 22, kind: output, shape index: {0}]
  %s23 = inlined_call_operand.hbm [shape: f32[2,8,32], index: 23, kind: output, shape index: {1}]
  %s24 = inlined_call_operand.hbm [shape: f32[1,2,32], index: 24, kind: output, shape index: {2}]
  %s25 = inlined_call_operand.hbm [shape: f32[1,2,32], index: 25, kind: output, shape index: {3}]
  %s26 = inlined_call_operand.hbm [shape: f32[2,32], index: 26, kind: output, shape index: {4}]
  %27 = xla_tuple %s22, %s23, %s24, %s25, %s26
  %s28 = sld [smem:[#allocation0]]
  $region146: #{encoder_forward.1} parent=0
    _
  %s30 = ssub.s32 1, %s28
  %s31 = scalar_select 0, %s30, %s28
  $region1: #{encoder_forward.1} parent=0
    #allocation2 [shape = 'u8[262144]{0}', space=vmem, size = 0x40000, scoped, tag = 'input window, operand 13, single buffered']
    #allocation3 [shape = 's32[1]{0}', space=sflag, size = 0x4, scoped, tag = 'scoped memory for encoder_forward.1']
    #allocation4 [shape = 's32[1]{0}', space=sflag, size = 0x4, scoped, tag = 'scoped memory for encoder_forward.1']
    #allocation5 [shape = 'u8[262144]{0}', space=vmem, size = 0x40000, scoped, tag = 'input window, operand 14, single buffered']
    #allocation6 [shape = 's32[1]{0}', space=sflag, size = 0x4, scoped, tag = 'scoped memory for encoder_forward.1']
    #allocation7 [shape = 'u8[262144]{0}', space=vmem, size = 0x40000, scoped, tag = 'input window, operand 16, single buffered']
    #allocation8 [shape = 'u8[262144]{0}', space=vmem, size = 0x40000, scoped, tag = 'input window, operand 17, single buffered']
    #allocation9 [shape = 's32[1]{0}', space=sflag, size = 0x4, scoped, tag = 'scoped memory for encoder_forward.1']
    #allocation10 [shape = 'u8[8192]{0}', space=vmem, size = 0x2000, scoped, tag = 'output window, operand 1, single buffered']
    #allocation11 [shape = 'u8[1024]{0}', space=vmem, size = 0x400, scoped, tag = 'output window, operand 2, single buffered']
    #allocation12 [shape = 's32[1]{0}', space=sflag, size = 0x4, scoped, tag = 'scoped memory for encoder_forward.1']
    #allocation13 [shape = 'u8[1024]{0}', space=vmem, size = 0x400, scoped, tag = 'output window, operand 3, single buffered']
    #allocation14 [shape = 'u8[1024]{0}', space=vmem, size = 0x400, scoped, tag = 'output window, operand 4, single buffered']
    #allocation15 [shape = 's32[1]{0}', space=sflag, size = 0x4, scoped, tag = 'scoped memory for encoder_forward.1']
    %32 = vsyncpa [#allocation3], 0
    %33 = vsyncpa [#allocation6], 0
    %34 = vsyncpa [#allocation9], 0
    %35 = vsyncpa [#allocation4], 0
    %36 = vsyncpa [#allocation12], 0
    %37 = vsyncpa [#allocation15], 0
    // Predicated region
    $region2: #{encoder_forward.1} parent=1 // pred_check
      _
    $region3: #{encoder_forward.1} parent=1 // pred_check_branch
      %39 = sbr.rel (0) target = $region5
    $region4: #{encoder_forward.1} parent=1 // pred_region
      _
    $region5: #{encoder_forward.1} parent=1 // pred_fallthru
      _
    // Predicated region
    $region6: #{encoder_forward.1} parent=1 // pred_check
      _
    $region7: #{encoder_forward.1} parent=1 // pred_check_branch
      %41 = sbr.rel (0) target = $region9
    $region8: #{encoder_forward.1} parent=1 // pred_region
      _
    $region9: #{encoder_forward.1} parent=1 // pred_fallthru
      _
    // Predicated region
    $region10: #{encoder_forward.1} parent=1 // pred_check
      _
    $region11: #{encoder_forward.1} parent=1 // pred_check_branch
      %43 = sbr.rel (0) target = $region13
    $region12: #{encoder_forward.1} parent=1 // pred_region
      _
    $region13: #{encoder_forward.1} parent=1 // pred_fallthru
      _
    // Predicated region
    $region14: #{encoder_forward.1} parent=1 // pred_check
      _
    $region15: #{encoder_forward.1} parent=1 // pred_check_branch
      %45 = sbr.rel (0) target = $region17
    $region16: #{encoder_forward.1} parent=1 // pred_region
      _
    $region17: #{encoder_forward.1} parent=1 // pred_fallthru
      _
    // Predicated region
    $region18: #{encoder_forward.1} parent=1 // pred_check
      _
    $region19: #{encoder_forward.1} parent=1 // pred_check_branch
      %47 = sbr.rel (0) target = $region21
    $region20: #{encoder_forward.1} parent=1 // pred_region
      _
    $region21: #{encoder_forward.1} parent=1 // pred_fallthru
      _
    // Predicated region
    $region22: #{encoder_forward.1} parent=1 // pred_check
      _
    $region23: #{encoder_forward.1} parent=1 // pred_check_branch
      %49 = sbr.rel (0) target = $region25
    $region24: #{encoder_forward.1} parent=1 // pred_region
      _
    $region25: #{encoder_forward.1} parent=1 // pred_fallthru
      _
    // Predicated region
    $region26: #{encoder_forward.1} parent=1 // pred_check
      _
    $region27: #{encoder_forward.1} parent=1 // pred_check_branch
      %51 = sbr.rel (0) target = $region29
    $region28: #{encoder_forward.1} parent=1 // pred_region
      _
    $region29: #{encoder_forward.1} parent=1 // pred_fallthru
      _
    // Predicated region
    $region30: #{encoder_forward.1} parent=1 // pred_check
      _
    $region31: #{encoder_forward.1} parent=1 // pred_check_branch
      %53 = sbr.rel (0) target = $region33
    $region32: #{encoder_forward.1} parent=1 // pred_region
      _
    $region33: #{encoder_forward.1} parent=1 // pred_fallthru
      _
    // Predicated region
    $region34: #{encoder_forward.1} parent=1 // pred_check
      _
    $region35: #{encoder_forward.1} parent=1 // pred_check_branch
      %55 = sbr.rel (0) target = $region37
    $region36: #{encoder_forward.1} parent=1 // pred_region
      _
    $region37: #{encoder_forward.1} parent=1 // pred_fallthru
      _
    // Predicated region
    $region38: #{encoder_forward.1} parent=1 // pred_check
      _
    $region39: #{encoder_forward.1} parent=1 // pred_check_branch
      %57 = sbr.rel (0) target = $region41
    $region40: #{encoder_forward.1} parent=1 // pred_region
      _
    $region41: #{encoder_forward.1} parent=1 // pred_fallthru
      _
    // Predicated region
    $region42: #{encoder_forward.1} parent=1 // pred_check
      _
    $region43: #{encoder_forward.1} parent=1 // pred_check_branch
      %59 = sbr.rel (0) target = $region45
    $region44: #{encoder_forward.1} parent=1 // pred_region
      _
    $region45: #{encoder_forward.1} parent=1 // pred_fallthru
      _
    // Predicated region
    $region46: #{encoder_forward.1} parent=1 // pred_check
      _
    $region47: #{encoder_forward.1} parent=1 // pred_check_branch
      %61 = sbr.rel (0) target = $region49
    $region48: #{encoder_forward.1} parent=1 // pred_region
      _
    $region49: #{encoder_forward.1} parent=1 // pred_fallthru
      _
    // Predicated region
    $region50: #{encoder_forward.1} parent=1 // pred_check
      _
    $region51: #{encoder_forward.1} parent=1 // pred_check_branch
      %63 = sbr.rel (0) target = $region53
    $region52: #{encoder_forward.1} parent=1 // pred_region
      _
    $region53: #{encoder_forward.1} parent=1 // pred_fallthru
      _
    // Predicated region
    $region54: #{encoder_forward.1} parent=1 // pred_check
      _
    $region55: #{encoder_forward.1} parent=1 // pred_check_branch
      %65 = sbr.rel (0) target = $region57
    $region56: #{encoder_forward.1} parent=1 // pred_region
      %s67 = ssub.s32 8192, 8192
      %68 = vsyncadd [#allocation3], %s67
      %s69 = sshll.u32 [#allocation2], 4
      %s70 = int_to_ptr.vmem [resolvable:$true] %s69
      %75 = dma.hbm_to_vmem [thread:$0]  %s13, 8192, %s70, [#allocation3], 512, 512, 32
    $region57: #{encoder_forward.1} parent=1 // pred_fallthru
      _
    // Predicated region
    $region58: #{encoder_forward.1} parent=1 // pred_check
      _
    $region59: #{encoder_forward.1} parent=1 // pred_check_branch
      %77 = sbr.rel (0) target = $region61
    $region60: #{encoder_forward.1} parent=1 // pred_region
      %s79 = ssub.s32 8192, 8192
      %80 = vsyncadd [#allocation6], %s79
      %s81 = sshll.u32 [#allocation5], 4
      %s82 = int_to_ptr.vmem [resolvable:$true] %s81
      %87 = dma.hbm_to_vmem [thread:$0]  %s14, 8192, %s82, [#allocation6], 512, 512, 32
    $region61: #{encoder_forward.1} parent=1 // pred_fallthru
      _
    // Predicated region
    $region62: #{encoder_forward.1} parent=1 // pred_check
      _
    $region63: #{encoder_forward.1} parent=1 // pred_check_branch
      %89 = sbr.rel (0) target = $region65
    $region64: #{encoder_forward.1} parent=1 // pred_region
      _
    $region65: #{encoder_forward.1} parent=1 // pred_fallthru
      _
    // Predicated region
    $region66: #{encoder_forward.1} parent=1 // pred_check
      _
    $region67: #{encoder_forward.1} parent=1 // pred_check_branch
      %91 = sbr.rel (0) target = $region69
    $region68: #{encoder_forward.1} parent=1 // pred_region
      %s93 = ssub.s32 8192, 8192
      %94 = vsyncadd [#allocation6], %s93
      %s95 = sshll.u32 [#allocation7], 4
      %s96 = int_to_ptr.vmem [resolvable:$true] %s95
      %101 = dma.hbm_to_vmem [thread:$0]  %s16, 8192, %s96, [#allocation6], 512, 512, 32
    $region69: #{encoder_forward.1} parent=1 // pred_fallthru
      _
    // Predicated region
    $region70: #{encoder_forward.1} parent=1 // pred_check
      _
    $region71: #{encoder_forward.1} parent=1 // pred_check_branch
      %103 = sbr.rel (0) target = $region73
    $region72: #{encoder_forward.1} parent=1 // pred_region
      %s105 = ssub.s32 8192, 8192
      %106 = vsyncadd [#allocation9], %s105
      %s107 = sshll.u32 [#allocation8], 4
      %s108 = int_to_ptr.vmem [resolvable:$true] %s107
      %113 = dma.hbm_to_vmem [thread:$0]  %s17, 8192, %s108, [#allocation9], 512, 512, 32
    $region73: #{encoder_forward.1} parent=1 // pred_fallthru
      _
    // Predicated region
    $region74: #{encoder_forward.1} parent=1 // pred_check
      _
    $region75: #{encoder_forward.1} parent=1 // pred_check_branch
      %115 = sbr.rel (0) target = $region77
    $region76: #{encoder_forward.1} parent=1 // pred_region
      _
    $region77: #{encoder_forward.1} parent=1 // pred_fallthru
      _
    // Predicated region
    $region78: #{encoder_forward.1} parent=1 // pred_check
      _
    $region79: #{encoder_forward.1} parent=1 // pred_check_branch
      %117 = sbr.rel (0) target = $region81
    $region80: #{encoder_forward.1} parent=1 // pred_region
      _
    $region81: #{encoder_forward.1} parent=1 // pred_fallthru
      _
    // Predicated region
    $region82: #{encoder_forward.1} parent=1 // pred_check
      _
    $region83: #{encoder_forward.1} parent=1 // pred_check_branch
      %119 = sbr.rel (0) target = $region85
    $region84: #{encoder_forward.1} parent=1 // pred_region
      _
    $region85: #{encoder_forward.1} parent=1 // pred_fallthru
      _
    // Predicated region
    $region86: #{encoder_forward.1} parent=1 // pred_check
      _
    $region87: #{encoder_forward.1} parent=1 // pred_check_branch
      %121 = sbr.rel (0) target = $region89
    $region88: #{encoder_forward.1} parent=1 // pred_region
      _
    $region89: #{encoder_forward.1} parent=1 // pred_fallthru
      _
    // Predicated region
    $region90: #{encoder_forward.1} parent=1 // pred_check
      _
    $region91: #{encoder_forward.1} parent=1 // pred_check_branch
      %123 = sbr.rel (0) target = $region93
    $region92: #{encoder_forward.1} parent=1 // pred_region
      %124 = dma.done [#allocation3], 8192
    $region93: #{encoder_forward.1} parent=1 // pred_fallthru
      _
    // Predicated region
    $region94: #{encoder_forward.1} parent=1 // pred_check
      _
    $region95: #{encoder_forward.1} parent=1 // pred_check_branch
      %126 = sbr.rel (0) target = $region97
    $region96: #{encoder_forward.1} parent=1 // pred_region
      %127 = dma.done [#allocation6], 8192
    $region97: #{encoder_forward.1} parent=1 // pred_fallthru
      _
    // Predicated region
    $region98: #{encoder_forward.1} parent=1 // pred_check
      _
    $region99: #{encoder_forward.1} parent=1 // pred_check_branch
      %129 = sbr.rel (0) target = $region101
    $region100: #{encoder_forward.1} parent=1 // pred_region
      %130 = dma.done [#allocation6], 8192
    $region101: #{encoder_forward.1} parent=1 // pred_fallthru
      _
    // Predicated region
    $region102: #{encoder_forward.1} parent=1 // pred_check
      _
    $region103: #{encoder_forward.1} parent=1 // pred_check_branch
      %132 = sbr.rel (0) target = $region105
    $region104: #{encoder_forward.1} parent=1 // pred_region
      %133 = dma.done [#allocation9], 8192
    $region105: #{encoder_forward.1} parent=1 // pred_fallthru
      _
    %v134 = vld [vmem:[%s0] sm:$0xff]
    %v135 = vld [vmem:[%s0 + $0x8] sm:$0xff]
    %v136 = vadd.f32 %v134, 0.0
    %v137 = vadd.f32 %v135, 0.0
    %139 = vset.pattern.permute.xlu0 0
    %140 = vperm.xlu0 %139, %v134
    %v141 = vpop.permute.xlu0 %140
    %144 = vset.pattern.permute.xlu0 0
    %145 = vperm.xlu0 %144, %v135
    %v146 = vpop.permute.xlu0 %145
    %150 = vset.pattern.permute.xlu0 0
    %151 = vperm.xlu0 %150, %v136
    %v152 = vpop.permute.xlu0 %151
    %153 = vset.pattern.permute.xlu0 0
    %154 = vperm.xlu0 %153, %v137
    %v155 = vpop.permute.xlu0 %154
    %v156 = vlaneseq
    %v157 = vand.u32 %v156, 127
    %v158 = vlaneseq
    %v159 = vshrl.u32 %v158, 7
    %v160 = vsub.s32 %v157, %v159
    %v161 = vrot.slane %v152, %v160
    %v162 = vlaneseq
    %v163 = vshrl.u32 %v162, 7
    %v164 = vsub.s32 %v157, %v163
    %v165 = vrot.slane %v155, %v164
    %vm166 = vcmask 1042434
    %v167 = vsel %vm166, %v161, %v161
    %vm168 = vcmask 1043459
    %v169 = vsel %vm168, %v161, %v167
    %vm170 = vcmask 1044484
    %v171 = vsel %vm170, %v161, %v169
    %vm172 = vcmask 1045509
    %v173 = vsel %vm172, %v161, %v171
    %vm174 = vcmask 1046534
    %v175 = vsel %vm174, %v161, %v173
    %vm176 = vcmask 1047559
    %v177 = vsel %vm176, %v161, %v175
    %v178 = vsel %vm166, %v165, %v165
    %v179 = vsel %vm168, %v165, %v178
    %v180 = vsel %vm170, %v165, %v179
    %v181 = vsel %vm172, %v165, %v180
    %v182 = vsel %vm174, %v165, %v181
    %v183 = vsel %vm176, %v165, %v182
    %v186 = vsub.f32 %v141, %v177
    %v187 = vsub.f32 %v146, %v183
    %v188 = vmul.f32 %v186, %v186
    %v189 = vmul.f32 %v187, %v187
    %v190 = vadd.f32 %v188, 0.0
    %v191 = vadd.f32 %v189, 0.0
    %192 = vset.pattern.permute.xlu0 1
    %193 = vperm.xlu0 %192, %v134
    %v194 = vpop.permute.xlu0 %193
    %196 = vset.pattern.permute.xlu0 1
    %197 = vperm.xlu0 %196, %v135
    %v198 = vpop.permute.xlu0 %197
    %200 = vset.pattern.permute.xlu0 1
    %201 = vperm.xlu0 %200, %v136
    %v202 = vpop.permute.xlu0 %201
    %203 = vset.pattern.permute.xlu0 1
    %204 = vperm.xlu0 %203, %v137
    %v205 = vpop.permute.xlu0 %204
    %v206 = vlaneseq
    %v207 = vshrl.u32 %v206, 7
    %v208 = vsub.s32 %v157, %v207
    %v209 = vrot.slane %v202, %v208
    %v210 = vlaneseq
    %v211 = vshrl.u32 %v210, 7
    %v212 = vsub.s32 %v157, %v211
    %v213 = vrot.slane %v205, %v212
    %v214 = vsel %vm166, %v209, %v209
    %v215 = vsel %vm168, %v209, %v214
    %v216 = vsel %vm170, %v209, %v215
    %v217 = vsel %vm172, %v209, %v216
    %v218 = vsel %vm174, %v209, %v217
    %v219 = vsel %vm176, %v209, %v218
    %v220 = vsel %vm166, %v213, %v213
    %v221 = vsel %vm168, %v213, %v220
    %v222 = vsel %vm170, %v213, %v221
    %v223 = vsel %vm172, %v213, %v222
    %v224 = vsel %vm174, %v213, %v223
    %v225 = vsel %vm176, %v213, %v224
    %v228 = vsub.f32 %v194, %v219
    %v229 = vsub.f32 %v198, %v225
    %v230 = vmul.f32 %v228, %v228
    %v231 = vmul.f32 %v229, %v229
    %v232 = vadd.f32 %v190, %v230
    %v233 = vadd.f32 %v191, %v231
    %v234 = vld [vmem:[%s3] sm:$0x3]
    %v235 = vld [vmem:[%s4] sm:$0x1]
    %v237 = vlaneseq
    %v238 = vshrl.u32 %v237, 7
    %v239 = vsub.s32 0, %v238
    %v240 = vrot.slane %v235, %v239
    %vm242 = vcmask 15360
    %v243 = vsel %vm242, %v134, 0
    %v245 = vsel %vm242, %v135, 0
    %vm247 = vcmask 1041408
    %v249 = vsel %vm247, %v234, 0
    %251 = vmatprep.subr.mxu0 0.0
    %252 = vmatpush1.msra.mxu0 %v249
    %253 = vmatprep.subr.mxu0 0.0
    %254 = vmatpush1.msra.mxu0 0.0
    %255 = vmatprep.subr.mxu0 0.0
    %256 = vmatpush1.msra.mxu0 0.0
    %257 = vmatprep.subr.mxu0 0.0
    %258 = vmatpush1.msra.mxu0 0.0
    %259 = vmatprep.subr.mxu0 0.0
    %260 = vmatpush1.msra.mxu0 0.0
    %261 = vmatprep.subr.mxu0 0.0
    %262 = vmatpush1.msra.mxu0 0.0
    %263 = vmatprep.subr.mxu0 0.0
    %264 = vmatpush1.msra.mxu0 0.0
    %265 = vmatprep.subr.mxu0 0.0
    %266 = vmatpush1.msra.mxu0 0.0
    %267 = vmatprep.subr.mxu0 0.0
    %268 = vmatpush1.msra.mxu0 0.0
    %269 = vmatprep.subr.mxu0 0.0
    %270 = vmatpush1.msra.mxu0 0.0
    %271 = vmatprep.subr.mxu0 0.0
    %272 = vmatpush1.msra.mxu0 0.0
    %273 = vmatprep.subr.mxu0 0.0
    %274 = vmatpush1.msra.mxu0 0.0
    %275 = vmatprep.subr.mxu0 0.0
    %276 = vmatpush1.msra.mxu0 0.0
    %277 = vmatprep.subr.mxu0 0.0
    %278 = vmatpush1.msra.mxu0 0.0
    %279 = vmatprep.subr.mxu0 0.0
    %280 = vmatpush1.msra.mxu0 0.0
    %281 = vmatprep.subr.mxu0 0.0
    %282 = vmatpush1.msra.mxu0 0.0
    %283 = vmatprep.subr.mxu0 0.0
    %284 = vmatpush1.msra.mxu0 0.0
    %285 = vmatprep.subr.mxu0 0.0
    %286 = vmatpush1.msra.mxu0 0.0
    %287 = vmatprep.subr.mxu0 0.0
    %288 = vmatpush1.msra.mxu0 0.0
    %289 = vmatprep.subr.mxu0 0.0
    %290 = vmatpush1.msra.mxu0 0.0
    %291 = vmatprep.subr.mxu0 0.0
    %292 = vmatpush1.msra.mxu0 0.0
    %293 = vmatprep.subr.mxu0 0.0
    %294 = vmatpush1.msra.mxu0 0.0
    %295 = vmatprep.subr.mxu0 0.0
    %296 = vmatpush1.msra.mxu0 0.0
    %297 = vmatprep.subr.mxu0 0.0
    %298 = vmatpush1.msra.mxu0 0.0
    %299 = vmatprep.subr.mxu0 0.0
    %300 = vmatpush1.msra.mxu0 0.0
    %301 = vmatprep.subr.mxu0 0.0
    %302 = vmatpush1.msra.mxu0 0.0
    %303 = vmatprep.subr.mxu0 0.0
    %304 = vmatpush1.msra.mxu0 0.0
    %305 = vmatprep.subr.mxu0 0.0
    %306 = vmatpush1.msra.mxu0 0.0
    %307 = vmatprep.subr.mxu0 0.0
    %308 = vmatpush1.msra.mxu0 0.0
    %309 = vmatprep.subr.mxu0 0.0
    %310 = vmatpush1.msra.mxu0 0.0
    %311 = vmatprep.subr.mxu0 0.0
    %312 = vmatpush1.msra.mxu0 0.0
    %313 = vmatprep.subr.mxu0 0.0
    %314 = vmatpush1.msra.mxu0 0.0
    %315 = vmatprep.mubr.f32.mxu0 0.0
    %316 = vmatmul.mubr.f32.gmra.mrb[0].mxu0 %v243
    %v317 = vpop.f32.mrb[0].mxu0
    %v318 = vadd.f32 %v240, %v317
    %v319 = vpop.f32.mrb[0].mxu0
    %320 = vmatprep.mubr.f32.mxu0 0.0
    %321 = vmatmul.mubr.f32.gmra.mrb[0].mxu0 %v245
    %v322 = vpop.f32.mrb[0].mxu0
    %v323 = vadd.f32 %v240, %v322
    %v324 = vpop.f32.mrb[0].mxu0
    %325 = vdwg.mxu0
    %v326 = vld [vmem:[%s5] sm:$0xff]
    %v327 = vld [vmem:[%s5 + $0x8] sm:$0xff]
    %v328 = vld [vmem:[%s5 + $0x10] sm:$0xff]
    %v329 = vld [vmem:[%s5 + $0x18] sm:$0xff]
    %v330 = vld [vmem:[%s6] sm:$0x1]
    %v332 = vlaneseq
    %v333 = vshrl.u32 %v332, 7
    %v334 = vsub.s32 0, %v333
    %v335 = vrot.slane %v330, %v334
    %vm337 = vcmask 261120
    %v339 = vsel %vm337, %v318, 0
    %v342 = vsel %vm337, %v323, 0
    %344 = vmatprep.subr.mxu0 0.0
    %345 = vmatpush1.msra.mxu0 %v326
    %346 = vmatprep.subr.mxu0 0.0
    %347 = vmatpush1.msra.mxu0 %v327
    %348 = vmatprep.subr.mxu0 0.0
    %349 = vmatpush1.msra.mxu0 %v328
    %350 = vmatprep.subr.mxu0 0.0
    %351 = vmatpush1.msra.mxu0 %v329
    %352 = vmatprep.subr.mxu0 0.0
    %353 = vmatpush1.msra.mxu0 0.0
    %354 = vmatprep.subr.mxu0 0.0
    %355 = vmatpush1.msra.mxu0 0.0
    %356 = vmatprep.subr.mxu0 0.0
    %357 = vmatpush1.msra.mxu0 0.0
    %358 = vmatprep.subr.mxu0 0.0
    %359 = vmatpush1.msra.mxu0 0.0
    %360 = vmatprep.subr.mxu0 0.0
    %361 = vmatpush1.msra.mxu0 0.0
    %362 = vmatprep.subr.mxu0 0.0
    %363 = vmatpush1.msra.mxu0 0.0
    %364 = vmatprep.subr.mxu0 0.0
    %365 = vmatpush1.msra.mxu0 0.0
    %366 = vmatprep.subr.mxu0 0.0
    %367 = vmatpush1.msra.mxu0 0.0
    %368 = vmatprep.subr.mxu0 0.0
    %369 = vmatpush1.msra.mxu0 0.0
    %370 = vmatprep.subr.mxu0 0.0
    %371 = vmatpush1.msra.mxu0 0.0
    %372 = vmatprep.subr.mxu0 0.0
    %373 = vmatpush1.msra.mxu0 0.0
    %374 = vmatprep.subr.mxu0 0.0
    %375 = vmatpush1.msra.mxu0 0.0
    %376 = vmatprep.subr.mxu0 0.0
    %377 = vmatpush1.msra.mxu0 0.0
    %378 = vmatprep.subr.mxu0 0.0
    %379 = vmatpush1.msra.mxu0 0.0
    %380 = vmatprep.subr.mxu0 0.0
    %381 = vmatpush1.msra.mxu0 0.0
    %382 = vmatprep.subr.mxu0 0.0
    %383 = vmatpush1.msra.mxu0 0.0
    %384 = vmatprep.subr.mxu0 0.0
    %385 = vmatpush1.msra.mxu0 0.0
    %386 = vmatprep.subr.mxu0 0.0
    %387 = vmatpush1.msra.mxu0 0.0
    %388 = vmatprep.subr.mxu0 0.0
    %389 = vmatpush1.msra.mxu0 0.0
    %390 = vmatprep.subr.mxu0 0.0
    %391 = vmatpush1.msra.mxu0 0.0
    %392 = vmatprep.subr.mxu0 0.0
    %393 = vmatpush1.msra.mxu0 0.0
    %394 = vmatprep.subr.mxu0 0.0
    %395 = vmatpush1.msra.mxu0 0.0
    %396 = vmatprep.subr.mxu0 0.0
    %397 = vmatpush1.msra.mxu0 0.0
    %398 = vmatprep.subr.mxu0 0.0
    %399 = vmatpush1.msra.mxu0 0.0
    %400 = vmatprep.subr.mxu0 0.0
    %401 = vmatpush1.msra.mxu0 0.0
    %402 = vmatprep.subr.mxu0 0.0
    %403 = vmatpush1.msra.mxu0 0.0
    %404 = vmatprep.subr.mxu0 0.0
    %405 = vmatpush1.msra.mxu0 0.0
    %406 = vmatprep.subr.mxu0 0.0
    %407 = vmatpush1.msra.mxu0 0.0
    %408 = vmatprep.mubr.f32.mxu0 0.0
    %409 = vmatmul.mubr.f32.gmra.mrb[0].mxu0 %v339
    %v410 = vpop.f32.mrb[0].mxu0
    %v411 = vadd.f32 %v335, %v410
    %v412 = vpop.f32.mrb[0].mxu0
    %413 = vmatprep.mubr.f32.mxu0 0.0
    %414 = vmatmul.mubr.f32.gmra.mrb[0].mxu0 %v342
    %v415 = vpop.f32.mrb[0].mxu0
    %v416 = vadd.f32 %v335, %v415
    %v417 = vpop.f32.mrb[0].mxu0
    %418 = vdwg.mxu0
    %vm419 = vcmask 64512
    %v421 = vsel %vm419, %v232, 0
    %423 = vmatprep.subr.mxu0 0.0
    %424 = vmatpush1.msra.mxu0 %v411
    %425 = vmatprep.subr.mxu0 0.0
    %426 = vmatpush1.msra.mxu0 0.0
    %427 = vmatprep.subr.mxu0 0.0
    %428 = vmatpush1.msra.mxu0 0.0
    %429 = vmatprep.subr.mxu0 0.0
    %430 = vmatpush1.msra.mxu0 0.0
    %431 = vmatprep.subr.mxu0 0.0
    %432 = vmatpush1.msra.mxu0 0.0
    %433 = vmatprep.subr.mxu0 0.0
    %434 = vmatpush1.msra.mxu0 0.0
    %435 = vmatprep.subr.mxu0 0.0
    %436 = vmatpush1.msra.mxu0 0.0
    %437 = vmatprep.subr.mxu0 0.0
    %438 = vmatpush1.msra.mxu0 0.0
    %439 = vmatprep.subr.mxu0 0.0
    %440 = vmatpush1.msra.mxu0 0.0
    %441 = vmatprep.subr.mxu0 0.0
    %442 = vmatpush1.msra.mxu0 0.0
    %443 = vmatprep.subr.mxu0 0.0
    %444 = vmatpush1.msra.mxu0 0.0
    %445 = vmatprep.subr.mxu0 0.0
    %446 = vmatpush1.msra.mxu0 0.0
    %447 = vmatprep.subr.mxu0 0.0
    %448 = vmatpush1.msra.mxu0 0.0
    %449 = vmatprep.subr.mxu0 0.0
    %450 = vmatpush1.msra.mxu0 0.0
    %451 = vmatprep.subr.mxu0 0.0
    %452 = vmatpush1.msra.mxu0 0.0
    %453 = vmatprep.subr.mxu0 0.0
    %454 = vmatpush1.msra.mxu0 0.0
    %455 = vmatprep.subr.mxu0 0.0
    %456 = vmatpush1.msra.mxu0 0.0
    %457 = vmatprep.subr.mxu0 0.0
    %458 = vmatpush1.msra.mxu0 0.0
    %459 = vmatprep.subr.mxu0 0.0
    %460 = vmatpush1.msra.mxu0 0.0
    %461 = vmatprep.subr.mxu0 0.0
    %462 = vmatpush1.msra.mxu0 0.0
    %463 = vmatprep.subr.mxu0 0.0
    %464 = vmatpush1.msra.mxu0 0.0
    %465 = vmatprep.subr.mxu0 0.0
    %466 = vmatpush1.msra.mxu0 0.0
    %467 = vmatprep.subr.mxu0 0.0
    %468 = vmatpush1.msra.mxu0 0.0
    %469 = vmatprep.subr.mxu0 0.0
    %470 = vmatpush1.msra.mxu0 0.0
    %471 = vmatprep.subr.mxu0 0.0
    %472 = vmatpush1.msra.mxu0 0.0
    %473 = vmatprep.subr.mxu0 0.0
    %474 = vmatpush1.msra.mxu0 0.0
    %475 = vmatprep.subr.mxu0 0.0
    %476 = vmatpush1.msra.mxu0 0.0
    %477 = vmatprep.subr.mxu0 0.0
    %478 = vmatpush1.msra.mxu0 0.0
    %479 = vmatprep.subr.mxu0 0.0
    %480 = vmatpush1.msra.mxu0 0.0
    %481 = vmatprep.subr.mxu0 0.0
    %482 = vmatpush1.msra.mxu0 0.0
    %483 = vmatprep.subr.mxu0 0.0
    %484 = vmatpush1.msra.mxu0 0.0
    %485 = vmatprep.subr.mxu0 0.0
    %486 = vmatpush1.msra.mxu0 0.0
    %487 = vmatprep.mubr.f32.mxu0 0.0
    %488 = vmatmul.mubr.f32.gmra.mrb[0].mxu0 %v421
    %v489 = vpop.f32.mrb[0].mxu0
    %v490 = vadd.f32 0.0, %v489
    %v491 = vpop.f32.mrb[0].mxu0
    %492 = vdwg.mxu0
    %v494 = vsel %vm419, %v233, 0
    %496 = vmatprep.subr.mxu0 0.0
    %497 = vmatpush1.msra.mxu0 %v416
    %498 = vmatprep.subr.mxu0 0.0
    %499 = vmatpush1.msra.mxu0 0.0
    %500 = vmatprep.subr.mxu0 0.0
    %501 = vmatpush1.msra.mxu0 0.0
    %502 = vmatprep.subr.mxu0 0.0
    %503 = vmatpush1.msra.mxu0 0.0
    %504 = vmatprep.subr.mxu0 0.0
    %505 = vmatpush1.msra.mxu0 0.0
    %506 = vmatprep.subr.mxu0 0.0
    %507 = vmatpush1.msra.mxu0 0.0
    %508 = vmatprep.subr.mxu0 0.0
    %509 = vmatpush1.msra.mxu0 0.0
    %510 = vmatprep.subr.mxu0 0.0
    %511 = vmatpush1.msra.mxu0 0.0
    %512 = vmatprep.subr.mxu0 0.0
    %513 = vmatpush1.msra.mxu0 0.0
    %514 = vmatprep.subr.mxu0 0.0
    %515 = vmatpush1.msra.mxu0 0.0
    %516 = vmatprep.subr.mxu0 0.0
    %517 = vmatpush1.msra.mxu0 0.0
    %518 = vmatprep.subr.mxu0 0.0
    %519 = vmatpush1.msra.mxu0 0.0
    %520 = vmatprep.subr.mxu0 0.0
    %521 = vmatpush1.msra.mxu0 0.0
    %522 = vmatprep.subr.mxu0 0.0
    %523 = vmatpush1.msra.mxu0 0.0
    %524 = vmatprep.subr.mxu0 0.0
    %525 = vmatpush1.msra.mxu0 0.0
    %526 = vmatprep.subr.mxu0 0.0
    %527 = vmatpush1.msra.mxu0 0.0
    %528 = vmatprep.subr.mxu0 0.0
    %529 = vmatpush1.msra.mxu0 0.0
    %530 = vmatprep.subr.mxu0 0.0
    %531 = vmatpush1.msra.mxu0 0.0
    %532 = vmatprep.subr.mxu0 0.0
    %533 = vmatpush1.msra.mxu0 0.0
    %534 = vmatprep.subr.mxu0 0.0
    %535 = vmatpush1.msra.mxu0 0.0
    %536 = vmatprep.subr.mxu0 0.0
    %537 = vmatpush1.msra.mxu0 0.0
    %538 = vmatprep.subr.mxu0 0.0
    %539 = vmatpush1.msra.mxu0 0.0
    %540 = vmatprep.subr.mxu0 0.0
    %541 = vmatpush1.msra.mxu0 0.0
    %542 = vmatprep.subr.mxu0 0.0
    %543 = vmatpush1.msra.mxu0 0.0
    %544 = vmatprep.subr.mxu0 0.0
    %545 = vmatpush1.msra.mxu0 0.0
    %546 = vmatprep.subr.mxu0 0.0
    %547 = vmatpush1.msra.mxu0 0.0
    %548 = vmatprep.subr.mxu0 0.0
    %549 = vmatpush1.msra.mxu0 0.0
    %550 = vmatprep.subr.mxu0 0.0
    %551 = vmatpush1.msra.mxu0 0.0
    %552 = vmatprep.subr.mxu0 0.0
    %553 = vmatpush1.msra.mxu0 0.0
    %554 = vmatprep.subr.mxu0 0.0
    %555 = vmatpush1.msra.mxu0 0.0
    %556 = vmatprep.subr.mxu0 0.0
    %557 = vmatpush1.msra.mxu0 0.0
    %558 = vmatprep.subr.mxu0 0.0
    %559 = vmatpush1.msra.mxu0 0.0
    %560 = vmatprep.mubr.f32.mxu0 0.0
    %561 = vmatmul.mubr.f32.gmra.mrb[0].mxu0 %v494
    %v562 = vpop.f32.mrb[0].mxu0
    %v563 = vadd.f32 0.0, %v562
    %v564 = vpop.f32.mrb[0].mxu0
    %565 = vdwg.mxu0
    %v566 = vmax.f32 %v490, 0.0
    %v567 = vmax.f32 %v563, 0.0
    %v568 = vadd.f32 %v318, %v566
    %v569 = vadd.f32 %v323, %v567
    %v570 = vld [vmem:[%s7] sm:$0xff]
    %v571 = vld [vmem:[%s7 + $0x8] sm:$0xff]
    %v572 = vld [vmem:[%s7 + $0x10] sm:$0xff]
    %v573 = vld [vmem:[%s7 + $0x18] sm:$0xff]
    %v574 = vld [vmem:[%s8] sm:$0x1]
    %v576 = vlaneseq
    %v577 = vshrl.u32 %v576, 7
    %v578 = vsub.s32 0, %v577
    %v579 = vrot.slane %v574, %v578
    %v582 = vsel %vm337, %v568, 0
    %v585 = vsel %vm337, %v569, 0
    %587 = vmatprep.subr.mxu0 0.0
    %588 = vmatpush1.msra.mxu0 %v570
    %589 = vmatprep.subr.mxu0 0.0
    %590 = vmatpush1.msra.mxu0 %v571
    %591 = vmatprep.subr.mxu0 0.0
    %592 = vmatpush1.msra.mxu0 %v572
    %593 = vmatprep.subr.mxu0 0.0
    %594 = vmatpush1.msra.mxu0 %v573
    %595 = vmatprep.subr.mxu0 0.0
    %596 = vmatpush1.msra.mxu0 0.0
    %597 = vmatprep.subr.mxu0 0.0
    %598 = vmatpush1.msra.mxu0 0.0
    %599 = vmatprep.subr.mxu0 0.0
    %600 = vmatpush1.msra.mxu0 0.0
    %601 = vmatprep.subr.mxu0 0.0
    %602 = vmatpush1.msra.mxu0 0.0
    %603 = vmatprep.subr.mxu0 0.0
    %604 = vmatpush1.msra.mxu0 0.0
    %605 = vmatprep.subr.mxu0 0.0
    %606 = vmatpush1.msra.mxu0 0.0
    %607 = vmatprep.subr.mxu0 0.0
    %608 = vmatpush1.msra.mxu0 0.0
    %609 = vmatprep.subr.mxu0 0.0
    %610 = vmatpush1.msra.mxu0 0.0
    %611 = vmatprep.subr.mxu0 0.0
    %612 = vmatpush1.msra.mxu0 0.0
    %613 = vmatprep.subr.mxu0 0.0
    %614 = vmatpush1.msra.mxu0 0.0
    %615 = vmatprep.subr.mxu0 0.0
    %616 = vmatpush1.msra.mxu0 0.0
    %617 = vmatprep.subr.mxu0 0.0
    %618 = vmatpush1.msra.mxu0 0.0
    %619 = vmatprep.subr.mxu0 0.0
    %620 = vmatpush1.msra.mxu0 0.0
    %621 = vmatprep.subr.mxu0 0.0
    %622 = vmatpush1.msra.mxu0 0.0
    %623 = vmatprep.subr.mxu0 0.0
    %624 = vmatpush1.msra.mxu0 0.0
    %625 = vmatprep.subr.mxu0 0.0
    %626 = vmatpush1.msra.mxu0 0.0
    %627 = vmatprep.subr.mxu0 0.0
    %628 = vmatpush1.msra.mxu0 0.0
    %629 = vmatprep.subr.mxu0 0.0
    %630 = vmatpush1.msra.mxu0 0.0
    %631 = vmatprep.subr.mxu0 0.0
    %632 = vmatpush1.msra.mxu0 0.0
    %633 = vmatprep.subr.mxu0 0.0
    %634 = vmatpush1.msra.mxu0 0.0
    %635 = vmatprep.subr.mxu0 0.0
    %636 = vmatpush1.msra.mxu0 0.0
    %637 = vmatprep.subr.mxu0 0.0
    %638 = vmatpush1.msra.mxu0 0.0
    %639 = vmatprep.subr.mxu0 0.0
    %640 = vmatpush1.msra.mxu0 0.0
    %641 = vmatprep.subr.mxu0 0.0
    %642 = vmatpush1.msra.mxu0 0.0
    %643 = vmatprep.subr.mxu0 0.0
    %644 = vmatpush1.msra.mxu0 0.0
    %645 = vmatprep.subr.mxu0 0.0
    %646 = vmatpush1.msra.mxu0 0.0
    %647 = vmatprep.subr.mxu0 0.0
    %648 = vmatpush1.msra.mxu0 0.0
    %649 = vmatprep.subr.mxu0 0.0
    %650 = vmatpush1.msra.mxu0 0.0
    %651 = vmatprep.mubr.f32.mxu0 0.0
    %652 = vmatmul.mubr.f32.gmra.mrb[0].mxu0 %v582
    %v653 = vpop.f32.mrb[0].mxu0
    %v654 = vadd.f32 %v579, %v653
    %v655 = vpop.f32.mrb[0].mxu0
    %656 = vmatprep.mubr.f32.mxu0 0.0
    %657 = vmatmul.mubr.f32.gmra.mrb[0].mxu0 %v585
    %v658 = vpop.f32.mrb[0].mxu0
    %v659 = vadd.f32 %v579, %v658
    %v660 = vpop.f32.mrb[0].mxu0
    %661 = vdwg.mxu0
    %662 = vmatprep.subr.mxu0 0.0
    %663 = vmatpush1.msra.mxu0 %v654
    %664 = vmatprep.subr.mxu0 0.0
    %665 = vmatpush1.msra.mxu0 0.0
    %666 = vmatprep.subr.mxu0 0.0
    %667 = vmatpush1.msra.mxu0 0.0
    %668 = vmatprep.subr.mxu0 0.0
    %669 = vmatpush1.msra.mxu0 0.0
    %670 = vmatprep.subr.mxu0 0.0
    %671 = vmatpush1.msra.mxu0 0.0
    %672 = vmatprep.subr.mxu0 0.0
    %673 = vmatpush1.msra.mxu0 0.0
    %674 = vmatprep.subr.mxu0 0.0
    %675 = vmatpush1.msra.mxu0 0.0
    %676 = vmatprep.subr.mxu0 0.0
    %677 = vmatpush1.msra.mxu0 0.0
    %678 = vmatprep.subr.mxu0 0.0
    %679 = vmatpush1.msra.mxu0 0.0
    %680 = vmatprep.subr.mxu0 0.0
    %681 = vmatpush1.msra.mxu0 0.0
    %682 = vmatprep.subr.mxu0 0.0
    %683 = vmatpush1.msra.mxu0 0.0
    %684 = vmatprep.subr.mxu0 0.0
    %685 = vmatpush1.msra.mxu0 0.0
    %686 = vmatprep.subr.mxu0 0.0
    %687 = vmatpush1.msra.mxu0 0.0
    %688 = vmatprep.subr.mxu0 0.0
    %689 = vmatpush1.msra.mxu0 0.0
    %690 = vmatprep.subr.mxu0 0.0
    %691 = vmatpush1.msra.mxu0 0.0
    %692 = vmatprep.subr.mxu0 0.0
    %693 = vmatpush1.msra.mxu0 0.0
    %694 = vmatprep.subr.mxu0 0.0
    %695 = vmatpush1.msra.mxu0 0.0
    %696 = vmatprep.subr.mxu0 0.0
    %697 = vmatpush1.msra.mxu0 0.0
    %698 = vmatprep.subr.mxu0 0.0
    %699 = vmatpush1.msra.mxu0 0.0
    %700 = vmatprep.subr.mxu0 0.0
    %701 = vmatpush1.msra.mxu0 0.0
    %702 = vmatprep.subr.mxu0 0.0
    %703 = vmatpush1.msra.mxu0 0.0
    %704 = vmatprep.subr.mxu0 0.0
    %705 = vmatpush1.msra.mxu0 0.0
    %706 = vmatprep.subr.mxu0 0.0
    %707 = vmatpush1.msra.mxu0 0.0
    %708 = vmatprep.subr.mxu0 0.0
    %709 = vmatpush1.msra.mxu0 0.0
    %710 = vmatprep.subr.mxu0 0.0
    %711 = vmatpush1.msra.mxu0 0.0
    %712 = vmatprep.subr.mxu0 0.0
    %713 = vmatpush1.msra.mxu0 0.0
    %714 = vmatprep.subr.mxu0 0.0
    %715 = vmatpush1.msra.mxu0 0.0
    %716 = vmatprep.subr.mxu0 0.0
    %717 = vmatpush1.msra.mxu0 0.0
    %718 = vmatprep.subr.mxu0 0.0
    %719 = vmatpush1.msra.mxu0 0.0
    %720 = vmatprep.subr.mxu0 0.0
    %721 = vmatpush1.msra.mxu0 0.0
    %722 = vmatprep.subr.mxu0 0.0
    %723 = vmatpush1.msra.mxu0 0.0
    %724 = vmatprep.subr.mxu0 0.0
    %725 = vmatpush1.msra.mxu0 0.0
    %726 = vmatprep.mubr.f32.mxu0 0.0
    %727 = vmatmul.mubr.f32.gmra.mrb[0].mxu0 %v421
    %v728 = vpop.f32.mrb[0].mxu0
    %v729 = vadd.f32 0.0, %v728
    %v730 = vpop.f32.mrb[0].mxu0
    %731 = vdwg.mxu0
    %732 = vmatprep.subr.mxu0 0.0
    %733 = vmatpush1.msra.mxu0 %v659
    %734 = vmatprep.subr.mxu0 0.0
    %735 = vmatpush1.msra.mxu0 0.0
    %736 = vmatprep.subr.mxu0 0.0
    %737 = vmatpush1.msra.mxu0 0.0
    %738 = vmatprep.subr.mxu0 0.0
    %739 = vmatpush1.msra.mxu0 0.0
    %740 = vmatprep.subr.mxu0 0.0
    %741 = vmatpush1.msra.mxu0 0.0
    %742 = vmatprep.subr.mxu0 0.0
    %743 = vmatpush1.msra.mxu0 0.0
    %744 = vmatprep.subr.mxu0 0.0
    %745 = vmatpush1.msra.mxu0 0.0
    %746 = vmatprep.subr.mxu0 0.0
    %747 = vmatpush1.msra.mxu0 0.0
    %748 = vmatprep.subr.mxu0 0.0
    %749 = vmatpush1.msra.mxu0 0.0
    %750 = vmatprep.subr.mxu0 0.0
    %751 = vmatpush1.msra.mxu0 0.0
    %752 = vmatprep.subr.mxu0 0.0
    %753 = vmatpush1.msra.mxu0 0.0
    %754 = vmatprep.subr.mxu0 0.0
    %755 = vmatpush1.msra.mxu0 0.0
    %756 = vmatprep.subr.mxu0 0.0
    %757 = vmatpush1.msra.mxu0 0.0
    %758 = vmatprep.subr.mxu0 0.0
    %759 = vmatpush1.msra.mxu0 0.0
    %760 = vmatprep.subr.mxu0 0.0
    %761 = vmatpush1.msra.mxu0 0.0
    %762 = vmatprep.subr.mxu0 0.0
    %763 = vmatpush1.msra.mxu0 0.0
    %764 = vmatprep.subr.mxu0 0.0
    %765 = vmatpush1.msra.mxu0 0.0
    %766 = vmatprep.subr.mxu0 0.0
    %767 = vmatpush1.msra.mxu0 0.0
    %768 = vmatprep.subr.mxu0 0.0
    %769 = vmatpush1.msra.mxu0 0.0
    %770 = vmatprep.subr.mxu0 0.0
    %771 = vmatpush1.msra.mxu0 0.0
    %772 = vmatprep.subr.mxu0 0.0
    %773 = vmatpush1.msra.mxu0 0.0
    %774 = vmatprep.subr.mxu0 0.0
    %775 = vmatpush1.msra.mxu0 0.0
    %776 = vmatprep.subr.mxu0 0.0
    %777 = vmatpush1.msra.mxu0 0.0
    %778 = vmatprep.subr.mxu0 0.0
    %779 = vmatpush1.msra.mxu0 0.0
    %780 = vmatprep.subr.mxu0 0.0
    %781 = vmatpush1.msra.mxu0 0.0
    %782 = vmatprep.subr.mxu0 0.0
    %783 = vmatpush1.msra.mxu0 0.0
    %784 = vmatprep.subr.mxu0 0.0
    %785 = vmatpush1.msra.mxu0 0.0
    %786 = vmatprep.subr.mxu0 0.0
    %787 = vmatpush1.msra.mxu0 0.0
    %788 = vmatprep.subr.mxu0 0.0
    %789 = vmatpush1.msra.mxu0 0.0
    %790 = vmatprep.subr.mxu0 0.0
    %791 = vmatpush1.msra.mxu0 0.0
    %792 = vmatprep.subr.mxu0 0.0
    %793 = vmatpush1.msra.mxu0 0.0
    %794 = vmatprep.subr.mxu0 0.0
    %795 = vmatpush1.msra.mxu0 0.0
    %796 = vmatprep.mubr.f32.mxu0 0.0
    %797 = vmatmul.mubr.f32.gmra.mrb[0].mxu0 %v494
    %v798 = vpop.f32.mrb[0].mxu0
    %v799 = vadd.f32 0.0, %v798
    %v800 = vpop.f32.mrb[0].mxu0
    %801 = vdwg.mxu0
    %v802 = vmax.f32 %v729, 0.0
    %v803 = vmax.f32 %v799, 0.0
    %v804 = vadd.f32 %v568, %v802
    %v805 = vadd.f32 %v569, %v803
    %v806 = vld [vmem:[%s9] sm:$0xff]
    %v807 = vld [vmem:[%s9 + $0x8] sm:$0xff]
    %v808 = vld [vmem:[%s9 + $0x10] sm:$0xff]
    %v809 = vld [vmem:[%s9 + $0x18] sm:$0xff]
    %v810 = vld [vmem:[%s10] sm:$0x1]
    %v812 = vlaneseq
    %v813 = vshrl.u32 %v812, 7
    %v814 = vsub.s32 0, %v813
    %v815 = vrot.slane %v810, %v814
    %v818 = vsel %vm337, %v804, 0
    %v821 = vsel %vm337, %v805, 0
    %823 = vmatprep.subr.mxu0 0.0
    %824 = vmatpush1.msra.mxu0 %v806
    %825 = vmatprep.subr.mxu0 0.0
    %826 = vmatpush1.msra.mxu0 %v807
    %827 = vmatprep.subr.mxu0 0.0
    %828 = vmatpush1.msra.mxu0 %v808
    %829 = vmatprep.subr.mxu0 0.0
    %830 = vmatpush1.msra.mxu0 %v809
    %831 = vmatprep.subr.mxu0 0.0
    %832 = vmatpush1.msra.mxu0 0.0
    %833 = vmatprep.subr.mxu0 0.0
    %834 = vmatpush1.msra.mxu0 0.0
    %835 = vmatprep.subr.mxu0 0.0
    %836 = vmatpush1.msra.mxu0 0.0
    %837 = vmatprep.subr.mxu0 0.0
    %838 = vmatpush1.msra.mxu0 0.0
    %839 = vmatprep.subr.mxu0 0.0
    %840 = vmatpush1.msra.mxu0 0.0
    %841 = vmatprep.subr.mxu0 0.0
    %842 = vmatpush1.msra.mxu0 0.0
    %843 = vmatprep.subr.mxu0 0.0
    %844 = vmatpush1.msra.mxu0 0.0
    %845 = vmatprep.subr.mxu0 0.0
    %846 = vmatpush1.msra.mxu0 0.0
    %847 = vmatprep.subr.mxu0 0.0
    %848 = vmatpush1.msra.mxu0 0.0
    %849 = vmatprep.subr.mxu0 0.0
    %850 = vmatpush1.msra.mxu0 0.0
    %851 = vmatprep.subr.mxu0 0.0
    %852 = vmatpush1.msra.mxu0 0.0
    %853 = vmatprep.subr.mxu0 0.0
    %854 = vmatpush1.msra.mxu0 0.0
    %855 = vmatprep.subr.mxu0 0.0
    %856 = vmatpush1.msra.mxu0 0.0
    %857 = vmatprep.subr.mxu0 0.0
    %858 = vmatpush1.msra.mxu0 0.0
    %859 = vmatprep.subr.mxu0 0.0
    %860 = vmatpush1.msra.mxu0 0.0
    %861 = vmatprep.subr.mxu0 0.0
    %862 = vmatpush1.msra.mxu0 0.0
    %863 = vmatprep.subr.mxu0 0.0
    %864 = vmatpush1.msra.mxu0 0.0
    %865 = vmatprep.subr.mxu0 0.0
    %866 = vmatpush1.msra.mxu0 0.0
    %867 = vmatprep.subr.mxu0 0.0
    %868 = vmatpush1.msra.mxu0 0.0
    %869 = vmatprep.subr.mxu0 0.0
    %870 = vmatpush1.msra.mxu0 0.0
    %871 = vmatprep.subr.mxu0 0.0
    %872 = vmatpush1.msra.mxu0 0.0
    %873 = vmatprep.subr.mxu0 0.0
    %874 = vmatpush1.msra.mxu0 0.0
    %875 = vmatprep.subr.mxu0 0.0
    %876 = vmatpush1.msra.mxu0 0.0
    %877 = vmatprep.subr.mxu0 0.0
    %878 = vmatpush1.msra.mxu0 0.0
    %879 = vmatprep.subr.mxu0 0.0
    %880 = vmatpush1.msra.mxu0 0.0
    %881 = vmatprep.subr.mxu0 0.0
    %882 = vmatpush1.msra.mxu0 0.0
    %883 = vmatprep.subr.mxu0 0.0
    %884 = vmatpush1.msra.mxu0 0.0
    %885 = vmatprep.subr.mxu0 0.0
    %886 = vmatpush1.msra.mxu0 0.0
    %887 = vmatprep.mubr.f32.mxu0 0.0
    %888 = vmatmul.mubr.f32.gmra.mrb[0].mxu0 %v818
    %v889 = vpop.f32.mrb[0].mxu0
    %v890 = vadd.f32 %v815, %v889
    %v891 = vpop.f32.mrb[0].mxu0
    %892 = vmatprep.mubr.f32.mxu0 0.0
    %893 = vmatmul.mubr.f32.gmra.mrb[0].mxu0 %v821
    %v894 = vpop.f32.mrb[0].mxu0
    %v895 = vadd.f32 %v815, %v894
    %v896 = vpop.f32.mrb[0].mxu0
    %897 = vdwg.mxu0
    %898 = vmatprep.subr.mxu0 0.0
    %899 = vmatpush1.msra.mxu0 %v890
    %900 = vmatprep.subr.mxu0 0.0
    %901 = vmatpush1.msra.mxu0 0.0
    %902 = vmatprep.subr.mxu0 0.0
    %903 = vmatpush1.msra.mxu0 0.0
    %904 = vmatprep.subr.mxu0 0.0
    %905 = vmatpush1.msra.mxu0 0.0
    %906 = vmatprep.subr.mxu0 0.0
    %907 = vmatpush1.msra.mxu0 0.0
    %908 = vmatprep.subr.mxu0 0.0
    %909 = vmatpush1.msra.mxu0 0.0
    %910 = vmatprep.subr.mxu0 0.0
    %911 = vmatpush1.msra.mxu0 0.0
    %912 = vmatprep.subr.mxu0 0.0
    %913 = vmatpush1.msra.mxu0 0.0
    %914 = vmatprep.subr.mxu0 0.0
    %915 = vmatpush1.msra.mxu0 0.0
    %916 = vmatprep.subr.mxu0 0.0
    %917 = vmatpush1.msra.mxu0 0.0
    %918 = vmatprep.subr.mxu0 0.0
    %919 = vmatpush1.msra.mxu0 0.0
    %920 = vmatprep.subr.mxu0 0.0
    %921 = vmatpush1.msra.mxu0 0.0
    %922 = vmatprep.subr.mxu0 0.0
    %923 = vmatpush1.msra.mxu0 0.0
    %924 = vmatprep.subr.mxu0 0.0
    %925 = vmatpush1.msra.mxu0 0.0
    %926 = vmatprep.subr.mxu0 0.0
    %927 = vmatpush1.msra.mxu0 0.0
    %928 = vmatprep.subr.mxu0 0.0
    %929 = vmatpush1.msra.mxu0 0.0
    %930 = vmatprep.subr.mxu0 0.0
    %931 = vmatpush1.msra.mxu0 0.0
    %932 = vmatprep.subr.mxu0 0.0
    %933 = vmatpush1.msra.mxu0 0.0
    %934 = vmatprep.subr.mxu0 0.0
    %935 = vmatpush1.msra.mxu0 0.0
    %936 = vmatprep.subr.mxu0 0.0
    %937 = vmatpush1.msra.mxu0 0.0
    %938 = vmatprep.subr.mxu0 0.0
    %939 = vmatpush1.msra.mxu0 0.0
    %940 = vmatprep.subr.mxu0 0.0
    %941 = vmatpush1.msra.mxu0 0.0
    %942 = vmatprep.subr.mxu0 0.0
    %943 = vmatpush1.msra.mxu0 0.0
    %944 = vmatprep.subr.mxu0 0.0
    %945 = vmatpush1.msra.mxu0 0.0
    %946 = vmatprep.subr.mxu0 0.0
    %947 = vmatpush1.msra.mxu0 0.0
    %948 = vmatprep.subr.mxu0 0.0
    %949 = vmatpush1.msra.mxu0 0.0
    %950 = vmatprep.subr.mxu0 0.0
    %951 = vmatpush1.msra.mxu0 0.0
    %952 = vmatprep.subr.mxu0 0.0
    %953 = vmatpush1.msra.mxu0 0.0
    %954 = vmatprep.subr.mxu0 0.0
    %955 = vmatpush1.msra.mxu0 0.0
    %956 = vmatprep.subr.mxu0 0.0
    %957 = vmatpush1.msra.mxu0 0.0
    %958 = vmatprep.subr.mxu0 0.0
    %959 = vmatpush1.msra.mxu0 0.0
    %960 = vmatprep.subr.mxu0 0.0
    %961 = vmatpush1.msra.mxu0 0.0
    %962 = vmatprep.mubr.f32.mxu0 0.0
    %963 = vmatmul.mubr.f32.gmra.mrb[0].mxu0 %v421
    %v964 = vpop.f32.mrb[0].mxu0
    %v965 = vadd.f32 0.0, %v964
    %v966 = vpop.f32.mrb[0].mxu0
    %967 = vdwg.mxu0
    %968 = vmatprep.subr.mxu0 0.0
    %969 = vmatpush1.msra.mxu0 %v895
    %970 = vmatprep.subr.mxu0 0.0
    %971 = vmatpush1.msra.mxu0 0.0
    %972 = vmatprep.subr.mxu0 0.0
    %973 = vmatpush1.msra.mxu0 0.0
    %974 = vmatprep.subr.mxu0 0.0
    %975 = vmatpush1.msra.mxu0 0.0
    %976 = vmatprep.subr.mxu0 0.0
    %977 = vmatpush1.msra.mxu0 0.0
    %978 = vmatprep.subr.mxu0 0.0
    %979 = vmatpush1.msra.mxu0 0.0
    %980 = vmatprep.subr.mxu0 0.0
    %981 = vmatpush1.msra.mxu0 0.0
    %982 = vmatprep.subr.mxu0 0.0
    %983 = vmatpush1.msra.mxu0 0.0
    %984 = vmatprep.subr.mxu0 0.0
    %985 = vmatpush1.msra.mxu0 0.0
    %986 = vmatprep.subr.mxu0 0.0
    %987 = vmatpush1.msra.mxu0 0.0
    %988 = vmatprep.subr.mxu0 0.0
    %989 = vmatpush1.msra.mxu0 0.0
    %990 = vmatprep.subr.mxu0 0.0
    %991 = vmatpush1.msra.mxu0 0.0
    %992 = vmatprep.subr.mxu0 0.0
    %993 = vmatpush1.msra.mxu0 0.0
    %994 = vmatprep.subr.mxu0 0.0
    %995 = vmatpush1.msra.mxu0 0.0
    %996 = vmatprep.subr.mxu0 0.0
    %997 = vmatpush1.msra.mxu0 0.0
    %998 = vmatprep.subr.mxu0 0.0
    %999 = vmatpush1.msra.mxu0 0.0
    %1000 = vmatprep.subr.mxu0 0.0
    %1001 = vmatpush1.msra.mxu0 0.0
    %1002 = vmatprep.subr.mxu0 0.0
    %1003 = vmatpush1.msra.mxu0 0.0
    %1004 = vmatprep.subr.mxu0 0.0
    %1005 = vmatpush1.msra.mxu0 0.0
    %1006 = vmatprep.subr.mxu0 0.0
    %1007 = vmatpush1.msra.mxu0 0.0
    %1008 = vmatprep.subr.mxu0 0.0
    %1009 = vmatpush1.msra.mxu0 0.0
    %1010 = vmatprep.subr.mxu0 0.0
    %1011 = vmatpush1.msra.mxu0 0.0
    %1012 = vmatprep.subr.mxu0 0.0
    %1013 = vmatpush1.msra.mxu0 0.0
    %1014 = vmatprep.subr.mxu0 0.0
    %1015 = vmatpush1.msra.mxu0 0.0
    %1016 = vmatprep.subr.mxu0 0.0
    %1017 = vmatpush1.msra.mxu0 0.0
    %1018 = vmatprep.subr.mxu0 0.0
    %1019 = vmatpush1.msra.mxu0 0.0
    %1020 = vmatprep.subr.mxu0 0.0
    %1021 = vmatpush1.msra.mxu0 0.0
    %1022 = vmatprep.subr.mxu0 0.0
    %1023 = vmatpush1.msra.mxu0 0.0
    %1024 = vmatprep.subr.mxu0 0.0
    %1025 = vmatpush1.msra.mxu0 0.0
    %1026 = vmatprep.subr.mxu0 0.0
    %1027 = vmatpush1.msra.mxu0 0.0
    %1028 = vmatprep.subr.mxu0 0.0
    %1029 = vmatpush1.msra.mxu0 0.0
    %1030 = vmatprep.subr.mxu0 0.0
    %1031 = vmatpush1.msra.mxu0 0.0
    %1032 = vmatprep.mubr.f32.mxu0 0.0
    %1033 = vmatmul.mubr.f32.gmra.mrb[0].mxu0 %v494
    %v1034 = vpop.f32.mrb[0].mxu0
    %v1035 = vadd.f32 0.0, %v1034
    %v1036 = vpop.f32.mrb[0].mxu0
    %1037 = vdwg.mxu0
    %v1038 = vmax.f32 %v965, 0.0
    %v1039 = vmax.f32 %v1035, 0.0
    %v1040 = vadd.f32 %v804, %v1038
    %v1041 = vadd.f32 %v805, %v1039
    %1042 = vst.msk [vmem:[#allocation10] sm:$0xff] %vm337, %v1040
    %1043 = vst.msk [vmem:[#allocation10 + $0x8] sm:$0xff] %vm337, %v1041
    %v1044 = vsel %vm337, %v1040, 0.0
    %v1045 = vsel %vm337, %v1041, 0.0
    %v1046 = vld [vmem:[%s1] sm:$0xff]
    %v1047 = vld [vmem:[%s1 + $0x8] sm:$0xff]
    %vm1048 = vcmask 130048
    %v1050 = vsel %vm1048, %v1046, 0
    %v1053 = vsel %vm1048, %v1047, 0
    %1055 = vmatprep.subr.mxu0 0.0
    %1056 = vmatpush1.msra.mxu0 %v1044
    %1057 = vmatprep.subr.mxu0 0.0
    %1058 = vmatpush1.msra.mxu0 %v1045
    %1059 = vmatprep.subr.mxu0 0.0
    %1060 = vmatpush1.msra.mxu0 0.0
    %1061 = vmatprep.subr.mxu0 0.0
    %1062 = vmatpush1.msra.mxu0 0.0
    %1063 = vmatprep.subr.mxu0 0.0
    %1064 = vmatpush1.msra.mxu0 0.0
    %1065 = vmatprep.subr.mxu0 0.0
    %1066 = vmatpush1.msra.mxu0 0.0
    %1067 = vmatprep.subr.mxu0 0.0
    %1068 = vmatpush1.msra.mxu0 0.0
    %1069 = vmatprep.subr.mxu0 0.0
    %1070 = vmatpush1.msra.mxu0 0.0
    %1071 = vmatprep.subr.mxu0 0.0
    %1072 = vmatpush1.msra.mxu0 0.0
    %1073 = vmatprep.subr.mxu0 0.0
    %1074 = vmatpush1.msra.mxu0 0.0
    %1075 = vmatprep.subr.mxu0 0.0
    %1076 = vmatpush1.msra.mxu0 0.0
    %1077 = vmatprep.subr.mxu0 0.0
    %1078 = vmatpush1.msra.mxu0 0.0
    %1079 = vmatprep.subr.mxu0 0.0
    %1080 = vmatpush1.msra.mxu0 0.0
    %1081 = vmatprep.subr.mxu0 0.0
    %1082 = vmatpush1.msra.mxu0 0.0
    %1083 = vmatprep.subr.mxu0 0.0
    %1084 = vmatpush1.msra.mxu0 0.0
    %1085 = vmatprep.subr.mxu0 0.0
    %1086 = vmatpush1.msra.mxu0 0.0
    %1087 = vmatprep.subr.mxu0 0.0
    %1088 = vmatpush1.msra.mxu0 0.0
    %1089 = vmatprep.subr.mxu0 0.0
    %1090 = vmatpush1.msra.mxu0 0.0
    %1091 = vmatprep.subr.mxu0 0.0
    %1092 = vmatpush1.msra.mxu0 0.0
    %1093 = vmatprep.subr.mxu0 0.0
    %1094 = vmatpush1.msra.mxu0 0.0
    %1095 = vmatprep.subr.mxu0 0.0
    %1096 = vmatpush1.msra.mxu0 0.0
    %1097 = vmatprep.subr.mxu0 0.0
    %1098 = vmatpush1.msra.mxu0 0.0
    %1099 = vmatprep.subr.mxu0 0.0
    %1100 = vmatpush1.msra.mxu0 0.0
    %1101 = vmatprep.subr.mxu0 0.0
    %1102 = vmatpush1.msra.mxu0 0.0
    %1103 = vmatprep.subr.mxu0 0.0
    %1104 = vmatpush1.msra.mxu0 0.0
    %1105 = vmatprep.subr.mxu0 0.0
    %1106 = vmatpush1.msra.mxu0 0.0
    %1107 = vmatprep.subr.mxu0 0.0
    %1108 = vmatpush1.msra.mxu0 0.0
    %1109 = vmatprep.subr.mxu0 0.0
    %1110 = vmatpush1.msra.mxu0 0.0
    %1111 = vmatprep.subr.mxu0 0.0
    %1112 = vmatpush1.msra.mxu0 0.0
    %1113 = vmatprep.subr.mxu0 0.0
    %1114 = vmatpush1.msra.mxu0 0.0
    %1115 = vmatprep.subr.mxu0 0.0
    %1116 = vmatpush1.msra.mxu0 0.0
    %1117 = vmatprep.subr.mxu0 0.0
    %1118 = vmatpush1.msra.mxu0 0.0
    %1119 = vmatprep.mubr.f32.mxu0 0.0
    %1120 = vmatmul.mubr.f32.gmra.mrb[0].mxu0 %v1050
    %v1121 = vpop.f32.mrb[0].mxu0
    %v1122 = vadd.f32 0.0, %v1121
    %v1123 = vpop.f32.mrb[0].mxu0
    %1124 = vmatprep.mubr.f32.mxu0 0.0
    %1125 = vmatmul.mubr.f32.gmra.mrb[0].mxu0 %v1053
    %v1126 = vpop.f32.mrb[0].mxu0
    %v1127 = vadd.f32 0.0, %v1126
    %v1128 = vpop.f32.mrb[0].mxu0
    %1129 = vdwg.mxu0
    %v1130 = vld [vmem:[%s2] sm:$0xff]
    %v1131 = vld [vmem:[%s2 + $0x8] sm:$0xff]
    %v1133 = vsel %vm1048, %v1130, 0
    %v1136 = vsel %vm1048, %v1131, 0
    %1138 = vmatprep.subr.mxu0 0.0
    %1139 = vmatpush1.msra.mxu0 %v1044
    %1140 = vmatprep.subr.mxu0 0.0
    %1141 = vmatpush1.msra.mxu0 %v1045
    %1142 = vmatprep.subr.mxu0 0.0
    %1143 = vmatpush1.msra.mxu0 0.0
    %1144 = vmatprep.subr.mxu0 0.0
    %1145 = vmatpush1.msra.mxu0 0.0
    %1146 = vmatprep.subr.mxu0 0.0
    %1147 = vmatpush1.msra.mxu0 0.0
    %1148 = vmatprep.subr.mxu0 0.0
    %1149 = vmatpush1.msra.mxu0 0.0
    %1150 = vmatprep.subr.mxu0 0.0
    %1151 = vmatpush1.msra.mxu0 0.0
    %1152 = vmatprep.subr.mxu0 0.0
    %1153 = vmatpush1.msra.mxu0 0.0
    %1154 = vmatprep.subr.mxu0 0.0
    %1155 = vmatpush1.msra.mxu0 0.0
    %1156 = vmatprep.subr.mxu0 0.0
    %1157 = vmatpush1.msra.mxu0 0.0
    %1158 = vmatprep.subr.mxu0 0.0
    %1159 = vmatpush1.msra.mxu0 0.0
    %1160 = vmatprep.subr.mxu0 0.0
    %1161 = vmatpush1.msra.mxu0 0.0
    %1162 = vmatprep.subr.mxu0 0.0
    %1163 = vmatpush1.msra.mxu0 0.0
    %1164 = vmatprep.subr.mxu0 0.0
    %1165 = vmatpush1.msra.mxu0 0.0
    %1166 = vmatprep.subr.mxu0 0.0
    %1167 = vmatpush1.msra.mxu0 0.0
    %1168 = vmatprep.subr.mxu0 0.0
    %1169 = vmatpush1.msra.mxu0 0.0
    %1170 = vmatprep.subr.mxu0 0.0
    %1171 = vmatpush1.msra.mxu0 0.0
    %1172 = vmatprep.subr.mxu0 0.0
    %1173 = vmatpush1.msra.mxu0 0.0
    %1174 = vmatprep.subr.mxu0 0.0
    %1175 = vmatpush1.msra.mxu0 0.0
    %1176 = vmatprep.subr.mxu0 0.0
    %1177 = vmatpush1.msra.mxu0 0.0
    %1178 = vmatprep.subr.mxu0 0.0
    %1179 = vmatpush1.msra.mxu0 0.0
    %1180 = vmatprep.subr.mxu0 0.0
    %1181 = vmatpush1.msra.mxu0 0.0
    %1182 = vmatprep.subr.mxu0 0.0
    %1183 = vmatpush1.msra.mxu0 0.0
    %1184 = vmatprep.subr.mxu0 0.0
    %1185 = vmatpush1.msra.mxu0 0.0
    %1186 = vmatprep.subr.mxu0 0.0
    %1187 = vmatpush1.msra.mxu0 0.0
    %1188 = vmatprep.subr.mxu0 0.0
    %1189 = vmatpush1.msra.mxu0 0.0
    %1190 = vmatprep.subr.mxu0 0.0
    %1191 = vmatpush1.msra.mxu0 0.0
    %1192 = vmatprep.subr.mxu0 0.0
    %1193 = vmatpush1.msra.mxu0 0.0
    %1194 = vmatprep.subr.mxu0 0.0
    %1195 = vmatpush1.msra.mxu0 0.0
    %1196 = vmatprep.subr.mxu0 0.0
    %1197 = vmatpush1.msra.mxu0 0.0
    %1198 = vmatprep.subr.mxu0 0.0
    %1199 = vmatpush1.msra.mxu0 0.0
    %1200 = vmatprep.subr.mxu0 0.0
    %1201 = vmatpush1.msra.mxu0 0.0
    %1202 = vmatprep.mubr.f32.mxu0 0.0
    %1203 = vmatmul.mubr.f32.gmra.mrb[0].mxu0 %v1133
    %v1204 = vpop.f32.mrb[0].mxu0
    %v1205 = vadd.f32 0.0, %v1204
    %v1206 = vpop.f32.mrb[0].mxu0
    %1207 = vmatprep.mubr.f32.mxu0 0.0
    %1208 = vmatmul.mubr.f32.gmra.mrb[0].mxu0 %v1136
    %v1209 = vpop.f32.mrb[0].mxu0
    %v1210 = vadd.f32 0.0, %v1209
    %v1211 = vpop.f32.mrb[0].mxu0
    %1212 = vdwg.mxu0
    %1215 = vrot.lane.b32.xlu0 %v1205, 64
    %v1216 = vpop.permute.xlu0 %1215
    %1217 = vrot.lane.b32.xlu0 %v1210, 64
    %v1218 = vpop.permute.xlu0 %1217
    %vm1221 = vcmask 523264
    %v1222 = vsel %vm1221, %v1122, %v1216
    %v1223 = vsel %vm1221, %v1127, %v1218
    %v1224 = vld [vmem:[#allocation2] sm:$0xff]
    %v1225 = vld [vmem:[#allocation2 + $0x8] sm:$0xff]
    %v1226 = vld [vmem:[#allocation2 + $0x10] sm:$0xff]
    %v1227 = vld [vmem:[#allocation2 + $0x18] sm:$0xff]
    %v1228 = vld [vmem:[#allocation2 + $0x20] sm:$0xff]
    %v1229 = vld [vmem:[#allocation2 + $0x28] sm:$0xff]
    %v1230 = vld [vmem:[#allocation2 + $0x30] sm:$0xff]
    %v1231 = vld [vmem:[#allocation2 + $0x38] sm:$0xff]
    %v1232 = vld [vmem:[#allocation2 + $0x40] sm:$0xff]
    %v1233 = vld [vmem:[#allocation2 + $0x48] sm:$0xff]
    %v1234 = vld [vmem:[#allocation2 + $0x50] sm:$0xff]
    %v1235 = vld [vmem:[#allocation2 + $0x58] sm:$0xff]
    %v1236 = vld [vmem:[#allocation2 + $0x60] sm:$0xff]
    %v1237 = vld [vmem:[#allocation2 + $0x68] sm:$0xff]
    %v1238 = vld [vmem:[#allocation2 + $0x70] sm:$0xff]
    %v1239 = vld [vmem:[#allocation2 + $0x78] sm:$0xff]
    %v1240 = vld [vmem:[#allocation2 + $0x80] sm:$0xff]
    %v1241 = vld [vmem:[#allocation2 + $0x88] sm:$0xff]
    %v1242 = vld [vmem:[#allocation2 + $0x90] sm:$0xff]
    %v1243 = vld [vmem:[#allocation2 + $0x98] sm:$0xff]
    %v1244 = vld [vmem:[#allocation2 + $0xa0] sm:$0xff]
    %v1245 = vld [vmem:[#allocation2 + $0xa8] sm:$0xff]
    %v1246 = vld [vmem:[#allocation2 + $0xb0] sm:$0xff]
    %v1247 = vld [vmem:[#allocation2 + $0xb8] sm:$0xff]
    %v1248 = vld [vmem:[#allocation2 + $0xc0] sm:$0xff]
    %v1249 = vld [vmem:[#allocation2 + $0xc8] sm:$0xff]
    %v1250 = vld [vmem:[#allocation2 + $0xd0] sm:$0xff]
    %v1251 = vld [vmem:[#allocation2 + $0xd8] sm:$0xff]
    %v1252 = vld [vmem:[#allocation2 + $0xe0] sm:$0xff]
    %v1253 = vld [vmem:[#allocation2 + $0xe8] sm:$0xff]
    %v1254 = vld [vmem:[#allocation2 + $0xf0] sm:$0xff]
    %v1255 = vld [vmem:[#allocation2 + $0xf8] sm:$0xff]
    %v1256 = vld [vmem:[#allocation2 + $0x100] sm:$0xff]
    %v1257 = vld [vmem:[#allocation2 + $0x108] sm:$0xff]
    %v1258 = vld [vmem:[#allocation2 + $0x110] sm:$0xff]
    %v1259 = vld [vmem:[#allocation2 + $0x118] sm:$0xff]
    %v1260 = vld [vmem:[#allocation2 + $0x120] sm:$0xff]
    %v1261 = vld [vmem:[#allocation2 + $0x128] sm:$0xff]
    %v1262 = vld [vmem:[#allocation2 + $0x130] sm:$0xff]
    %v1263 = vld [vmem:[#allocation2 + $0x138] sm:$0xff]
    %v1264 = vld [vmem:[#allocation2 + $0x140] sm:$0xff]
    %v1265 = vld [vmem:[#allocation2 + $0x148] sm:$0xff]
    %v1266 = vld [vmem:[#allocation2 + $0x150] sm:$0xff]
    %v1267 = vld [vmem:[#allocation2 + $0x158] sm:$0xff]
    %v1268 = vld [vmem:[#allocation2 + $0x160] sm:$0xff]
    %v1269 = vld [vmem:[#allocation2 + $0x168] sm:$0xff]
    %v1270 = vld [vmem:[#allocation2 + $0x170] sm:$0xff]
    %v1271 = vld [vmem:[#allocation2 + $0x178] sm:$0xff]
    %v1272 = vld [vmem:[#allocation2 + $0x180] sm:$0xff]
    %v1273 = vld [vmem:[#allocation2 + $0x188] sm:$0xff]
    %v1274 = vld [vmem:[#allocation2 + $0x190] sm:$0xff]
    %v1275 = vld [vmem:[#allocation2 + $0x198] sm:$0xff]
    %v1276 = vld [vmem:[#allocation2 + $0x1a0] sm:$0xff]
    %v1277 = vld [vmem:[#allocation2 + $0x1a8] sm:$0xff]
    %v1278 = vld [vmem:[#allocation2 + $0x1b0] sm:$0xff]
    %v1279 = vld [vmem:[#allocation2 + $0x1b8] sm:$0xff]
    %v1280 = vld [vmem:[#allocation2 + $0x1c0] sm:$0xff]
    %v1281 = vld [vmem:[#allocation2 + $0x1c8] sm:$0xff]
    %v1282 = vld [vmem:[#allocation2 + $0x1d0] sm:$0xff]
    %v1283 = vld [vmem:[#allocation2 + $0x1d8] sm:$0xff]
    %v1284 = vld [vmem:[#allocation2 + $0x1e0] sm:$0xff]
    %v1285 = vld [vmem:[#allocation2 + $0x1e8] sm:$0xff]
    %v1286 = vld [vmem:[#allocation2 + $0x1f0] sm:$0xff]
    %v1287 = vld [vmem:[#allocation2 + $0x1f8] sm:$0xff]
    %v1288 = vld [vmem:[#allocation5] sm:$0xff]
    %v1289 = vld [vmem:[#allocation5 + $0x8] sm:$0xff]
    %v1290 = vld [vmem:[#allocation5 + $0x10] sm:$0xff]
    %v1291 = vld [vmem:[#allocation5 + $0x18] sm:$0xff]
    %v1292 = vld [vmem:[#allocation5 + $0x20] sm:$0xff]
    %v1293 = vld [vmem:[#allocation5 + $0x28] sm:$0xff]
    %v1294 = vld [vmem:[#allocation5 + $0x30] sm:$0xff]
    %v1295 = vld [vmem:[#allocation5 + $0x38] sm:$0xff]
    %v1296 = vld [vmem:[#allocation5 + $0x40] sm:$0xff]
    %v1297 = vld [vmem:[#allocation5 + $0x48] sm:$0xff]
    %v1298 = vld [vmem:[#allocation5 + $0x50] sm:$0xff]
    %v1299 = vld [vmem:[#allocation5 + $0x58] sm:$0xff]
    %v1300 = vld [vmem:[#allocation5 + $0x60] sm:$0xff]
    %v1301 = vld [vmem:[#allocation5 + $0x68] sm:$0xff]
    %v1302 = vld [vmem:[#allocation5 + $0x70] sm:$0xff]
    %v1303 = vld [vmem:[#allocation5 + $0x78] sm:$0xff]
    %v1304 = vld [vmem:[#allocation5 + $0x80] sm:$0xff]
    %v1305 = vld [vmem:[#allocation5 + $0x88] sm:$0xff]
    %v1306 = vld [vmem:[#allocation5 + $0x90] sm:$0xff]
    %v1307 = vld [vmem:[#allocation5 + $0x98] sm:$0xff]
    %v1308 = vld [vmem:[#allocation5 + $0xa0] sm:$0xff]
    %v1309 = vld [vmem:[#allocation5 + $0xa8] sm:$0xff]
    %v1310 = vld [vmem:[#allocation5 + $0xb0] sm:$0xff]
    %v1311 = vld [vmem:[#allocation5 + $0xb8] sm:$0xff]
    %v1312 = vld [vmem:[#allocation5 + $0xc0] sm:$0xff]
    %v1313 = vld [vmem:[#allocation5 + $0xc8] sm:$0xff]
    %v1314 = vld [vmem:[#allocation5 + $0xd0] sm:$0xff]
    %v1315 = vld [vmem:[#allocation5 + $0xd8] sm:$0xff]
    %v1316 = vld [vmem:[#allocation5 + $0xe0] sm:$0xff]
    %v1317 = vld [vmem:[#allocation5 + $0xe8] sm:$0xff]
    %v1318 = vld [vmem:[#allocation5 + $0xf0] sm:$0xff]
    %v1319 = vld [vmem:[#allocation5 + $0xf8] sm:$0xff]
    %v1320 = vld [vmem:[#allocation5 + $0x100] sm:$0xff]
    %v1321 = vld [vmem:[#allocation5 + $0x108] sm:$0xff]
    %v1322 = vld [vmem:[#allocation5 + $0x110] sm:$0xff]
    %v1323 = vld [vmem:[#allocation5 + $0x118] sm:$0xff]
    %v1324 = vld [vmem:[#allocation5 + $0x120] sm:$0xff]
    %v1325 = vld [vmem:[#allocation5 + $0x128] sm:$0xff]
    %v1326 = vld [vmem:[#allocation5 + $0x130] sm:$0xff]
    %v1327 = vld [vmem:[#allocation5 + $0x138] sm:$0xff]
    %v1328 = vld [vmem:[#allocation5 + $0x140] sm:$0xff]
    %v1329 = vld [vmem:[#allocation5 + $0x148] sm:$0xff]
    %v1330 = vld [vmem:[#allocation5 + $0x150] sm:$0xff]
    %v1331 = vld [vmem:[#allocation5 + $0x158] sm:$0xff]
    %v1332 = vld [vmem:[#allocation5 + $0x160] sm:$0xff]
    %v1333 = vld [vmem:[#allocation5 + $0x168] sm:$0xff]
    %v1334 = vld [vmem:[#allocation5 + $0x170] sm:$0xff]
    %v1335 = vld [vmem:[#allocation5 + $0x178] sm:$0xff]
    %v1336 = vld [vmem:[#allocation5 + $0x180] sm:$0xff]
    %v1337 = vld [vmem:[#allocation5 + $0x188] sm:$0xff]
    %v1338 = vld [vmem:[#allocation5 + $0x190] sm:$0xff]
    %v1339 = vld [vmem:[#allocation5 + $0x198] sm:$0xff]
    %v1340 = vld [vmem:[#allocation5 + $0x1a0] sm:$0xff]
    %v1341 = vld [vmem:[#allocation5 + $0x1a8] sm:$0xff]
    %v1342 = vld [vmem:[#allocation5 + $0x1b0] sm:$0xff]
    %v1343 = vld [vmem:[#allocation5 + $0x1b8] sm:$0xff]
    %v1344 = vld [vmem:[#allocation5 + $0x1c0] sm:$0xff]
    %v1345 = vld [vmem:[#allocation5 + $0x1c8] sm:$0xff]
    %v1346 = vld [vmem:[#allocation5 + $0x1d0] sm:$0xff]
    %v1347 = vld [vmem:[#allocation5 + $0x1d8] sm:$0xff]
    %v1348 = vld [vmem:[#allocation5 + $0x1e0] sm:$0xff]
    %v1349 = vld [vmem:[#allocation5 + $0x1e8] sm:$0xff]
    %v1350 = vld [vmem:[#allocation5 + $0x1f0] sm:$0xff]
    %v1351 = vld [vmem:[#allocation5 + $0x1f8] sm:$0xff]
    %v1352 = vld [vmem:[%s15] sm:$0xf]
    %v1353 = vld [vmem:[#allocation7] sm:$0xff]
    %v1354 = vld [vmem:[#allocation7 + $0x8] sm:$0xff]
    %v1355 = vld [vmem:[#allocation7 + $0x10] sm:$0xff]
    %v1356 = vld [vmem:[#allocation7 + $0x18] sm:$0xff]
    %v1357 = vld [vmem:[#allocation7 + $0x20] sm:$0xff]
    %v1358 = vld [vmem:[#allocation7 + $0x28] sm:$0xff]
    %v1359 = vld [vmem:[#allocation7 + $0x30] sm:$0xff]
    %v1360 = vld [vmem:[#allocation7 + $0x38] sm:$0xff]
    %v1361 = vld [vmem:[#allocation7 + $0x40] sm:$0xff]
    %v1362 = vld [vmem:[#allocation7 + $0x48] sm:$0xff]
    %v1363 = vld [vmem:[#allocation7 + $0x50] sm:$0xff]
    %v1364 = vld [vmem:[#allocation7 + $0x58] sm:$0xff]
    %v1365 = vld [vmem:[#allocation7 + $0x60] sm:$0xff]
    %v1366 = vld [vmem:[#allocation7 + $0x68] sm:$0xff]
    %v1367 = vld [vmem:[#allocation7 + $0x70] sm:$0xff]
    %v1368 = vld [vmem:[#allocation7 + $0x78] sm:$0xff]
    %v1369 = vld [vmem:[#allocation7 + $0x80] sm:$0xff]
    %v1370 = vld [vmem:[#allocation7 + $0x88] sm:$0xff]
    %v1371 = vld [vmem:[#allocation7 + $0x90] sm:$0xff]
    %v1372 = vld [vmem:[#allocation7 + $0x98] sm:$0xff]
    %v1373 = vld [vmem:[#allocation7 + $0xa0] sm:$0xff]
    %v1374 = vld [vmem:[#allocation7 + $0xa8] sm:$0xff]
    %v1375 = vld [vmem:[#allocation7 + $0xb0] sm:$0xff]
    %v1376 = vld [vmem:[#allocation7 + $0xb8] sm:$0xff]
    %v1377 = vld [vmem:[#allocation7 + $0xc0] sm:$0xff]
    %v1378 = vld [vmem:[#allocation7 + $0xc8] sm:$0xff]
    %v1379 = vld [vmem:[#allocation7 + $0xd0] sm:$0xff]
    %v1380 = vld [vmem:[#allocation7 + $0xd8] sm:$0xff]
    %v1381 = vld [vmem:[#allocation7 + $0xe0] sm:$0xff]
    %v1382 = vld [vmem:[#allocation7 + $0xe8] sm:$0xff]
    %v1383 = vld [vmem:[#allocation7 + $0xf0] sm:$0xff]
    %v1384 = vld [vmem:[#allocation7 + $0xf8] sm:$0xff]
    %v1385 = vld [vmem:[#allocation7 + $0x100] sm:$0xff]
    %v1386 = vld [vmem:[#allocation7 + $0x108] sm:$0xff]
    %v1387 = vld [vmem:[#allocation7 + $0x110] sm:$0xff]
    %v1388 = vld [vmem:[#allocation7 + $0x118] sm:$0xff]
    %v1389 = vld [vmem:[#allocation7 + $0x120] sm:$0xff]
    %v1390 = vld [vmem:[#allocation7 + $0x128] sm:$0xff]
    %v1391 = vld [vmem:[#allocation7 + $0x130] sm:$0xff]
    %v1392 = vld [vmem:[#allocation7 + $0x138] sm:$0xff]
    %v1393 = vld [vmem:[#allocation7 + $0x140] sm:$0xff]
    %v1394 = vld [vmem:[#allocation7 + $0x148] sm:$0xff]
    %v1395 = vld [vmem:[#allocation7 + $0x150] sm:$0xff]
    %v1396 = vld [vmem:[#allocation7 + $0x158] sm:$0xff]
    %v1397 = vld [vmem:[#allocation7 + $0x160] sm:$0xff]
    %v1398 = vld [vmem:[#allocation7 + $0x168] sm:$0xff]
    %v1399 = vld [vmem:[#allocation7 + $0x170] sm:$0xff]
    %v1400 = vld [vmem:[#allocation7 + $0x178] sm:$0xff]
    %v1401 = vld [vmem:[#allocation7 + $0x180] sm:$0xff]
    %v1402 = vld [vmem:[#allocation7 + $0x188] sm:$0xff]
    %v1403 = vld [vmem:[#allocation7 + $0x190] sm:$0xff]
    %v1404 = vld [vmem:[#allocation7 + $0x198] sm:$0xff]
    %v1405 = vld [vmem:[#allocation7 + $0x1a0] sm:$0xff]
    %v1406 = vld [vmem:[#allocation7 + $0x1a8] sm:$0xff]
    %v1407 = vld [vmem:[#allocation7 + $0x1b0] sm:$0xff]
    %v1408 = vld [vmem:[#allocation7 + $0x1b8] sm:$0xff]
    %v1409 = vld [vmem:[#allocation7 + $0x1c0] sm:$0xff]
    %v1410 = vld [vmem:[#allocation7 + $0x1c8] sm:$0xff]
    %v1411 = vld [vmem:[#allocation7 + $0x1d0] sm:$0xff]
    %v1412 = vld [vmem:[#allocation7 + $0x1d8] sm:$0xff]
    %v1413 = vld [vmem:[#allocation7 + $0x1e0] sm:$0xff]
    %v1414 = vld [vmem:[#allocation7 + $0x1e8] sm:$0xff]
    %v1415 = vld [vmem:[#allocation7 + $0x1f0] sm:$0xff]
    %v1416 = vld [vmem:[#allocation7 + $0x1f8] sm:$0xff]
    %v1417 = vld [vmem:[#allocation8] sm:$0xff]
    %v1418 = vld [vmem:[#allocation8 + $0x8] sm:$0xff]
    %v1419 = vld [vmem:[#allocation8 + $0x10] sm:$0xff]
    %v1420 = vld [vmem:[#allocation8 + $0x18] sm:$0xff]
    %v1421 = vld [vmem:[#allocation8 + $0x20] sm:$0xff]
    %v1422 = vld [vmem:[#allocation8 + $0x28] sm:$0xff]
    %v1423 = vld [vmem:[#allocation8 + $0x30] sm:$0xff]
    %v1424 = vld [vmem:[#allocation8 + $0x38] sm:$0xff]
    %v1425 = vld [vmem:[#allocation8 + $0x40] sm:$0xff]
    %v1426 = vld [vmem:[#allocation8 + $0x48] sm:$0xff]
    %v1427 = vld [vmem:[#allocation8 + $0x50] sm:$0xff]
    %v1428 = vld [vmem:[#allocation8 + $0x58] sm:$0xff]
    %v1429 = vld [vmem:[#allocation8 + $0x60] sm:$0xff]
    %v1430 = vld [vmem:[#allocation8 + $0x68] sm:$0xff]
    %v1431 = vld [vmem:[#allocation8 + $0x70] sm:$0xff]
    %v1432 = vld [vmem:[#allocation8 + $0x78] sm:$0xff]
    %v1433 = vld [vmem:[#allocation8 + $0x80] sm:$0xff]
    %v1434 = vld [vmem:[#allocation8 + $0x88] sm:$0xff]
    %v1435 = vld [vmem:[#allocation8 + $0x90] sm:$0xff]
    %v1436 = vld [vmem:[#allocation8 + $0x98] sm:$0xff]
    %v1437 = vld [vmem:[#allocation8 + $0xa0] sm:$0xff]
    %v1438 = vld [vmem:[#allocation8 + $0xa8] sm:$0xff]
    %v1439 = vld [vmem:[#allocation8 + $0xb0] sm:$0xff]
    %v1440 = vld [vmem:[#allocation8 + $0xb8] sm:$0xff]
    %v1441 = vld [vmem:[#allocation8 + $0xc0] sm:$0xff]
    %v1442 = vld [vmem:[#allocation8 + $0xc8] sm:$0xff]
    %v1443 = vld [vmem:[#allocation8 + $0xd0] sm:$0xff]
    %v1444 = vld [vmem:[#allocation8 + $0xd8] sm:$0xff]
    %v1445 = vld [vmem:[#allocation8 + $0xe0] sm:$0xff]
    %v1446 = vld [vmem:[#allocation8 + $0xe8] sm:$0xff]
    %v1447 = vld [vmem:[#allocation8 + $0xf0] sm:$0xff]
    %v1448 = vld [vmem:[#allocation8 + $0xf8] sm:$0xff]
    %v1449 = vld [vmem:[#allocation8 + $0x100] sm:$0xff]
    %v1450 = vld [vmem:[#allocation8 + $0x108] sm:$0xff]
    %v1451 = vld [vmem:[#allocation8 + $0x110] sm:$0xff]
    %v1452 = vld [vmem:[#allocation8 + $0x118] sm:$0xff]
    %v1453 = vld [vmem:[#allocation8 + $0x120] sm:$0xff]
    %v1454 = vld [vmem:[#allocation8 + $0x128] sm:$0xff]
    %v1455 = vld [vmem:[#allocation8 + $0x130] sm:$0xff]
    %v1456 = vld [vmem:[#allocation8 + $0x138] sm:$0xff]
    %v1457 = vld [vmem:[#allocation8 + $0x140] sm:$0xff]
    %v1458 = vld [vmem:[#allocation8 + $0x148] sm:$0xff]
    %v1459 = vld [vmem:[#allocation8 + $0x150] sm:$0xff]
    %v1460 = vld [vmem:[#allocation8 + $0x158] sm:$0xff]
    %v1461 = vld [vmem:[#allocation8 + $0x160] sm:$0xff]
    %v1462 = vld [vmem:[#allocation8 + $0x168] sm:$0xff]
    %v1463 = vld [vmem:[#allocation8 + $0x170] sm:$0xff]
    %v1464 = vld [vmem:[#allocation8 + $0x178] sm:$0xff]
    %v1465 = vld [vmem:[#allocation8 + $0x180] sm:$0xff]
    %v1466 = vld [vmem:[#allocation8 + $0x188] sm:$0xff]
    %v1467 = vld [vmem:[#allocation8 + $0x190] sm:$0xff]
    %v1468 = vld [vmem:[#allocation8 + $0x198] sm:$0xff]
    %v1469 = vld [vmem:[#allocation8 + $0x1a0] sm:$0xff]
    %v1470 = vld [vmem:[#allocation8 + $0x1a8] sm:$0xff]
    %v1471 = vld [vmem:[#allocation8 + $0x1b0] sm:$0xff]
    %v1472 = vld [vmem:[#allocation8 + $0x1b8] sm:$0xff]
    %v1473 = vld [vmem:[#allocation8 + $0x1c0] sm:$0xff]
    %v1474 = vld [vmem:[#allocation8 + $0x1c8] sm:$0xff]
    %v1475 = vld [vmem:[#allocation8 + $0x1d0] sm:$0xff]
    %v1476 = vld [vmem:[#allocation8 + $0x1d8] sm:$0xff]
    %v1477 = vld [vmem:[#allocation8 + $0x1e0] sm:$0xff]
    %v1478 = vld [vmem:[#allocation8 + $0x1e8] sm:$0xff]
    %v1479 = vld [vmem:[#allocation8 + $0x1f0] sm:$0xff]
    %v1480 = vld [vmem:[#allocation8 + $0x1f8] sm:$0xff]
    %v1481 = vld [vmem:[%s18] sm:$0xf]
    %v1482 = vld [vmem:[%s11] sm:$0x3]
    %1483 = vmatprep.subr.mxu0 %v1289
    %1484 = vmatpush1.msra.mxu0 %v1288
    %1485 = vmatprep.subr.mxu0 %v1293
    %1486 = vmatpush1.msra.mxu0 %v1292
    %1487 = vmatprep.subr.mxu0 %v1297
    %1488 = vmatpush1.msra.mxu0 %v1296
    %1489 = vmatprep.subr.mxu0 %v1301
    %1490 = vmatpush1.msra.mxu0 %v1300
    %1491 = vmatprep.subr.mxu0 %v1305
    %1492 = vmatpush1.msra.mxu0 %v1304
    %1493 = vmatprep.subr.mxu0 %v1309
    %1494 = vmatpush1.msra.mxu0 %v1308
    %1495 = vmatprep.subr.mxu0 %v1313
    %1496 = vmatpush1.msra.mxu0 %v1312
    %1497 = vmatprep.subr.mxu0 %v1317
    %1498 = vmatpush1.msra.mxu0 %v1316
    %1499 = vmatprep.subr.mxu0 %v1321
    %1500 = vmatpush1.msra.mxu0 %v1320
    %1501 = vmatprep.subr.mxu0 %v1325
    %1502 = vmatpush1.msra.mxu0 %v1324
    %1503 = vmatprep.subr.mxu0 %v1329
    %1504 = vmatpush1.msra.mxu0 %v1328
    %1505 = vmatprep.subr.mxu0 %v1333
    %1506 = vmatpush1.msra.mxu0 %v1332
    %1507 = vmatprep.subr.mxu0 %v1337
    %1508 = vmatpush1.msra.mxu0 %v1336
    %1509 = vmatprep.subr.mxu0 %v1341
    %1510 = vmatpush1.msra.mxu0 %v1340
    %1511 = vmatprep.subr.mxu0 %v1345
    %1512 = vmatpush1.msra.mxu0 %v1344
    %1513 = vmatprep.subr.mxu0 %v1349
    %1514 = vmatpush1.msra.mxu0 %v1348
    %1515 = vmatprep.subr.mxu0 0.0
    %1516 = vmatpush1.msra.mxu0 0.0
    %1517 = vmatprep.subr.mxu0 0.0
    %1518 = vmatpush1.msra.mxu0 0.0
    %1519 = vmatprep.subr.mxu0 0.0
    %1520 = vmatpush1.msra.mxu0 0.0
    %1521 = vmatprep.subr.mxu0 0.0
    %1522 = vmatpush1.msra.mxu0 0.0
    %1523 = vmatprep.subr.mxu0 0.0
    %1524 = vmatpush1.msra.mxu0 0.0
    %1525 = vmatprep.subr.mxu0 0.0
    %1526 = vmatpush1.msra.mxu0 0.0
    %1527 = vmatprep.subr.mxu0 0.0
    %1528 = vmatpush1.msra.mxu0 0.0
    %1529 = vmatprep.subr.mxu0 0.0
    %1530 = vmatpush1.msra.mxu0 0.0
    %1531 = vmatprep.subr.mxu0 0.0
    %1532 = vmatpush1.msra.mxu0 0.0
    %1533 = vmatprep.subr.mxu0 0.0
    %1534 = vmatpush1.msra.mxu0 0.0
    %1535 = vmatprep.subr.mxu0 0.0
    %1536 = vmatpush1.msra.mxu0 0.0
    %1537 = vmatprep.subr.mxu0 0.0
    %1538 = vmatpush1.msra.mxu0 0.0
    %1539 = vmatprep.subr.mxu0 0.0
    %1540 = vmatpush1.msra.mxu0 0.0
    %1541 = vmatprep.subr.mxu0 0.0
    %1542 = vmatpush1.msra.mxu0 0.0
    %1543 = vmatprep.subr.mxu0 0.0
    %1544 = vmatpush1.msra.mxu0 0.0
    %1545 = vmatprep.subr.mxu0 0.0
    %1546 = vmatpush1.msra.mxu0 0.0
    %1547 = vmatprep.mubr.f32.mxu0 0.0
    %1548 = vmatmul.mubr.f32.gmra.mrb[0].mxu0 %v1482
    %v1549 = vpop.f32.mrb[0].mxu0
    %v1550 = vadd.f32 0.0, %v1549
    %v1551 = vpop.f32.mrb[0].mxu0
    %v1552 = vadd.f32 0.0, %v1551
    %1553 = vdwg.mxu0
    %1554 = vmatprep.subr.mxu0 %v1291
    %1555 = vmatpush1.msra.mxu0 %v1290
    %1556 = vmatprep.subr.mxu0 %v1295
    %1557 = vmatpush1.msra.mxu0 %v1294
    %1558 = vmatprep.subr.mxu0 %v1299
    %1559 = vmatpush1.msra.mxu0 %v1298
    %1560 = vmatprep.subr.mxu0 %v1303
    %1561 = vmatpush1.msra.mxu0 %v1302
    %1562 = vmatprep.subr.mxu0 %v1307
    %1563 = vmatpush1.msra.mxu0 %v1306
    %1564 = vmatprep.subr.mxu0 %v1311
    %1565 = vmatpush1.msra.mxu0 %v1310
    %1566 = vmatprep.subr.mxu0 %v1315
    %1567 = vmatpush1.msra.mxu0 %v1314
    %1568 = vmatprep.subr.mxu0 %v1319
    %1569 = vmatpush1.msra.mxu0 %v1318
    %1570 = vmatprep.subr.mxu0 %v1323
    %1571 = vmatpush1.msra.mxu0 %v1322
    %1572 = vmatprep.subr.mxu0 %v1327
    %1573 = vmatpush1.msra.mxu0 %v1326
    %1574 = vmatprep.subr.mxu0 %v1331
    %1575 = vmatpush1.msra.mxu0 %v1330
    %1576 = vmatprep.subr.mxu0 %v1335
    %1577 = vmatpush1.msra.mxu0 %v1334
    %1578 = vmatprep.subr.mxu0 %v1339
    %1579 = vmatpush1.msra.mxu0 %v1338
    %1580 = vmatprep.subr.mxu0 %v1343
    %1581 = vmatpush1.msra.mxu0 %v1342
    %1582 = vmatprep.subr.mxu0 %v1347
    %1583 = vmatpush1.msra.mxu0 %v1346
    %1584 = vmatprep.subr.mxu0 %v1351
    %1585 = vmatpush1.msra.mxu0 %v1350
    %1586 = vmatprep.subr.mxu0 0.0
    %1587 = vmatpush1.msra.mxu0 0.0
    %1588 = vmatprep.subr.mxu0 0.0
    %1589 = vmatpush1.msra.mxu0 0.0
    %1590 = vmatprep.subr.mxu0 0.0
    %1591 = vmatpush1.msra.mxu0 0.0
    %1592 = vmatprep.subr.mxu0 0.0
    %1593 = vmatpush1.msra.mxu0 0.0
    %1594 = vmatprep.subr.mxu0 0.0
    %1595 = vmatpush1.msra.mxu0 0.0
    %1596 = vmatprep.subr.mxu0 0.0
    %1597 = vmatpush1.msra.mxu0 0.0
    %1598 = vmatprep.subr.mxu0 0.0
    %1599 = vmatpush1.msra.mxu0 0.0
    %1600 = vmatprep.subr.mxu0 0.0
    %1601 = vmatpush1.msra.mxu0 0.0
    %1602 = vmatprep.subr.mxu0 0.0
    %1603 = vmatpush1.msra.mxu0 0.0
    %1604 = vmatprep.subr.mxu0 0.0
    %1605 = vmatpush1.msra.mxu0 0.0
    %1606 = vmatprep.subr.mxu0 0.0
    %1607 = vmatpush1.msra.mxu0 0.0
    %1608 = vmatprep.subr.mxu0 0.0
    %1609 = vmatpush1.msra.mxu0 0.0
    %1610 = vmatprep.subr.mxu0 0.0
    %1611 = vmatpush1.msra.mxu0 0.0
    %1612 = vmatprep.subr.mxu0 0.0
    %1613 = vmatpush1.msra.mxu0 0.0
    %1614 = vmatprep.subr.mxu0 0.0
    %1615 = vmatpush1.msra.mxu0 0.0
    %1616 = vmatprep.subr.mxu0 0.0
    %1617 = vmatpush1.msra.mxu0 0.0
    %1618 = vmatprep.mubr.f32.mxu0 0.0
    %1619 = vmatmul.mubr.f32.gmra.mrb[0].mxu0 %v1482
    %v1620 = vpop.f32.mrb[0].mxu0
    %v1621 = vadd.f32 0.0, %v1620
    %v1622 = vpop.f32.mrb[0].mxu0
    %v1623 = vadd.f32 0.0, %v1622
    %1624 = vdwg.mxu0
    %v1626 = vrot.slane %v1223, 6
    %1628 = vmatprep.subr.mxu0 %v1225
    %1629 = vmatpush1.msra.mxu0 %v1224
    %1630 = vmatprep.subr.mxu0 %v1229
    %1631 = vmatpush1.msra.mxu0 %v1228
    %1632 = vmatprep.subr.mxu0 %v1233
    %1633 = vmatpush1.msra.mxu0 %v1232
    %1634 = vmatprep.subr.mxu0 %v1237
    %1635 = vmatpush1.msra.mxu0 %v1236
    %1636 = vmatprep.subr.mxu0 %v1241
    %1637 = vmatpush1.msra.mxu0 %v1240
    %1638 = vmatprep.subr.mxu0 %v1245
    %1639 = vmatpush1.msra.mxu0 %v1244
    %1640 = vmatprep.subr.mxu0 %v1249
    %1641 = vmatpush1.msra.mxu0 %v1248
    %1642 = vmatprep.subr.mxu0 %v1253
    %1643 = vmatpush1.msra.mxu0 %v1252
    %1644 = vmatprep.subr.mxu0 %v1257
    %1645 = vmatpush1.msra.mxu0 %v1256
    %1646 = vmatprep.subr.mxu0 %v1261
    %1647 = vmatpush1.msra.mxu0 %v1260
    %1648 = vmatprep.subr.mxu0 %v1265
    %1649 = vmatpush1.msra.mxu0 %v1264
    %1650 = vmatprep.subr.mxu0 %v1269
    %1651 = vmatpush1.msra.mxu0 %v1268
    %1652 = vmatprep.subr.mxu0 %v1273
    %1653 = vmatpush1.msra.mxu0 %v1272
    %1654 = vmatprep.subr.mxu0 %v1277
    %1655 = vmatpush1.msra.mxu0 %v1276
    %1656 = vmatprep.subr.mxu0 %v1281
    %1657 = vmatpush1.msra.mxu0 %v1280
    %1658 = vmatprep.subr.mxu0 %v1285
    %1659 = vmatpush1.msra.mxu0 %v1284
    %1660 = vmatprep.subr.mxu0 0.0
    %1661 = vmatpush1.msra.mxu0 0.0
    %1662 = vmatprep.subr.mxu0 0.0
    %1663 = vmatpush1.msra.mxu0 0.0
    %1664 = vmatprep.subr.mxu0 0.0
    %1665 = vmatpush1.msra.mxu0 0.0
    %1666 = vmatprep.subr.mxu0 0.0
    %1667 = vmatpush1.msra.mxu0 0.0
    %1668 = vmatprep.subr.mxu0 0.0
    %1669 = vmatpush1.msra.mxu0 0.0
    %1670 = vmatprep.subr.mxu0 0.0
    %1671 = vmatpush1.msra.mxu0 0.0
    %1672 = vmatprep.subr.mxu0 0.0
    %1673 = vmatpush1.msra.mxu0 0.0
    %1674 = vmatprep.subr.mxu0 0.0
    %1675 = vmatpush1.msra.mxu0 0.0
    %1676 = vmatprep.subr.mxu0 0.0
    %1677 = vmatpush1.msra.mxu0 0.0
    %1678 = vmatprep.subr.mxu0 0.0
    %1679 = vmatpush1.msra.mxu0 0.0
    %1680 = vmatprep.subr.mxu0 0.0
    %1681 = vmatpush1.msra.mxu0 0.0
    %1682 = vmatprep.subr.mxu0 0.0
    %1683 = vmatpush1.msra.mxu0 0.0
    %1684 = vmatprep.subr.mxu0 0.0
    %1685 = vmatpush1.msra.mxu0 0.0
    %1686 = vmatprep.subr.mxu0 0.0
    %1687 = vmatpush1.msra.mxu0 0.0
    %1688 = vmatprep.subr.mxu0 0.0
    %1689 = vmatpush1.msra.mxu0 0.0
    %1690 = vmatprep.subr.mxu0 0.0
    %1691 = vmatpush1.msra.mxu0 0.0
    %1692 = vmatprep.mubr.f32.mxu0 0.0
    %1693 = vmatmul.mubr.f32.gmra.mrb[0].mxu0 %v1626
    %v1694 = vpop.f32.mrb[0].mxu0
    %v1695 = vadd.f32 %v1550, %v1694
    %v1696 = vpop.f32.mrb[0].mxu0
    %v1697 = vadd.f32 %v1552, %v1696
    %1698 = vdwg.mxu0
    %1699 = vmatprep.subr.mxu0 %v1227
    %1700 = vmatpush1.msra.mxu0 %v1226
    %1701 = vmatprep.subr.mxu0 %v1231
    %1702 = vmatpush1.msra.mxu0 %v1230
    %1703 = vmatprep.subr.mxu0 %v1235
    %1704 = vmatpush1.msra.mxu0 %v1234
    %1705 = vmatprep.subr.mxu0 %v1239
    %1706 = vmatpush1.msra.mxu0 %v1238
    %1707 = vmatprep.subr.mxu0 %v1243
    %1708 = vmatpush1.msra.mxu0 %v1242
    %1709 = vmatprep.subr.mxu0 %v1247
    %1710 = vmatpush1.msra.mxu0 %v1246
    %1711 = vmatprep.subr.mxu0 %v1251
    %1712 = vmatpush1.msra.mxu0 %v1250
    %1713 = vmatprep.subr.mxu0 %v1255
    %1714 = vmatpush1.msra.mxu0 %v1254
    %1715 = vmatprep.subr.mxu0 %v1259
    %1716 = vmatpush1.msra.mxu0 %v1258
    %1717 = vmatprep.subr.mxu0 %v1263
    %1718 = vmatpush1.msra.mxu0 %v1262
    %1719 = vmatprep.subr.mxu0 %v1267
    %1720 = vmatpush1.msra.mxu0 %v1266
    %1721 = vmatprep.subr.mxu0 %v1271
    %1722 = vmatpush1.msra.mxu0 %v1270
    %1723 = vmatprep.subr.mxu0 %v1275
    %1724 = vmatpush1.msra.mxu0 %v1274
    %1725 = vmatprep.subr.mxu0 %v1279
    %1726 = vmatpush1.msra.mxu0 %v1278
    %1727 = vmatprep.subr.mxu0 %v1283
    %1728 = vmatpush1.msra.mxu0 %v1282
    %1729 = vmatprep.subr.mxu0 %v1287
    %1730 = vmatpush1.msra.mxu0 %v1286
    %1731 = vmatprep.subr.mxu0 0.0
    %1732 = vmatpush1.msra.mxu0 0.0
    %1733 = vmatprep.subr.mxu0 0.0
    %1734 = vmatpush1.msra.mxu0 0.0
    %1735 = vmatprep.subr.mxu0 0.0
    %1736 = vmatpush1.msra.mxu0 0.0
    %1737 = vmatprep.subr.mxu0 0.0
    %1738 = vmatpush1.msra.mxu0 0.0
    %1739 = vmatprep.subr.mxu0 0.0
    %1740 = vmatpush1.msra.mxu0 0.0
    %1741 = vmatprep.subr.mxu0 0.0
    %1742 = vmatpush1.msra.mxu0 0.0
    %1743 = vmatprep.subr.mxu0 0.0
    %1744 = vmatpush1.msra.mxu0 0.0
    %1745 = vmatprep.subr.mxu0 0.0
    %1746 = vmatpush1.msra.mxu0 0.0
    %1747 = vmatprep.subr.mxu0 0.0
    %1748 = vmatpush1.msra.mxu0 0.0
    %1749 = vmatprep.subr.mxu0 0.0
    %1750 = vmatpush1.msra.mxu0 0.0
    %1751 = vmatprep.subr.mxu0 0.0
    %1752 = vmatpush1.msra.mxu0 0.0
    %1753 = vmatprep.subr.mxu0 0.0
    %1754 = vmatpush1.msra.mxu0 0.0
    %1755 = vmatprep.subr.mxu0 0.0
    %1756 = vmatpush1.msra.mxu0 0.0
    %1757 = vmatprep.subr.mxu0 0.0
    %1758 = vmatpush1.msra.mxu0 0.0
    %1759 = vmatprep.subr.mxu0 0.0
    %1760 = vmatpush1.msra.mxu0 0.0
    %1761 = vmatprep.subr.mxu0 0.0
    %1762 = vmatpush1.msra.mxu0 0.0
    %1763 = vmatprep.mubr.f32.mxu0 0.0
    %1764 = vmatmul.mubr.f32.gmra.mrb[0].mxu0 %v1626
    %v1765 = vpop.f32.mrb[0].mxu0
    %v1766 = vadd.f32 %v1621, %v1765
    %v1767 = vpop.f32.mrb[0].mxu0
    %v1768 = vadd.f32 %v1623, %v1767
    %1769 = vdwg.mxu0
    %v1771 = vlaneseq
    %v1772 = vshrl.u32 %v1771, 7
    %v1773 = vsub.s32 0, %v1772
    %v1774 = vrot.slane %v1352, %v1773
    %v1775 = vlaneseq
    %v1776 = vshrl.u32 %v1775, 7
    %v1777 = vsub.s32 1, %v1776
    %v1778 = vrot.slane %v1352, %v1777
    %v1779 = vlaneseq
    %v1780 = vshrl.u32 %v1779, 7
    %v1781 = vsub.s32 2, %v1780
    %v1782 = vrot.slane %v1352, %v1781
    %v1783 = vlaneseq
    %v1784 = vshrl.u32 %v1783, 7
    %v1785 = vsub.s32 3, %v1784
    %v1786 = vrot.slane %v1352, %v1785
    %v1791 = vadd.f32 %v1695, %v1774
    %v1792 = vadd.f32 %v1697, %v1778
    %v1793 = vadd.f32 %v1766, %v1782
    %v1794 = vadd.f32 %v1768, %v1786
    %v1795 = vld [vmem:[%s12] sm:$0x3]
    %v1796 = vxor.u32 %v1791, 2147483648
    %v1797 = vxor.u32 %v1792, 2147483648
    %v1798 = vxor.u32 %v1793, 2147483648
    %v1799 = vmul.f32 %v1796, 1.442695
    %v1800 = vpow.pop %v1799
    %v1801 = vmul.f32 %v1797, 1.442695
    %v1802 = vpow.pop %v1801
    %v1803 = vmul.f32 %v1798, 1.442695
    %v1804 = vpow.pop %v1803
    %v1805 = vadd.f32 %v1800, 1.0
    %v1806 = vadd.f32 %v1802, 1.0
    %v1807 = vadd.f32 %v1804, 1.0
    %v1808 = vrcp.pop %v1805
    %v1809 = vmul.f32 1.0, %v1808
    %v1810 = vrcp.pop %v1806
    %v1811 = vmul.f32 1.0, %v1810
    %v1812 = vrcp.pop %v1807
    %v1813 = vmul.f32 1.0, %v1812
    %v1814 = vtanh.pop %v1794
    %v1815 = vmul.f32 %v1811, %v1795
    %v1816 = vmul.f32 %v1809, %v1814
    %v1817 = vadd.f32 %v1815, %v1816
    %v1818 = vtanh.pop %v1817
    %v1819 = vmul.f32 %v1813, %v1818
    %v1821 = vlaneseq
    %v1822 = vshrl.u32 %v1821, 7
    %v1823 = vsub.s32 0, %v1822
    %v1824 = vrot.slane %v1481, %v1823
    %v1825 = vlaneseq
    %v1826 = vshrl.u32 %v1825, 7
    %v1827 = vsub.s32 1, %v1826
    %v1828 = vrot.slane %v1481, %v1827
    %v1829 = vlaneseq
    %v1830 = vshrl.u32 %v1829, 7
    %v1831 = vsub.s32 2, %v1830
    %v1832 = vrot.slane %v1481, %v1831
    %v1833 = vlaneseq
    %v1834 = vshrl.u32 %v1833, 7
    %v1835 = vsub.s32 3, %v1834
    %v1836 = vrot.slane %v1481, %v1835
    %1841 = vmatprep.subr.mxu0 %v1354
    %1842 = vmatpush1.msra.mxu0 %v1353
    %1843 = vmatprep.subr.mxu0 %v1358
    %1844 = vmatpush1.msra.mxu0 %v1357
    %1845 = vmatprep.subr.mxu0 %v1362
    %1846 = vmatpush1.msra.mxu0 %v1361
    %1847 = vmatprep.subr.mxu0 %v1366
    %1848 = vmatpush1.msra.mxu0 %v1365
    %1849 = vmatprep.subr.mxu0 %v1370
    %1850 = vmatpush1.msra.mxu0 %v1369
    %1851 = vmatprep.subr.mxu0 %v1374
    %1852 = vmatpush1.msra.mxu0 %v1373
    %1853 = vmatprep.subr.mxu0 %v1378
    %1854 = vmatpush1.msra.mxu0 %v1377
    %1855 = vmatprep.subr.mxu0 %v1382
    %1856 = vmatpush1.msra.mxu0 %v1381
    %1857 = vmatprep.subr.mxu0 %v1386
    %1858 = vmatpush1.msra.mxu0 %v1385
    %1859 = vmatprep.subr.mxu0 %v1390
    %1860 = vmatpush1.msra.mxu0 %v1389
    %1861 = vmatprep.subr.mxu0 %v1394
    %1862 = vmatpush1.msra.mxu0 %v1393
    %1863 = vmatprep.subr.mxu0 %v1398
    %1864 = vmatpush1.msra.mxu0 %v1397
    %1865 = vmatprep.subr.mxu0 %v1402
    %1866 = vmatpush1.msra.mxu0 %v1401
    %1867 = vmatprep.subr.mxu0 %v1406
    %1868 = vmatpush1.msra.mxu0 %v1405
    %1869 = vmatprep.subr.mxu0 %v1410
    %1870 = vmatpush1.msra.mxu0 %v1409
    %1871 = vmatprep.subr.mxu0 %v1414
    %1872 = vmatpush1.msra.mxu0 %v1413
    %1873 = vmatprep.subr.mxu0 0.0
    %1874 = vmatpush1.msra.mxu0 0.0
    %1875 = vmatprep.subr.mxu0 0.0
    %1876 = vmatpush1.msra.mxu0 0.0
    %1877 = vmatprep.subr.mxu0 0.0
    %1878 = vmatpush1.msra.mxu0 0.0
    %1879 = vmatprep.subr.mxu0 0.0
    %1880 = vmatpush1.msra.mxu0 0.0
    %1881 = vmatprep.subr.mxu0 0.0
    %1882 = vmatpush1.msra.mxu0 0.0
    %1883 = vmatprep.subr.mxu0 0.0
    %1884 = vmatpush1.msra.mxu0 0.0
    %1885 = vmatprep.subr.mxu0 0.0
    %1886 = vmatpush1.msra.mxu0 0.0
    %1887 = vmatprep.subr.mxu0 0.0
    %1888 = vmatpush1.msra.mxu0 0.0
    %1889 = vmatprep.subr.mxu0 0.0
    %1890 = vmatpush1.msra.mxu0 0.0
    %1891 = vmatprep.subr.mxu0 0.0
    %1892 = vmatpush1.msra.mxu0 0.0
    %1893 = vmatprep.subr.mxu0 0.0
    %1894 = vmatpush1.msra.mxu0 0.0
    %1895 = vmatprep.subr.mxu0 0.0
    %1896 = vmatpush1.msra.mxu0 0.0
    %1897 = vmatprep.subr.mxu0 0.0
    %1898 = vmatpush1.msra.mxu0 0.0
    %1899 = vmatprep.subr.mxu0 0.0
    %1900 = vmatpush1.msra.mxu0 0.0
    %1901 = vmatprep.subr.mxu0 0.0
    %1902 = vmatpush1.msra.mxu0 0.0
    %1903 = vmatprep.subr.mxu0 0.0
    %1904 = vmatpush1.msra.mxu0 0.0
    %1905 = vmatprep.mubr.f32.mxu0 0.0
    %1906 = vmatmul.mubr.f32.gmra.mrb[0].mxu0 %v1222
    %v1907 = vpop.f32.mrb[0].mxu0
    %v1908 = vadd.f32 %v1824, %v1907
    %v1909 = vpop.f32.mrb[0].mxu0
    %v1910 = vadd.f32 %v1828, %v1909
    %1911 = vmatprep.mubr.f32.mxu0 0.0
    %1912 = vmatmul.mubr.f32.gmra.mrb[0].mxu0 %v1223
    %v1913 = vpop.f32.mrb[0].mxu0
    %v1914 = vadd.f32 %v1824, %v1913
    %v1915 = vpop.f32.mrb[0].mxu0
    %v1916 = vadd.f32 %v1828, %v1915
    %1917 = vdwg.mxu0
    %1918 = vmatprep.subr.mxu0 %v1356
    %1919 = vmatpush1.msra.mxu0 %v1355
    %1920 = vmatprep.subr.mxu0 %v1360
    %1921 = vmatpush1.msra.mxu0 %v1359
    %1922 = vmatprep.subr.mxu0 %v1364
    %1923 = vmatpush1.msra.mxu0 %v1363
    %1924 = vmatprep.subr.mxu0 %v1368
    %1925 = vmatpush1.msra.mxu0 %v1367
    %1926 = vmatprep.subr.mxu0 %v1372
    %1927 = vmatpush1.msra.mxu0 %v1371
    %1928 = vmatprep.subr.mxu0 %v1376
    %1929 = vmatpush1.msra.mxu0 %v1375
    %1930 = vmatprep.subr.mxu0 %v1380
    %1931 = vmatpush1.msra.mxu0 %v1379
    %1932 = vmatprep.subr.mxu0 %v1384
    %1933 = vmatpush1.msra.mxu0 %v1383
    %1934 = vmatprep.subr.mxu0 %v1388
    %1935 = vmatpush1.msra.mxu0 %v1387
    %1936 = vmatprep.subr.mxu0 %v1392
    %1937 = vmatpush1.msra.mxu0 %v1391
    %1938 = vmatprep.subr.mxu0 %v1396
    %1939 = vmatpush1.msra.mxu0 %v1395
    %1940 = vmatprep.subr.mxu0 %v1400
    %1941 = vmatpush1.msra.mxu0 %v1399
    %1942 = vmatprep.subr.mxu0 %v1404
    %1943 = vmatpush1.msra.mxu0 %v1403
    %1944 = vmatprep.subr.mxu0 %v1408
    %1945 = vmatpush1.msra.mxu0 %v1407
    %1946 = vmatprep.subr.mxu0 %v1412
    %1947 = vmatpush1.msra.mxu0 %v1411
    %1948 = vmatprep.subr.mxu0 %v1416
    %1949 = vmatpush1.msra.mxu0 %v1415
    %1950 = vmatprep.subr.mxu0 0.0
    %1951 = vmatpush1.msra.mxu0 0.0
    %1952 = vmatprep.subr.mxu0 0.0
    %1953 = vmatpush1.msra.mxu0 0.0
    %1954 = vmatprep.subr.mxu0 0.0
    %1955 = vmatpush1.msra.mxu0 0.0
    %1956 = vmatprep.subr.mxu0 0.0
    %1957 = vmatpush1.msra.mxu0 0.0
    %1958 = vmatprep.subr.mxu0 0.0
    %1959 = vmatpush1.msra.mxu0 0.0
    %1960 = vmatprep.subr.mxu0 0.0
    %1961 = vmatpush1.msra.mxu0 0.0
    %1962 = vmatprep.subr.mxu0 0.0
    %1963 = vmatpush1.msra.mxu0 0.0
    %1964 = vmatprep.subr.mxu0 0.0
    %1965 = vmatpush1.msra.mxu0 0.0
    %1966 = vmatprep.subr.mxu0 0.0
    %1967 = vmatpush1.msra.mxu0 0.0
    %1968 = vmatprep.subr.mxu0 0.0
    %1969 = vmatpush1.msra.mxu0 0.0
    %1970 = vmatprep.subr.mxu0 0.0
    %1971 = vmatpush1.msra.mxu0 0.0
    %1972 = vmatprep.subr.mxu0 0.0
    %1973 = vmatpush1.msra.mxu0 0.0
    %1974 = vmatprep.subr.mxu0 0.0
    %1975 = vmatpush1.msra.mxu0 0.0
    %1976 = vmatprep.subr.mxu0 0.0
    %1977 = vmatpush1.msra.mxu0 0.0
    %1978 = vmatprep.subr.mxu0 0.0
    %1979 = vmatpush1.msra.mxu0 0.0
    %1980 = vmatprep.subr.mxu0 0.0
    %1981 = vmatpush1.msra.mxu0 0.0
    %1982 = vmatprep.mubr.f32.mxu0 0.0
    %1983 = vmatmul.mubr.f32.gmra.mrb[0].mxu0 %v1222
    %v1984 = vpop.f32.mrb[0].mxu0
    %v1985 = vadd.f32 %v1832, %v1984
    %v1986 = vpop.f32.mrb[0].mxu0
    %v1987 = vadd.f32 %v1836, %v1986
    %1988 = vmatprep.mubr.f32.mxu0 0.0
    %1989 = vmatmul.mubr.f32.gmra.mrb[0].mxu0 %v1223
    %v1990 = vpop.f32.mrb[0].mxu0
    %v1991 = vadd.f32 %v1832, %v1990
    %v1992 = vpop.f32.mrb[0].mxu0
    %v1993 = vadd.f32 %v1836, %v1992
    %1994 = vdwg.mxu0
    %1995 = vmatprep.subr.mxu0 %v1418
    %1996 = vmatpush1.msra.mxu0 %v1417
    %1997 = vmatprep.subr.mxu0 %v1422
    %1998 = vmatpush1.msra.mxu0 %v1421
    %1999 = vmatprep.subr.mxu0 %v1426
    %2000 = vmatpush1.msra.mxu0 %v1425
    %2001 = vmatprep.subr.mxu0 %v1430
    %2002 = vmatpush1.msra.mxu0 %v1429
    %2003 = vmatprep.subr.mxu0 %v1434
    %2004 = vmatpush1.msra.mxu0 %v1433
    %2005 = vmatprep.subr.mxu0 %v1438
    %2006 = vmatpush1.msra.mxu0 %v1437
    %2007 = vmatprep.subr.mxu0 %v1442
    %2008 = vmatpush1.msra.mxu0 %v1441
    %2009 = vmatprep.subr.mxu0 %v1446
    %2010 = vmatpush1.msra.mxu0 %v1445
    %2011 = vmatprep.subr.mxu0 %v1450
    %2012 = vmatpush1.msra.mxu0 %v1449
    %2013 = vmatprep.subr.mxu0 %v1454
    %2014 = vmatpush1.msra.mxu0 %v1453
    %2015 = vmatprep.subr.mxu0 %v1458
    %2016 = vmatpush1.msra.mxu0 %v1457
    %2017 = vmatprep.subr.mxu0 %v1462
    %2018 = vmatpush1.msra.mxu0 %v1461
    %2019 = vmatprep.subr.mxu0 %v1466
    %2020 = vmatpush1.msra.mxu0 %v1465
    %2021 = vmatprep.subr.mxu0 %v1470
    %2022 = vmatpush1.msra.mxu0 %v1469
    %2023 = vmatprep.subr.mxu0 %v1474
    %2024 = vmatpush1.msra.mxu0 %v1473
    %2025 = vmatprep.subr.mxu0 %v1478
    %2026 = vmatpush1.msra.mxu0 %v1477
    %2027 = vmatprep.subr.mxu0 0.0
    %2028 = vmatpush1.msra.mxu0 0.0
    %2029 = vmatprep.subr.mxu0 0.0
    %2030 = vmatpush1.msra.mxu0 0.0
    %2031 = vmatprep.subr.mxu0 0.0
    %2032 = vmatpush1.msra.mxu0 0.0
    %2033 = vmatprep.subr.mxu0 0.0
    %2034 = vmatpush1.msra.mxu0 0.0
    %2035 = vmatprep.subr.mxu0 0.0
    %2036 = vmatpush1.msra.mxu0 0.0
    %2037 = vmatprep.subr.mxu0 0.0
    %2038 = vmatpush1.msra.mxu0 0.0
    %2039 = vmatprep.subr.mxu0 0.0
    %2040 = vmatpush1.msra.mxu0 0.0
    %2041 = vmatprep.subr.mxu0 0.0
    %2042 = vmatpush1.msra.mxu0 0.0
    %2043 = vmatprep.subr.mxu0 0.0
    %2044 = vmatpush1.msra.mxu0 0.0
    %2045 = vmatprep.subr.mxu0 0.0
    %2046 = vmatpush1.msra.mxu0 0.0
    %2047 = vmatprep.subr.mxu0 0.0
    %2048 = vmatpush1.msra.mxu0 0.0
    %2049 = vmatprep.subr.mxu0 0.0
    %2050 = vmatpush1.msra.mxu0 0.0
    %2051 = vmatprep.subr.mxu0 0.0
    %2052 = vmatpush1.msra.mxu0 0.0
    %2053 = vmatprep.subr.mxu0 0.0
    %2054 = vmatpush1.msra.mxu0 0.0
    %2055 = vmatprep.subr.mxu0 0.0
    %2056 = vmatpush1.msra.mxu0 0.0
    %2057 = vmatprep.subr.mxu0 0.0
    %2058 = vmatpush1.msra.mxu0 0.0
    %2059 = vmatprep.mubr.f32.mxu0 0.0
    %2060 = vmatmul.mubr.f32.gmra.mrb[0].mxu0 %v1819
    %v2061 = vpop.f32.mrb[0].mxu0
    %v2062 = vadd.f32 0.0, %v2061
    %v2063 = vpop.f32.mrb[0].mxu0
    %v2064 = vadd.f32 0.0, %v2063
    %2065 = vdwg.mxu0
    %2066 = vmatprep.subr.mxu0 %v1420
    %2067 = vmatpush1.msra.mxu0 %v1419
    %2068 = vmatprep.subr.mxu0 %v1424
    %2069 = vmatpush1.msra.mxu0 %v1423
    %2070 = vmatprep.subr.mxu0 %v1428
    %2071 = vmatpush1.msra.mxu0 %v1427
    %2072 = vmatprep.subr.mxu0 %v1432
    %2073 = vmatpush1.msra.mxu0 %v1431
    %2074 = vmatprep.subr.mxu0 %v1436
    %2075 = vmatpush1.msra.mxu0 %v1435
    %2076 = vmatprep.subr.mxu0 %v1440
    %2077 = vmatpush1.msra.mxu0 %v1439
    %2078 = vmatprep.subr.mxu0 %v1444
    %2079 = vmatpush1.msra.mxu0 %v1443
    %2080 = vmatprep.subr.mxu0 %v1448
    %2081 = vmatpush1.msra.mxu0 %v1447
    %2082 = vmatprep.subr.mxu0 %v1452
    %2083 = vmatpush1.msra.mxu0 %v1451
    %2084 = vmatprep.subr.mxu0 %v1456
    %2085 = vmatpush1.msra.mxu0 %v1455
    %2086 = vmatprep.subr.mxu0 %v1460
    %2087 = vmatpush1.msra.mxu0 %v1459
    %2088 = vmatprep.subr.mxu0 %v1464
    %2089 = vmatpush1.msra.mxu0 %v1463
    %2090 = vmatprep.subr.mxu0 %v1468
    %2091 = vmatpush1.msra.mxu0 %v1467
    %2092 = vmatprep.subr.mxu0 %v1472
    %2093 = vmatpush1.msra.mxu0 %v1471
    %2094 = vmatprep.subr.mxu0 %v1476
    %2095 = vmatpush1.msra.mxu0 %v1475
    %2096 = vmatprep.subr.mxu0 %v1480
    %2097 = vmatpush1.msra.mxu0 %v1479
    %2098 = vmatprep.subr.mxu0 0.0
    %2099 = vmatpush1.msra.mxu0 0.0
    %2100 = vmatprep.subr.mxu0 0.0
    %2101 = vmatpush1.msra.mxu0 0.0
    %2102 = vmatprep.subr.mxu0 0.0
    %2103 = vmatpush1.msra.mxu0 0.0
    %2104 = vmatprep.subr.mxu0 0.0
    %2105 = vmatpush1.msra.mxu0 0.0
    %2106 = vmatprep.subr.mxu0 0.0
    %2107 = vmatpush1.msra.mxu0 0.0
    %2108 = vmatprep.subr.mxu0 0.0
    %2109 = vmatpush1.msra.mxu0 0.0
    %2110 = vmatprep.subr.mxu0 0.0
    %2111 = vmatpush1.msra.mxu0 0.0
    %2112 = vmatprep.subr.mxu0 0.0
    %2113 = vmatpush1.msra.mxu0 0.0
    %2114 = vmatprep.subr.mxu0 0.0
    %2115 = vmatpush1.msra.mxu0 0.0
    %2116 = vmatprep.subr.mxu0 0.0
    %2117 = vmatpush1.msra.mxu0 0.0
    %2118 = vmatprep.subr.mxu0 0.0
    %2119 = vmatpush1.msra.mxu0 0.0
    %2120 = vmatprep.subr.mxu0 0.0
    %2121 = vmatpush1.msra.mxu0 0.0
    %2122 = vmatprep.subr.mxu0 0.0
    %2123 = vmatpush1.msra.mxu0 0.0
    %2124 = vmatprep.subr.mxu0 0.0
    %2125 = vmatpush1.msra.mxu0 0.0
    %2126 = vmatprep.subr.mxu0 0.0
    %2127 = vmatpush1.msra.mxu0 0.0
    %2128 = vmatprep.subr.mxu0 0.0
    %2129 = vmatpush1.msra.mxu0 0.0
    %2130 = vmatprep.mubr.f32.mxu0 0.0
    %2131 = vmatmul.mubr.f32.gmra.mrb[0].mxu0 %v1819
    %v2132 = vpop.f32.mrb[0].mxu0
    %v2133 = vadd.f32 0.0, %v2132
    %v2134 = vpop.f32.mrb[0].mxu0
    %v2135 = vadd.f32 0.0, %v2134
    %2136 = vdwg.mxu0
    %v2137 = vadd.f32 %v1908, %v2062
    %v2138 = vadd.f32 %v1910, %v2064
    %v2139 = vadd.f32 %v1985, %v2133
    %v2140 = vadd.f32 %v1987, %v2135
    %v2141 = vxor.u32 %v2137, 2147483648
    %v2142 = vxor.u32 %v2138, 2147483648
    %v2143 = vxor.u32 %v2139, 2147483648
    %v2144 = vmul.f32 %v2141, 1.442695
    %v2145 = vpow.pop %v2144
    %v2146 = vmul.f32 %v2142, 1.442695
    %v2147 = vpow.pop %v2146
    %v2148 = vmul.f32 %v2143, 1.442695
    %v2149 = vpow.pop %v2148
    %v2150 = vadd.f32 %v2145, 1.0
    %v2151 = vadd.f32 %v2147, 1.0
    %v2152 = vadd.f32 %v2149, 1.0
    %v2153 = vrcp.pop %v2150
    %v2154 = vmul.f32 1.0, %v2153
    %v2155 = vrcp.pop %v2151
    %v2156 = vmul.f32 1.0, %v2155
    %v2157 = vrcp.pop %v2152
    %v2158 = vmul.f32 1.0, %v2157
    %v2159 = vtanh.pop %v2140
    %v2160 = vmul.f32 %v2156, %v1817
    %v2161 = vmul.f32 %v2154, %v2159
    %v2162 = vadd.f32 %v2160, %v2161
    %v2163 = vtanh.pop %v2162
    %v2164 = vmul.f32 %v2158, %v2163
    %2165 = vmatprep.subr.mxu0 %v1418
    %2166 = vmatpush1.msra.mxu0 %v1417
    %2167 = vmatprep.subr.mxu0 %v1422
    %2168 = vmatpush1.msra.mxu0 %v1421
    %2169 = vmatprep.subr.mxu0 %v1426
    %2170 = vmatpush1.msra.mxu0 %v1425
    %2171 = vmatprep.subr.mxu0 %v1430
    %2172 = vmatpush1.msra.mxu0 %v1429
    %2173 = vmatprep.subr.mxu0 %v1434
    %2174 = vmatpush1.msra.mxu0 %v1433
    %2175 = vmatprep.subr.mxu0 %v1438
    %2176 = vmatpush1.msra.mxu0 %v1437
    %2177 = vmatprep.subr.mxu0 %v1442
    %2178 = vmatpush1.msra.mxu0 %v1441
    %2179 = vmatprep.subr.mxu0 %v1446
    %2180 = vmatpush1.msra.mxu0 %v1445
    %2181 = vmatprep.subr.mxu0 %v1450
    %2182 = vmatpush1.msra.mxu0 %v1449
    %2183 = vmatprep.subr.mxu0 %v1454
    %2184 = vmatpush1.msra.mxu0 %v1453
    %2185 = vmatprep.subr.mxu0 %v1458
    %2186 = vmatpush1.msra.mxu0 %v1457
    %2187 = vmatprep.subr.mxu0 %v1462
    %2188 = vmatpush1.msra.mxu0 %v1461
    %2189 = vmatprep.subr.mxu0 %v1466
    %2190 = vmatpush1.msra.mxu0 %v1465
    %2191 = vmatprep.subr.mxu0 %v1470
    %2192 = vmatpush1.msra.mxu0 %v1469
    %2193 = vmatprep.subr.mxu0 %v1474
    %2194 = vmatpush1.msra.mxu0 %v1473
    %2195 = vmatprep.subr.mxu0 %v1478
    %2196 = vmatpush1.msra.mxu0 %v1477
    %2197 = vmatprep.subr.mxu0 0.0
    %2198 = vmatpush1.msra.mxu0 0.0
    %2199 = vmatprep.subr.mxu0 0.0
    %2200 = vmatpush1.msra.mxu0 0.0
    %2201 = vmatprep.subr.mxu0 0.0
    %2202 = vmatpush1.msra.mxu0 0.0
    %2203 = vmatprep.subr.mxu0 0.0
    %2204 = vmatpush1.msra.mxu0 0.0
    %2205 = vmatprep.subr.mxu0 0.0
    %2206 = vmatpush1.msra.mxu0 0.0
    %2207 = vmatprep.subr.mxu0 0.0
    %2208 = vmatpush1.msra.mxu0 0.0
    %2209 = vmatprep.subr.mxu0 0.0
    %2210 = vmatpush1.msra.mxu0 0.0
    %2211 = vmatprep.subr.mxu0 0.0
    %2212 = vmatpush1.msra.mxu0 0.0
    %2213 = vmatprep.subr.mxu0 0.0
    %2214 = vmatpush1.msra.mxu0 0.0
    %2215 = vmatprep.subr.mxu0 0.0
    %2216 = vmatpush1.msra.mxu0 0.0
    %2217 = vmatprep.subr.mxu0 0.0
    %2218 = vmatpush1.msra.mxu0 0.0
    %2219 = vmatprep.subr.mxu0 0.0
    %2220 = vmatpush1.msra.mxu0 0.0
    %2221 = vmatprep.subr.mxu0 0.0
    %2222 = vmatpush1.msra.mxu0 0.0
    %2223 = vmatprep.subr.mxu0 0.0
    %2224 = vmatpush1.msra.mxu0 0.0
    %2225 = vmatprep.subr.mxu0 0.0
    %2226 = vmatpush1.msra.mxu0 0.0
    %2227 = vmatprep.subr.mxu0 0.0
    %2228 = vmatpush1.msra.mxu0 0.0
    %2229 = vmatprep.mubr.f32.mxu0 0.0
    %2230 = vmatmul.mubr.f32.gmra.mrb[0].mxu0 %v2164
    %v2231 = vpop.f32.mrb[0].mxu0
    %v2232 = vadd.f32 0.0, %v2231
    %v2233 = vpop.f32.mrb[0].mxu0
    %v2234 = vadd.f32 0.0, %v2233
    %2235 = vdwg.mxu0
    %2236 = vmatprep.subr.mxu0 %v1420
    %2237 = vmatpush1.msra.mxu0 %v1419
    %2238 = vmatprep.subr.mxu0 %v1424
    %2239 = vmatpush1.msra.mxu0 %v1423
    %2240 = vmatprep.subr.mxu0 %v1428
    %2241 = vmatpush1.msra.mxu0 %v1427
    %2242 = vmatprep.subr.mxu0 %v1432
    %2243 = vmatpush1.msra.mxu0 %v1431
    %2244 = vmatprep.subr.mxu0 %v1436
    %2245 = vmatpush1.msra.mxu0 %v1435
    %2246 = vmatprep.subr.mxu0 %v1440
    %2247 = vmatpush1.msra.mxu0 %v1439
    %2248 = vmatprep.subr.mxu0 %v1444
    %2249 = vmatpush1.msra.mxu0 %v1443
    %2250 = vmatprep.subr.mxu0 %v1448
    %2251 = vmatpush1.msra.mxu0 %v1447
    %2252 = vmatprep.subr.mxu0 %v1452
    %2253 = vmatpush1.msra.mxu0 %v1451
    %2254 = vmatprep.subr.mxu0 %v1456
    %2255 = vmatpush1.msra.mxu0 %v1455
    %2256 = vmatprep.subr.mxu0 %v1460
    %2257 = vmatpush1.msra.mxu0 %v1459
    %2258 = vmatprep.subr.mxu0 %v1464
    %2259 = vmatpush1.msra.mxu0 %v1463
    %2260 = vmatprep.subr.mxu0 %v1468
    %2261 = vmatpush1.msra.mxu0 %v1467
    %2262 = vmatprep.subr.mxu0 %v1472
    %2263 = vmatpush1.msra.mxu0 %v1471
    %2264 = vmatprep.subr.mxu0 %v1476
    %2265 = vmatpush1.msra.mxu0 %v1475
    %2266 = vmatprep.subr.mxu0 %v1480
    %2267 = vmatpush1.msra.mxu0 %v1479
    %2268 = vmatprep.subr.mxu0 0.0
    %2269 = vmatpush1.msra.mxu0 0.0
    %2270 = vmatprep.subr.mxu0 0.0
    %2271 = vmatpush1.msra.mxu0 0.0
    %2272 = vmatprep.subr.mxu0 0.0
    %2273 = vmatpush1.msra.mxu0 0.0
    %2274 = vmatprep.subr.mxu0 0.0
    %2275 = vmatpush1.msra.mxu0 0.0
    %2276 = vmatprep.subr.mxu0 0.0
    %2277 = vmatpush1.msra.mxu0 0.0
    %2278 = vmatprep.subr.mxu0 0.0
    %2279 = vmatpush1.msra.mxu0 0.0
    %2280 = vmatprep.subr.mxu0 0.0
    %2281 = vmatpush1.msra.mxu0 0.0
    %2282 = vmatprep.subr.mxu0 0.0
    %2283 = vmatpush1.msra.mxu0 0.0
    %2284 = vmatprep.subr.mxu0 0.0
    %2285 = vmatpush1.msra.mxu0 0.0
    %2286 = vmatprep.subr.mxu0 0.0
    %2287 = vmatpush1.msra.mxu0 0.0
    %2288 = vmatprep.subr.mxu0 0.0
    %2289 = vmatpush1.msra.mxu0 0.0
    %2290 = vmatprep.subr.mxu0 0.0
    %2291 = vmatpush1.msra.mxu0 0.0
    %2292 = vmatprep.subr.mxu0 0.0
    %2293 = vmatpush1.msra.mxu0 0.0
    %2294 = vmatprep.subr.mxu0 0.0
    %2295 = vmatpush1.msra.mxu0 0.0
    %2296 = vmatprep.subr.mxu0 0.0
    %2297 = vmatpush1.msra.mxu0 0.0
    %2298 = vmatprep.subr.mxu0 0.0
    %2299 = vmatpush1.msra.mxu0 0.0
    %2300 = vmatprep.mubr.f32.mxu0 0.0
    %2301 = vmatmul.mubr.f32.gmra.mrb[0].mxu0 %v2164
    %v2302 = vpop.f32.mrb[0].mxu0
    %v2303 = vadd.f32 0.0, %v2302
    %v2304 = vpop.f32.mrb[0].mxu0
    %v2305 = vadd.f32 0.0, %v2304
    %2306 = vdwg.mxu0
    %v2311 = vrot.slane %v2232, 6
    %v2312 = vrot.slane %v2234, 6
    %v2313 = vrot.slane %v2303, 6
    %v2314 = vrot.slane %v2305, 6
    %v2319 = vadd.f32 %v1908, %v2311
    %v2320 = vadd.f32 %v1910, %v2312
    %v2321 = vadd.f32 %v1985, %v2313
    %v2322 = vadd.f32 %v1987, %v2314
    %v2323 = vxor.u32 %v2319, 2147483648
    %v2324 = vxor.u32 %v2320, 2147483648
    %v2325 = vxor.u32 %v2321, 2147483648
    %v2326 = vmul.f32 %v2323, 1.442695
    %v2327 = vpow.pop %v2326
    %v2328 = vmul.f32 %v2324, 1.442695
    %v2329 = vpow.pop %v2328
    %v2330 = vmul.f32 %v2325, 1.442695
    %v2331 = vpow.pop %v2330
    %v2332 = vadd.f32 %v2327, 1.0
    %v2333 = vadd.f32 %v2329, 1.0
    %v2334 = vadd.f32 %v2331, 1.0
    %v2335 = vrcp.pop %v2332
    %v2336 = vmul.f32 1.0, %v2335
    %v2337 = vrcp.pop %v2333
    %v2338 = vmul.f32 1.0, %v2337
    %v2339 = vrcp.pop %v2334
    %v2340 = vmul.f32 1.0, %v2339
    %v2341 = vtanh.pop %v2322
    %v2343 = vrot.slane %v2162, 6
    %v2345 = vmul.f32 %v2338, %v2343
    %v2346 = vmul.f32 %v2336, %v2341
    %v2347 = vadd.f32 %v2345, %v2346
    %v2348 = vtanh.pop %v2347
    %v2349 = vmul.f32 %v2340, %v2348
    %v2351 = vrot.slane %v2349, 2
    %2353 = vmatprep.subr.mxu0 %v1418
    %2354 = vmatpush1.msra.mxu0 %v1417
    %2355 = vmatprep.subr.mxu0 %v1422
    %2356 = vmatpush1.msra.mxu0 %v1421
    %2357 = vmatprep.subr.mxu0 %v1426
    %2358 = vmatpush1.msra.mxu0 %v1425
    %2359 = vmatprep.subr.mxu0 %v1430
    %2360 = vmatpush1.msra.mxu0 %v1429
    %2361 = vmatprep.subr.mxu0 %v1434
    %2362 = vmatpush1.msra.mxu0 %v1433
    %2363 = vmatprep.subr.mxu0 %v1438
    %2364 = vmatpush1.msra.mxu0 %v1437
    %2365 = vmatprep.subr.mxu0 %v1442
    %2366 = vmatpush1.msra.mxu0 %v1441
    %2367 = vmatprep.subr.mxu0 %v1446
    %2368 = vmatpush1.msra.mxu0 %v1445
    %2369 = vmatprep.subr.mxu0 %v1450
    %2370 = vmatpush1.msra.mxu0 %v1449
    %2371 = vmatprep.subr.mxu0 %v1454
    %2372 = vmatpush1.msra.mxu0 %v1453
    %2373 = vmatprep.subr.mxu0 %v1458
    %2374 = vmatpush1.msra.mxu0 %v1457
    %2375 = vmatprep.subr.mxu0 %v1462
    %2376 = vmatpush1.msra.mxu0 %v1461
    %2377 = vmatprep.subr.mxu0 %v1466
    %2378 = vmatpush1.msra.mxu0 %v1465
    %2379 = vmatprep.subr.mxu0 %v1470
    %2380 = vmatpush1.msra.mxu0 %v1469
    %2381 = vmatprep.subr.mxu0 %v1474
    %2382 = vmatpush1.msra.mxu0 %v1473
    %2383 = vmatprep.subr.mxu0 %v1478
    %2384 = vmatpush1.msra.mxu0 %v1477
    %2385 = vmatprep.subr.mxu0 0.0
    %2386 = vmatpush1.msra.mxu0 0.0
    %2387 = vmatprep.subr.mxu0 0.0
    %2388 = vmatpush1.msra.mxu0 0.0
    %2389 = vmatprep.subr.mxu0 0.0
    %2390 = vmatpush1.msra.mxu0 0.0
    %2391 = vmatprep.subr.mxu0 0.0
    %2392 = vmatpush1.msra.mxu0 0.0
    %2393 = vmatprep.subr.mxu0 0.0
    %2394 = vmatpush1.msra.mxu0 0.0
    %2395 = vmatprep.subr.mxu0 0.0
    %2396 = vmatpush1.msra.mxu0 0.0
    %2397 = vmatprep.subr.mxu0 0.0
    %2398 = vmatpush1.msra.mxu0 0.0
    %2399 = vmatprep.subr.mxu0 0.0
    %2400 = vmatpush1.msra.mxu0 0.0
    %2401 = vmatprep.subr.mxu0 0.0
    %2402 = vmatpush1.msra.mxu0 0.0
    %2403 = vmatprep.subr.mxu0 0.0
    %2404 = vmatpush1.msra.mxu0 0.0
    %2405 = vmatprep.subr.mxu0 0.0
    %2406 = vmatpush1.msra.mxu0 0.0
    %2407 = vmatprep.subr.mxu0 0.0
    %2408 = vmatpush1.msra.mxu0 0.0
    %2409 = vmatprep.subr.mxu0 0.0
    %2410 = vmatpush1.msra.mxu0 0.0
    %2411 = vmatprep.subr.mxu0 0.0
    %2412 = vmatpush1.msra.mxu0 0.0
    %2413 = vmatprep.subr.mxu0 0.0
    %2414 = vmatpush1.msra.mxu0 0.0
    %2415 = vmatprep.subr.mxu0 0.0
    %2416 = vmatpush1.msra.mxu0 0.0
    %2417 = vmatprep.mubr.f32.mxu0 0.0
    %2418 = vmatmul.mubr.f32.gmra.mrb[0].mxu0 %v2351
    %v2419 = vpop.f32.mrb[0].mxu0
    %v2420 = vadd.f32 0.0, %v2419
    %v2421 = vpop.f32.mrb[0].mxu0
    %v2422 = vadd.f32 0.0, %v2421
    %2423 = vdwg.mxu0
    %2424 = vmatprep.subr.mxu0 %v1420
    %2425 = vmatpush1.msra.mxu0 %v1419
    %2426 = vmatprep.subr.mxu0 %v1424
    %2427 = vmatpush1.msra.mxu0 %v1423
    %2428 = vmatprep.subr.mxu0 %v1428
    %2429 = vmatpush1.msra.mxu0 %v1427
    %2430 = vmatprep.subr.mxu0 %v1432
    %2431 = vmatpush1.msra.mxu0 %v1431
    %2432 = vmatprep.subr.mxu0 %v1436
    %2433 = vmatpush1.msra.mxu0 %v1435
    %2434 = vmatprep.subr.mxu0 %v1440
    %2435 = vmatpush1.msra.mxu0 %v1439
    %2436 = vmatprep.subr.mxu0 %v1444
    %2437 = vmatpush1.msra.mxu0 %v1443
    %2438 = vmatprep.subr.mxu0 %v1448
    %2439 = vmatpush1.msra.mxu0 %v1447
    %2440 = vmatprep.subr.mxu0 %v1452
    %2441 = vmatpush1.msra.mxu0 %v1451
    %2442 = vmatprep.subr.mxu0 %v1456
    %2443 = vmatpush1.msra.mxu0 %v1455
    %2444 = vmatprep.subr.mxu0 %v1460
    %2445 = vmatpush1.msra.mxu0 %v1459
    %2446 = vmatprep.subr.mxu0 %v1464
    %2447 = vmatpush1.msra.mxu0 %v1463
    %2448 = vmatprep.subr.mxu0 %v1468
    %2449 = vmatpush1.msra.mxu0 %v1467
    %2450 = vmatprep.subr.mxu0 %v1472
    %2451 = vmatpush1.msra.mxu0 %v1471
    %2452 = vmatprep.subr.mxu0 %v1476
    %2453 = vmatpush1.msra.mxu0 %v1475
    %2454 = vmatprep.subr.mxu0 %v1480
    %2455 = vmatpush1.msra.mxu0 %v1479
    %2456 = vmatprep.subr.mxu0 0.0
    %2457 = vmatpush1.msra.mxu0 0.0
    %2458 = vmatprep.subr.mxu0 0.0
    %2459 = vmatpush1.msra.mxu0 0.0
    %2460 = vmatprep.subr.mxu0 0.0
    %2461 = vmatpush1.msra.mxu0 0.0
    %2462 = vmatprep.subr.mxu0 0.0
    %2463 = vmatpush1.msra.mxu0 0.0
    %2464 = vmatprep.subr.mxu0 0.0
    %2465 = vmatpush1.msra.mxu0 0.0
    %2466 = vmatprep.subr.mxu0 0.0
    %2467 = vmatpush1.msra.mxu0 0.0
    %2468 = vmatprep.subr.mxu0 0.0
    %2469 = vmatpush1.msra.mxu0 0.0
    %2470 = vmatprep.subr.mxu0 0.0
    %2471 = vmatpush1.msra.mxu0 0.0
    %2472 = vmatprep.subr.mxu0 0.0
    %2473 = vmatpush1.msra.mxu0 0.0
    %2474 = vmatprep.subr.mxu0 0.0
    %2475 = vmatpush1.msra.mxu0 0.0
    %2476 = vmatprep.subr.mxu0 0.0
    %2477 = vmatpush1.msra.mxu0 0.0
    %2478 = vmatprep.subr.mxu0 0.0
    %2479 = vmatpush1.msra.mxu0 0.0
    %2480 = vmatprep.subr.mxu0 0.0
    %2481 = vmatpush1.msra.mxu0 0.0
    %2482 = vmatprep.subr.mxu0 0.0
    %2483 = vmatpush1.msra.mxu0 0.0
    %2484 = vmatprep.subr.mxu0 0.0
    %2485 = vmatpush1.msra.mxu0 0.0
    %2486 = vmatprep.subr.mxu0 0.0
    %2487 = vmatpush1.msra.mxu0 0.0
    %2488 = vmatprep.mubr.f32.mxu0 0.0
    %2489 = vmatmul.mubr.f32.gmra.mrb[0].mxu0 %v2351
    %v2490 = vpop.f32.mrb[0].mxu0
    %v2491 = vadd.f32 0.0, %v2490
    %v2492 = vpop.f32.mrb[0].mxu0
    %v2493 = vadd.f32 0.0, %v2492
    %2494 = vdwg.mxu0
    %v2499 = vrot.slane %v2420, 4
    %v2500 = vrot.slane %v2422, 4
    %v2501 = vrot.slane %v2491, 4
    %v2502 = vrot.slane %v2493, 4
    %v2507 = vadd.f32 %v1908, %v2499
    %v2508 = vadd.f32 %v1910, %v2500
    %v2509 = vadd.f32 %v1985, %v2501
    %v2510 = vadd.f32 %v1987, %v2502
    %v2511 = vxor.u32 %v2507, 2147483648
    %v2512 = vxor.u32 %v2508, 2147483648
    %v2513 = vxor.u32 %v2509, 2147483648
    %v2514 = vmul.f32 %v2511, 1.442695
    %v2515 = vpow.pop %v2514
    %v2516 = vmul.f32 %v2512, 1.442695
    %v2517 = vpow.pop %v2516
    %v2518 = vmul.f32 %v2513, 1.442695
    %v2519 = vpow.pop %v2518
    %v2520 = vadd.f32 %v2515, 1.0
    %v2521 = vadd.f32 %v2517, 1.0
    %v2522 = vadd.f32 %v2519, 1.0
    %v2523 = vrcp.pop %v2520
    %v2524 = vmul.f32 1.0, %v2523
    %v2525 = vrcp.pop %v2521
    %v2526 = vmul.f32 1.0, %v2525
    %v2527 = vrcp.pop %v2522
    %v2528 = vmul.f32 1.0, %v2527
    %v2529 = vtanh.pop %v2510
    %v2531 = vrot.slane %v2347, 6
    %v2533 = vmul.f32 %v2526, %v2531
    %v2534 = vmul.f32 %v2524, %v2529
    %v2535 = vadd.f32 %v2533, %v2534
    %v2536 = vtanh.pop %v2535
    %v2537 = vmul.f32 %v2528, %v2536
    %v2539 = vrot.slane %v2537, 4
    %2541 = vmatprep.subr.mxu0 %v1418
    %2542 = vmatpush1.msra.mxu0 %v1417
    %2543 = vmatprep.subr.mxu0 %v1422
    %2544 = vmatpush1.msra.mxu0 %v1421
    %2545 = vmatprep.subr.mxu0 %v1426
    %2546 = vmatpush1.msra.mxu0 %v1425
    %2547 = vmatprep.subr.mxu0 %v1430
    %2548 = vmatpush1.msra.mxu0 %v1429
    %2549 = vmatprep.subr.mxu0 %v1434
    %2550 = vmatpush1.msra.mxu0 %v1433
    %2551 = vmatprep.subr.mxu0 %v1438
    %2552 = vmatpush1.msra.mxu0 %v1437
    %2553 = vmatprep.subr.mxu0 %v1442
    %2554 = vmatpush1.msra.mxu0 %v1441
    %2555 = vmatprep.subr.mxu0 %v1446
    %2556 = vmatpush1.msra.mxu0 %v1445
    %2557 = vmatprep.subr.mxu0 %v1450
    %2558 = vmatpush1.msra.mxu0 %v1449
    %2559 = vmatprep.subr.mxu0 %v1454
    %2560 = vmatpush1.msra.mxu0 %v1453
    %2561 = vmatprep.subr.mxu0 %v1458
    %2562 = vmatpush1.msra.mxu0 %v1457
    %2563 = vmatprep.subr.mxu0 %v1462
    %2564 = vmatpush1.msra.mxu0 %v1461
    %2565 = vmatprep.subr.mxu0 %v1466
    %2566 = vmatpush1.msra.mxu0 %v1465
    %2567 = vmatprep.subr.mxu0 %v1470
    %2568 = vmatpush1.msra.mxu0 %v1469
    %2569 = vmatprep.subr.mxu0 %v1474
    %2570 = vmatpush1.msra.mxu0 %v1473
    %2571 = vmatprep.subr.mxu0 %v1478
    %2572 = vmatpush1.msra.mxu0 %v1477
    %2573 = vmatprep.subr.mxu0 0.0
    %2574 = vmatpush1.msra.mxu0 0.0
    %2575 = vmatprep.subr.mxu0 0.0
    %2576 = vmatpush1.msra.mxu0 0.0
    %2577 = vmatprep.subr.mxu0 0.0
    %2578 = vmatpush1.msra.mxu0 0.0
    %2579 = vmatprep.subr.mxu0 0.0
    %2580 = vmatpush1.msra.mxu0 0.0
    %2581 = vmatprep.subr.mxu0 0.0
    %2582 = vmatpush1.msra.mxu0 0.0
    %2583 = vmatprep.subr.mxu0 0.0
    %2584 = vmatpush1.msra.mxu0 0.0
    %2585 = vmatprep.subr.mxu0 0.0
    %2586 = vmatpush1.msra.mxu0 0.0
    %2587 = vmatprep.subr.mxu0 0.0
    %2588 = vmatpush1.msra.mxu0 0.0
    %2589 = vmatprep.subr.mxu0 0.0
    %2590 = vmatpush1.msra.mxu0 0.0
    %2591 = vmatprep.subr.mxu0 0.0
    %2592 = vmatpush1.msra.mxu0 0.0
    %2593 = vmatprep.subr.mxu0 0.0
    %2594 = vmatpush1.msra.mxu0 0.0
    %2595 = vmatprep.subr.mxu0 0.0
    %2596 = vmatpush1.msra.mxu0 0.0
    %2597 = vmatprep.subr.mxu0 0.0
    %2598 = vmatpush1.msra.mxu0 0.0
    %2599 = vmatprep.subr.mxu0 0.0
    %2600 = vmatpush1.msra.mxu0 0.0
    %2601 = vmatprep.subr.mxu0 0.0
    %2602 = vmatpush1.msra.mxu0 0.0
    %2603 = vmatprep.subr.mxu0 0.0
    %2604 = vmatpush1.msra.mxu0 0.0
    %2605 = vmatprep.mubr.f32.mxu0 0.0
    %2606 = vmatmul.mubr.f32.gmra.mrb[0].mxu0 %v2539
    %v2607 = vpop.f32.mrb[0].mxu0
    %v2608 = vadd.f32 0.0, %v2607
    %v2609 = vpop.f32.mrb[0].mxu0
    %v2610 = vadd.f32 0.0, %v2609
    %2611 = vdwg.mxu0
    %2612 = vmatprep.subr.mxu0 %v1420
    %2613 = vmatpush1.msra.mxu0 %v1419
    %2614 = vmatprep.subr.mxu0 %v1424
    %2615 = vmatpush1.msra.mxu0 %v1423
    %2616 = vmatprep.subr.mxu0 %v1428
    %2617 = vmatpush1.msra.mxu0 %v1427
    %2618 = vmatprep.subr.mxu0 %v1432
    %2619 = vmatpush1.msra.mxu0 %v1431
    %2620 = vmatprep.subr.mxu0 %v1436
    %2621 = vmatpush1.msra.mxu0 %v1435
    %2622 = vmatprep.subr.mxu0 %v1440
    %2623 = vmatpush1.msra.mxu0 %v1439
    %2624 = vmatprep.subr.mxu0 %v1444
    %2625 = vmatpush1.msra.mxu0 %v1443
    %2626 = vmatprep.subr.mxu0 %v1448
    %2627 = vmatpush1.msra.mxu0 %v1447
    %2628 = vmatprep.subr.mxu0 %v1452
    %2629 = vmatpush1.msra.mxu0 %v1451
    %2630 = vmatprep.subr.mxu0 %v1456
    %2631 = vmatpush1.msra.mxu0 %v1455
    %2632 = vmatprep.subr.mxu0 %v1460
    %2633 = vmatpush1.msra.mxu0 %v1459
    %2634 = vmatprep.subr.mxu0 %v1464
    %2635 = vmatpush1.msra.mxu0 %v1463
    %2636 = vmatprep.subr.mxu0 %v1468
    %2637 = vmatpush1.msra.mxu0 %v1467
    %2638 = vmatprep.subr.mxu0 %v1472
    %2639 = vmatpush1.msra.mxu0 %v1471
    %2640 = vmatprep.subr.mxu0 %v1476
    %2641 = vmatpush1.msra.mxu0 %v1475
    %2642 = vmatprep.subr.mxu0 %v1480
    %2643 = vmatpush1.msra.mxu0 %v1479
    %2644 = vmatprep.subr.mxu0 0.0
    %2645 = vmatpush1.msra.mxu0 0.0
    %2646 = vmatprep.subr.mxu0 0.0
    %2647 = vmatpush1.msra.mxu0 0.0
    %2648 = vmatprep.subr.mxu0 0.0
    %2649 = vmatpush1.msra.mxu0 0.0
    %2650 = vmatprep.subr.mxu0 0.0
    %2651 = vmatpush1.msra.mxu0 0.0
    %2652 = vmatprep.subr.mxu0 0.0
    %2653 = vmatpush1.msra.mxu0 0.0
    %2654 = vmatprep.subr.mxu0 0.0
    %2655 = vmatpush1.msra.mxu0 0.0
    %2656 = vmatprep.subr.mxu0 0.0
    %2657 = vmatpush1.msra.mxu0 0.0
    %2658 = vmatprep.subr.mxu0 0.0
    %2659 = vmatpush1.msra.mxu0 0.0
    %2660 = vmatprep.subr.mxu0 0.0
    %2661 = vmatpush1.msra.mxu0 0.0
    %2662 = vmatprep.subr.mxu0 0.0
    %2663 = vmatpush1.msra.mxu0 0.0
    %2664 = vmatprep.subr.mxu0 0.0
    %2665 = vmatpush1.msra.mxu0 0.0
    %2666 = vmatprep.subr.mxu0 0.0
    %2667 = vmatpush1.msra.mxu0 0.0
    %2668 = vmatprep.subr.mxu0 0.0
    %2669 = vmatpush1.msra.mxu0 0.0
    %2670 = vmatprep.subr.mxu0 0.0
    %2671 = vmatpush1.msra.mxu0 0.0
    %2672 = vmatprep.subr.mxu0 0.0
    %2673 = vmatpush1.msra.mxu0 0.0
    %2674 = vmatprep.subr.mxu0 0.0
    %2675 = vmatpush1.msra.mxu0 0.0
    %2676 = vmatprep.mubr.f32.mxu0 0.0
    %2677 = vmatmul.mubr.f32.gmra.mrb[0].mxu0 %v2539
    %v2678 = vpop.f32.mrb[0].mxu0
    %v2679 = vadd.f32 0.0, %v2678
    %v2680 = vpop.f32.mrb[0].mxu0
    %v2681 = vadd.f32 0.0, %v2680
    %2682 = vdwg.mxu0
    %v2687 = vrot.slane %v2608, 2
    %v2688 = vrot.slane %v2610, 2
    %v2689 = vrot.slane %v2679, 2
    %v2690 = vrot.slane %v2681, 2
    %v2695 = vadd.f32 %v1908, %v2687
    %v2696 = vadd.f32 %v1910, %v2688
    %v2697 = vadd.f32 %v1985, %v2689
    %v2698 = vadd.f32 %v1987, %v2690
    %v2699 = vxor.u32 %v2695, 2147483648
    %v2700 = vxor.u32 %v2696, 2147483648
    %v2701 = vxor.u32 %v2697, 2147483648
    %v2702 = vmul.f32 %v2699, 1.442695
    %v2703 = vpow.pop %v2702
    %v2704 = vmul.f32 %v2700, 1.442695
    %v2705 = vpow.pop %v2704
    %v2706 = vmul.f32 %v2701, 1.442695
    %v2707 = vpow.pop %v2706
    %v2708 = vadd.f32 %v2703, 1.0
    %v2709 = vadd.f32 %v2705, 1.0
    %v2710 = vadd.f32 %v2707, 1.0
    %v2711 = vrcp.pop %v2708
    %v2712 = vmul.f32 1.0, %v2711
    %v2713 = vrcp.pop %v2709
    %v2714 = vmul.f32 1.0, %v2713
    %v2715 = vrcp.pop %v2710
    %v2716 = vmul.f32 1.0, %v2715
    %v2717 = vtanh.pop %v2698
    %v2719 = vrot.slane %v2535, 6
    %v2721 = vmul.f32 %v2714, %v2719
    %v2722 = vmul.f32 %v2712, %v2717
    %v2723 = vadd.f32 %v2721, %v2722
    %v2724 = vtanh.pop %v2723
    %v2725 = vmul.f32 %v2716, %v2724
    %v2727 = vrot.slane %v2725, 6
    %2729 = vmatprep.subr.mxu0 %v1418
    %2730 = vmatpush1.msra.mxu0 %v1417
    %2731 = vmatprep.subr.mxu0 %v1422
    %2732 = vmatpush1.msra.mxu0 %v1421
    %2733 = vmatprep.subr.mxu0 %v1426
    %2734 = vmatpush1.msra.mxu0 %v1425
    %2735 = vmatprep.subr.mxu0 %v1430
    %2736 = vmatpush1.msra.mxu0 %v1429
    %2737 = vmatprep.subr.mxu0 %v1434
    %2738 = vmatpush1.msra.mxu0 %v1433
    %2739 = vmatprep.subr.mxu0 %v1438
    %2740 = vmatpush1.msra.mxu0 %v1437
    %2741 = vmatprep.subr.mxu0 %v1442
    %2742 = vmatpush1.msra.mxu0 %v1441
    %2743 = vmatprep.subr.mxu0 %v1446
    %2744 = vmatpush1.msra.mxu0 %v1445
    %2745 = vmatprep.subr.mxu0 %v1450
    %2746 = vmatpush1.msra.mxu0 %v1449
    %2747 = vmatprep.subr.mxu0 %v1454
    %2748 = vmatpush1.msra.mxu0 %v1453
    %2749 = vmatprep.subr.mxu0 %v1458
    %2750 = vmatpush1.msra.mxu0 %v1457
    %2751 = vmatprep.subr.mxu0 %v1462
    %2752 = vmatpush1.msra.mxu0 %v1461
    %2753 = vmatprep.subr.mxu0 %v1466
    %2754 = vmatpush1.msra.mxu0 %v1465
    %2755 = vmatprep.subr.mxu0 %v1470
    %2756 = vmatpush1.msra.mxu0 %v1469
    %2757 = vmatprep.subr.mxu0 %v1474
    %2758 = vmatpush1.msra.mxu0 %v1473
    %2759 = vmatprep.subr.mxu0 %v1478
    %2760 = vmatpush1.msra.mxu0 %v1477
    %2761 = vmatprep.subr.mxu0 0.0
    %2762 = vmatpush1.msra.mxu0 0.0
    %2763 = vmatprep.subr.mxu0 0.0
    %2764 = vmatpush1.msra.mxu0 0.0
    %2765 = vmatprep.subr.mxu0 0.0
    %2766 = vmatpush1.msra.mxu0 0.0
    %2767 = vmatprep.subr.mxu0 0.0
    %2768 = vmatpush1.msra.mxu0 0.0
    %2769 = vmatprep.subr.mxu0 0.0
    %2770 = vmatpush1.msra.mxu0 0.0
    %2771 = vmatprep.subr.mxu0 0.0
    %2772 = vmatpush1.msra.mxu0 0.0
    %2773 = vmatprep.subr.mxu0 0.0
    %2774 = vmatpush1.msra.mxu0 0.0
    %2775 = vmatprep.subr.mxu0 0.0
    %2776 = vmatpush1.msra.mxu0 0.0
    %2777 = vmatprep.subr.mxu0 0.0
    %2778 = vmatpush1.msra.mxu0 0.0
    %2779 = vmatprep.subr.mxu0 0.0
    %2780 = vmatpush1.msra.mxu0 0.0
    %2781 = vmatprep.subr.mxu0 0.0
    %2782 = vmatpush1.msra.mxu0 0.0
    %2783 = vmatprep.subr.mxu0 0.0
    %2784 = vmatpush1.msra.mxu0 0.0
    %2785 = vmatprep.subr.mxu0 0.0
    %2786 = vmatpush1.msra.mxu0 0.0
    %2787 = vmatprep.subr.mxu0 0.0
    %2788 = vmatpush1.msra.mxu0 0.0
    %2789 = vmatprep.subr.mxu0 0.0
    %2790 = vmatpush1.msra.mxu0 0.0
    %2791 = vmatprep.subr.mxu0 0.0
    %2792 = vmatpush1.msra.mxu0 0.0
    %2793 = vmatprep.mubr.f32.mxu0 0.0
    %2794 = vmatmul.mubr.f32.gmra.mrb[0].mxu0 %v2727
    %v2795 = vpop.f32.mrb[0].mxu0
    %v2796 = vadd.f32 0.0, %v2795
    %v2797 = vpop.f32.mrb[0].mxu0
    %v2798 = vadd.f32 0.0, %v2797
    %2799 = vdwg.mxu0
    %2800 = vmatprep.subr.mxu0 %v1420
    %2801 = vmatpush1.msra.mxu0 %v1419
    %2802 = vmatprep.subr.mxu0 %v1424
    %2803 = vmatpush1.msra.mxu0 %v1423
    %2804 = vmatprep.subr.mxu0 %v1428
    %2805 = vmatpush1.msra.mxu0 %v1427
    %2806 = vmatprep.subr.mxu0 %v1432
    %2807 = vmatpush1.msra.mxu0 %v1431
    %2808 = vmatprep.subr.mxu0 %v1436
    %2809 = vmatpush1.msra.mxu0 %v1435
    %2810 = vmatprep.subr.mxu0 %v1440
    %2811 = vmatpush1.msra.mxu0 %v1439
    %2812 = vmatprep.subr.mxu0 %v1444
    %2813 = vmatpush1.msra.mxu0 %v1443
    %2814 = vmatprep.subr.mxu0 %v1448
    %2815 = vmatpush1.msra.mxu0 %v1447
    %2816 = vmatprep.subr.mxu0 %v1452
    %2817 = vmatpush1.msra.mxu0 %v1451
    %2818 = vmatprep.subr.mxu0 %v1456
    %2819 = vmatpush1.msra.mxu0 %v1455
    %2820 = vmatprep.subr.mxu0 %v1460
    %2821 = vmatpush1.msra.mxu0 %v1459
    %2822 = vmatprep.subr.mxu0 %v1464
    %2823 = vmatpush1.msra.mxu0 %v1463
    %2824 = vmatprep.subr.mxu0 %v1468
    %2825 = vmatpush1.msra.mxu0 %v1467
    %2826 = vmatprep.subr.mxu0 %v1472
    %2827 = vmatpush1.msra.mxu0 %v1471
    %2828 = vmatprep.subr.mxu0 %v1476
    %2829 = vmatpush1.msra.mxu0 %v1475
    %2830 = vmatprep.subr.mxu0 %v1480
    %2831 = vmatpush1.msra.mxu0 %v1479
    %2832 = vmatprep.subr.mxu0 0.0
    %2833 = vmatpush1.msra.mxu0 0.0
    %2834 = vmatprep.subr.mxu0 0.0
    %2835 = vmatpush1.msra.mxu0 0.0
    %2836 = vmatprep.subr.mxu0 0.0
    %2837 = vmatpush1.msra.mxu0 0.0
    %2838 = vmatprep.subr.mxu0 0.0
    %2839 = vmatpush1.msra.mxu0 0.0
    %2840 = vmatprep.subr.mxu0 0.0
    %2841 = vmatpush1.msra.mxu0 0.0
    %2842 = vmatprep.subr.mxu0 0.0
    %2843 = vmatpush1.msra.mxu0 0.0
    %2844 = vmatprep.subr.mxu0 0.0
    %2845 = vmatpush1.msra.mxu0 0.0
    %2846 = vmatprep.subr.mxu0 0.0
    %2847 = vmatpush1.msra.mxu0 0.0
    %2848 = vmatprep.subr.mxu0 0.0
    %2849 = vmatpush1.msra.mxu0 0.0
    %2850 = vmatprep.subr.mxu0 0.0
    %2851 = vmatpush1.msra.mxu0 0.0
    %2852 = vmatprep.subr.mxu0 0.0
    %2853 = vmatpush1.msra.mxu0 0.0
    %2854 = vmatprep.subr.mxu0 0.0
    %2855 = vmatpush1.msra.mxu0 0.0
    %2856 = vmatprep.subr.mxu0 0.0
    %2857 = vmatpush1.msra.mxu0 0.0
    %2858 = vmatprep.subr.mxu0 0.0
    %2859 = vmatpush1.msra.mxu0 0.0
    %2860 = vmatprep.subr.mxu0 0.0
    %2861 = vmatpush1.msra.mxu0 0.0
    %2862 = vmatprep.subr.mxu0 0.0
    %2863 = vmatpush1.msra.mxu0 0.0
    %2864 = vmatprep.mubr.f32.mxu0 0.0
    %2865 = vmatmul.mubr.f32.gmra.mrb[0].mxu0 %v2727
    %v2866 = vpop.f32.mrb[0].mxu0
    %v2867 = vadd.f32 0.0, %v2866
    %v2868 = vpop.f32.mrb[0].mxu0
    %v2869 = vadd.f32 0.0, %v2868
    %2870 = vdwg.mxu0
    %v2871 = vadd.f32 %v1914, %v2796
    %v2872 = vadd.f32 %v1916, %v2798
    %v2873 = vadd.f32 %v1991, %v2867
    %v2874 = vadd.f32 %v1993, %v2869
    %v2875 = vxor.u32 %v2871, 2147483648
    %v2876 = vxor.u32 %v2872, 2147483648
    %v2877 = vxor.u32 %v2873, 2147483648
    %v2878 = vmul.f32 %v2875, 1.442695
    %v2879 = vpow.pop %v2878
    %v2880 = vmul.f32 %v2876, 1.442695
    %v2881 = vpow.pop %v2880
    %v2882 = vmul.f32 %v2877, 1.442695
    %v2883 = vpow.pop %v2882
    %v2884 = vadd.f32 %v2879, 1.0
    %v2885 = vadd.f32 %v2881, 1.0
    %v2886 = vadd.f32 %v2883, 1.0
    %v2887 = vrcp.pop %v2884
    %v2888 = vmul.f32 1.0, %v2887
    %v2889 = vrcp.pop %v2885
    %v2890 = vmul.f32 1.0, %v2889
    %v2891 = vrcp.pop %v2886
    %v2892 = vmul.f32 1.0, %v2891
    %v2893 = vtanh.pop %v2874
    %v2895 = vrot.slane %v2723, 6
    %v2897 = vmul.f32 %v2890, %v2895
    %v2898 = vmul.f32 %v2888, %v2893
    %v2899 = vadd.f32 %v2897, %v2898
    %v2900 = vtanh.pop %v2899
    %v2901 = vmul.f32 %v2892, %v2900
    %2902 = vmatprep.subr.mxu0 %v1418
    %2903 = vmatpush1.msra.mxu0 %v1417
    %2904 = vmatprep.subr.mxu0 %v1422
    %2905 = vmatpush1.msra.mxu0 %v1421
    %2906 = vmatprep.subr.mxu0 %v1426
    %2907 = vmatpush1.msra.mxu0 %v1425
    %2908 = vmatprep.subr.mxu0 %v1430
    %2909 = vmatpush1.msra.mxu0 %v1429
    %2910 = vmatprep.subr.mxu0 %v1434
    %2911 = vmatpush1.msra.mxu0 %v1433
    %2912 = vmatprep.subr.mxu0 %v1438
    %2913 = vmatpush1.msra.mxu0 %v1437
    %2914 = vmatprep.subr.mxu0 %v1442
    %2915 = vmatpush1.msra.mxu0 %v1441
    %2916 = vmatprep.subr.mxu0 %v1446
    %2917 = vmatpush1.msra.mxu0 %v1445
    %2918 = vmatprep.subr.mxu0 %v1450
    %2919 = vmatpush1.msra.mxu0 %v1449
    %2920 = vmatprep.subr.mxu0 %v1454
    %2921 = vmatpush1.msra.mxu0 %v1453
    %2922 = vmatprep.subr.mxu0 %v1458
    %2923 = vmatpush1.msra.mxu0 %v1457
    %2924 = vmatprep.subr.mxu0 %v1462
    %2925 = vmatpush1.msra.mxu0 %v1461
    %2926 = vmatprep.subr.mxu0 %v1466
    %2927 = vmatpush1.msra.mxu0 %v1465
    %2928 = vmatprep.subr.mxu0 %v1470
    %2929 = vmatpush1.msra.mxu0 %v1469
    %2930 = vmatprep.subr.mxu0 %v1474
    %2931 = vmatpush1.msra.mxu0 %v1473
    %2932 = vmatprep.subr.mxu0 %v1478
    %2933 = vmatpush1.msra.mxu0 %v1477
    %2934 = vmatprep.subr.mxu0 0.0
    %2935 = vmatpush1.msra.mxu0 0.0
    %2936 = vmatprep.subr.mxu0 0.0
    %2937 = vmatpush1.msra.mxu0 0.0
    %2938 = vmatprep.subr.mxu0 0.0
    %2939 = vmatpush1.msra.mxu0 0.0
    %2940 = vmatprep.subr.mxu0 0.0
    %2941 = vmatpush1.msra.mxu0 0.0
    %2942 = vmatprep.subr.mxu0 0.0
    %2943 = vmatpush1.msra.mxu0 0.0
    %2944 = vmatprep.subr.mxu0 0.0
    %2945 = vmatpush1.msra.mxu0 0.0
    %2946 = vmatprep.subr.mxu0 0.0
    %2947 = vmatpush1.msra.mxu0 0.0
    %2948 = vmatprep.subr.mxu0 0.0
    %2949 = vmatpush1.msra.mxu0 0.0
    %2950 = vmatprep.subr.mxu0 0.0
    %2951 = vmatpush1.msra.mxu0 0.0
    %2952 = vmatprep.subr.mxu0 0.0
    %2953 = vmatpush1.msra.mxu0 0.0
    %2954 = vmatprep.subr.mxu0 0.0
    %2955 = vmatpush1.msra.mxu0 0.0
    %2956 = vmatprep.subr.mxu0 0.0
    %2957 = vmatpush1.msra.mxu0 0.0
    %2958 = vmatprep.subr.mxu0 0.0
    %2959 = vmatpush1.msra.mxu0 0.0
    %2960 = vmatprep.subr.mxu0 0.0
    %2961 = vmatpush1.msra.mxu0 0.0
    %2962 = vmatprep.subr.mxu0 0.0
    %2963 = vmatpush1.msra.mxu0 0.0
    %2964 = vmatprep.subr.mxu0 0.0
    %2965 = vmatpush1.msra.mxu0 0.0
    %2966 = vmatprep.mubr.f32.mxu0 0.0
    %2967 = vmatmul.mubr.f32.gmra.mrb[0].mxu0 %v2901
    %v2968 = vpop.f32.mrb[0].mxu0
    %v2969 = vadd.f32 0.0, %v2968
    %v2970 = vpop.f32.mrb[0].mxu0
    %v2971 = vadd.f32 0.0, %v2970
    %2972 = vdwg.mxu0
    %2973 = vmatprep.subr.mxu0 %v1420
    %2974 = vmatpush1.msra.mxu0 %v1419
    %2975 = vmatprep.subr.mxu0 %v1424
    %2976 = vmatpush1.msra.mxu0 %v1423
    %2977 = vmatprep.subr.mxu0 %v1428
    %2978 = vmatpush1.msra.mxu0 %v1427
    %2979 = vmatprep.subr.mxu0 %v1432
    %2980 = vmatpush1.msra.mxu0 %v1431
    %2981 = vmatprep.subr.mxu0 %v1436
    %2982 = vmatpush1.msra.mxu0 %v1435
    %2983 = vmatprep.subr.mxu0 %v1440
    %2984 = vmatpush1.msra.mxu0 %v1439
    %2985 = vmatprep.subr.mxu0 %v1444
    %2986 = vmatpush1.msra.mxu0 %v1443
    %2987 = vmatprep.subr.mxu0 %v1448
    %2988 = vmatpush1.msra.mxu0 %v1447
    %2989 = vmatprep.subr.mxu0 %v1452
    %2990 = vmatpush1.msra.mxu0 %v1451
    %2991 = vmatprep.subr.mxu0 %v1456
    %2992 = vmatpush1.msra.mxu0 %v1455
    %2993 = vmatprep.subr.mxu0 %v1460
    %2994 = vmatpush1.msra.mxu0 %v1459
    %2995 = vmatprep.subr.mxu0 %v1464
    %2996 = vmatpush1.msra.mxu0 %v1463
    %2997 = vmatprep.subr.mxu0 %v1468
    %2998 = vmatpush1.msra.mxu0 %v1467
    %2999 = vmatprep.subr.mxu0 %v1472
    %3000 = vmatpush1.msra.mxu0 %v1471
    %3001 = vmatprep.subr.mxu0 %v1476
    %3002 = vmatpush1.msra.mxu0 %v1475
    %3003 = vmatprep.subr.mxu0 %v1480
    %3004 = vmatpush1.msra.mxu0 %v1479
    %3005 = vmatprep.subr.mxu0 0.0
    %3006 = vmatpush1.msra.mxu0 0.0
    %3007 = vmatprep.subr.mxu0 0.0
    %3008 = vmatpush1.msra.mxu0 0.0
    %3009 = vmatprep.subr.mxu0 0.0
    %3010 = vmatpush1.msra.mxu0 0.0
    %3011 = vmatprep.subr.mxu0 0.0
    %3012 = vmatpush1.msra.mxu0 0.0
    %3013 = vmatprep.subr.mxu0 0.0
    %3014 = vmatpush1.msra.mxu0 0.0
    %3015 = vmatprep.subr.mxu0 0.0
    %3016 = vmatpush1.msra.mxu0 0.0
    %3017 = vmatprep.subr.mxu0 0.0
    %3018 = vmatpush1.msra.mxu0 0.0
    %3019 = vmatprep.subr.mxu0 0.0
    %3020 = vmatpush1.msra.mxu0 0.0
    %3021 = vmatprep.subr.mxu0 0.0
    %3022 = vmatpush1.msra.mxu0 0.0
    %3023 = vmatprep.subr.mxu0 0.0
    %3024 = vmatpush1.msra.mxu0 0.0
    %3025 = vmatprep.subr.mxu0 0.0
    %3026 = vmatpush1.msra.mxu0 0.0
    %3027 = vmatprep.subr.mxu0 0.0
    %3028 = vmatpush1.msra.mxu0 0.0
    %3029 = vmatprep.subr.mxu0 0.0
    %3030 = vmatpush1.msra.mxu0 0.0
    %3031 = vmatprep.subr.mxu0 0.0
    %3032 = vmatpush1.msra.mxu0 0.0
    %3033 = vmatprep.subr.mxu0 0.0
    %3034 = vmatpush1.msra.mxu0 0.0
    %3035 = vmatprep.subr.mxu0 0.0
    %3036 = vmatpush1.msra.mxu0 0.0
    %3037 = vmatprep.mubr.f32.mxu0 0.0
    %3038 = vmatmul.mubr.f32.gmra.mrb[0].mxu0 %v2901
    %v3039 = vpop.f32.mrb[0].mxu0
    %v3040 = vadd.f32 0.0, %v3039
    %v3041 = vpop.f32.mrb[0].mxu0
    %v3042 = vadd.f32 0.0, %v3041
    %3043 = vdwg.mxu0
    %v3048 = vrot.slane %v2969, 6
    %v3049 = vrot.slane %v2971, 6
    %v3050 = vrot.slane %v3040, 6
    %v3051 = vrot.slane %v3042, 6
    %v3056 = vadd.f32 %v1914, %v3048
    %v3057 = vadd.f32 %v1916, %v3049
    %v3058 = vadd.f32 %v1991, %v3050
    %v3059 = vadd.f32 %v1993, %v3051
    %v3060 = vxor.u32 %v3056, 2147483648
    %v3061 = vxor.u32 %v3057, 2147483648
    %v3062 = vxor.u32 %v3058, 2147483648
    %v3063 = vmul.f32 %v3060, 1.442695
    %v3064 = vpow.pop %v3063
    %v3065 = vmul.f32 %v3061, 1.442695
    %v3066 = vpow.pop %v3065
    %v3067 = vmul.f32 %v3062, 1.442695
    %v3068 = vpow.pop %v3067
    %v3069 = vadd.f32 %v3064, 1.0
    %v3070 = vadd.f32 %v3066, 1.0
    %v3071 = vadd.f32 %v3068, 1.0
    %v3072 = vrcp.pop %v3069
    %v3073 = vmul.f32 1.0, %v3072
    %v3074 = vrcp.pop %v3070
    %v3075 = vmul.f32 1.0, %v3074
    %v3076 = vrcp.pop %v3071
    %v3077 = vmul.f32 1.0, %v3076
    %v3078 = vtanh.pop %v3059
    %v3080 = vrot.slane %v2899, 6
    %v3082 = vmul.f32 %v3075, %v3080
    %v3083 = vmul.f32 %v3073, %v3078
    %v3084 = vadd.f32 %v3082, %v3083
    %v3085 = vtanh.pop %v3084
    %v3086 = vmul.f32 %v3077, %v3085
    %v3088 = vrot.slane %v3086, 2
    %3090 = vmatprep.subr.mxu0 %v1418
    %3091 = vmatpush1.msra.mxu0 %v1417
    %3092 = vmatprep.subr.mxu0 %v1422
    %3093 = vmatpush1.msra.mxu0 %v1421
    %3094 = vmatprep.subr.mxu0 %v1426
    %3095 = vmatpush1.msra.mxu0 %v1425
    %3096 = vmatprep.subr.mxu0 %v1430
    %3097 = vmatpush1.msra.mxu0 %v1429
    %3098 = vmatprep.subr.mxu0 %v1434
    %3099 = vmatpush1.msra.mxu0 %v1433
    %3100 = vmatprep.subr.mxu0 %v1438
    %3101 = vmatpush1.msra.mxu0 %v1437
    %3102 = vmatprep.subr.mxu0 %v1442
    %3103 = vmatpush1.msra.mxu0 %v1441
    %3104 = vmatprep.subr.mxu0 %v1446
    %3105 = vmatpush1.msra.mxu0 %v1445
    %3106 = vmatprep.subr.mxu0 %v1450
    %3107 = vmatpush1.msra.mxu0 %v1449
    %3108 = vmatprep.subr.mxu0 %v1454
    %3109 = vmatpush1.msra.mxu0 %v1453
    %3110 = vmatprep.subr.mxu0 %v1458
    %3111 = vmatpush1.msra.mxu0 %v1457
    %3112 = vmatprep.subr.mxu0 %v1462
    %3113 = vmatpush1.msra.mxu0 %v1461
    %3114 = vmatprep.subr.mxu0 %v1466
    %3115 = vmatpush1.msra.mxu0 %v1465
    %3116 = vmatprep.subr.mxu0 %v1470
    %3117 = vmatpush1.msra.mxu0 %v1469
    %3118 = vmatprep.subr.mxu0 %v1474
    %3119 = vmatpush1.msra.mxu0 %v1473
    %3120 = vmatprep.subr.mxu0 %v1478
    %3121 = vmatpush1.msra.mxu0 %v1477
    %3122 = vmatprep.subr.mxu0 0.0
    %3123 = vmatpush1.msra.mxu0 0.0
    %3124 = vmatprep.subr.mxu0 0.0
    %3125 = vmatpush1.msra.mxu0 0.0
    %3126 = vmatprep.subr.mxu0 0.0
    %3127 = vmatpush1.msra.mxu0 0.0
    %3128 = vmatprep.subr.mxu0 0.0
    %3129 = vmatpush1.msra.mxu0 0.0
    %3130 = vmatprep.subr.mxu0 0.0
    %3131 = vmatpush1.msra.mxu0 0.0
    %3132 = vmatprep.subr.mxu0 0.0
    %3133 = vmatpush1.msra.mxu0 0.0
    %3134 = vmatprep.subr.mxu0 0.0
    %3135 = vmatpush1.msra.mxu0 0.0
    %3136 = vmatprep.subr.mxu0 0.0
    %3137 = vmatpush1.msra.mxu0 0.0
    %3138 = vmatprep.subr.mxu0 0.0
    %3139 = vmatpush1.msra.mxu0 0.0
    %3140 = vmatprep.subr.mxu0 0.0
    %3141 = vmatpush1.msra.mxu0 0.0
    %3142 = vmatprep.subr.mxu0 0.0
    %3143 = vmatpush1.msra.mxu0 0.0
    %3144 = vmatprep.subr.mxu0 0.0
    %3145 = vmatpush1.msra.mxu0 0.0
    %3146 = vmatprep.subr.mxu0 0.0
    %3147 = vmatpush1.msra.mxu0 0.0
    %3148 = vmatprep.subr.mxu0 0.0
    %3149 = vmatpush1.msra.mxu0 0.0
    %3150 = vmatprep.subr.mxu0 0.0
    %3151 = vmatpush1.msra.mxu0 0.0
    %3152 = vmatprep.subr.mxu0 0.0
    %3153 = vmatpush1.msra.mxu0 0.0
    %3154 = vmatprep.mubr.f32.mxu0 0.0
    %3155 = vmatmul.mubr.f32.gmra.mrb[0].mxu0 %v3088
    %v3156 = vpop.f32.mrb[0].mxu0
    %v3157 = vadd.f32 0.0, %v3156
    %v3158 = vpop.f32.mrb[0].mxu0
    %v3159 = vadd.f32 0.0, %v3158
    %3160 = vdwg.mxu0
    %3161 = vmatprep.subr.mxu0 %v1420
    %3162 = vmatpush1.msra.mxu0 %v1419
    %3163 = vmatprep.subr.mxu0 %v1424
    %3164 = vmatpush1.msra.mxu0 %v1423
    %3165 = vmatprep.subr.mxu0 %v1428
    %3166 = vmatpush1.msra.mxu0 %v1427
    %3167 = vmatprep.subr.mxu0 %v1432
    %3168 = vmatpush1.msra.mxu0 %v1431
    %3169 = vmatprep.subr.mxu0 %v1436
    %3170 = vmatpush1.msra.mxu0 %v1435
    %3171 = vmatprep.subr.mxu0 %v1440
    %3172 = vmatpush1.msra.mxu0 %v1439
    %3173 = vmatprep.subr.mxu0 %v1444
    %3174 = vmatpush1.msra.mxu0 %v1443
    %3175 = vmatprep.subr.mxu0 %v1448
    %3176 = vmatpush1.msra.mxu0 %v1447
    %3177 = vmatprep.subr.mxu0 %v1452
    %3178 = vmatpush1.msra.mxu0 %v1451
    %3179 = vmatprep.subr.mxu0 %v1456
    %3180 = vmatpush1.msra.mxu0 %v1455
    %3181 = vmatprep.subr.mxu0 %v1460
    %3182 = vmatpush1.msra.mxu0 %v1459
    %3183 = vmatprep.subr.mxu0 %v1464
    %3184 = vmatpush1.msra.mxu0 %v1463
    %3185 = vmatprep.subr.mxu0 %v1468
    %3186 = vmatpush1.msra.mxu0 %v1467
    %3187 = vmatprep.subr.mxu0 %v1472
    %3188 = vmatpush1.msra.mxu0 %v1471
    %3189 = vmatprep.subr.mxu0 %v1476
    %3190 = vmatpush1.msra.mxu0 %v1475
    %3191 = vmatprep.subr.mxu0 %v1480
    %3192 = vmatpush1.msra.mxu0 %v1479
    %3193 = vmatprep.subr.mxu0 0.0
    %3194 = vmatpush1.msra.mxu0 0.0
    %3195 = vmatprep.subr.mxu0 0.0
    %3196 = vmatpush1.msra.mxu0 0.0
    %3197 = vmatprep.subr.mxu0 0.0
    %3198 = vmatpush1.msra.mxu0 0.0
    %3199 = vmatprep.subr.mxu0 0.0
    %3200 = vmatpush1.msra.mxu0 0.0
    %3201 = vmatprep.subr.mxu0 0.0
    %3202 = vmatpush1.msra.mxu0 0.0
    %3203 = vmatprep.subr.mxu0 0.0
    %3204 = vmatpush1.msra.mxu0 0.0
    %3205 = vmatprep.subr.mxu0 0.0
    %3206 = vmatpush1.msra.mxu0 0.0
    %3207 = vmatprep.subr.mxu0 0.0
    %3208 = vmatpush1.msra.mxu0 0.0
    %3209 = vmatprep.subr.mxu0 0.0
    %3210 = vmatpush1.msra.mxu0 0.0
    %3211 = vmatprep.subr.mxu0 0.0
    %3212 = vmatpush1.msra.mxu0 0.0
    %3213 = vmatprep.subr.mxu0 0.0
    %3214 = vmatpush1.msra.mxu0 0.0
    %3215 = vmatprep.subr.mxu0 0.0
    %3216 = vmatpush1.msra.mxu0 0.0
    %3217 = vmatprep.subr.mxu0 0.0
    %3218 = vmatpush1.msra.mxu0 0.0
    %3219 = vmatprep.subr.mxu0 0.0
    %3220 = vmatpush1.msra.mxu0 0.0
    %3221 = vmatprep.subr.mxu0 0.0
    %3222 = vmatpush1.msra.mxu0 0.0
    %3223 = vmatprep.subr.mxu0 0.0
    %3224 = vmatpush1.msra.mxu0 0.0
    %3225 = vmatprep.mubr.f32.mxu0 0.0
    %3226 = vmatmul.mubr.f32.gmra.mrb[0].mxu0 %v3088
    %v3227 = vpop.f32.mrb[0].mxu0
    %v3228 = vadd.f32 0.0, %v3227
    %v3229 = vpop.f32.mrb[0].mxu0
    %v3230 = vadd.f32 0.0, %v3229
    %3231 = vdwg.mxu0
    %v3236 = vrot.slane %v3157, 4
    %v3237 = vrot.slane %v3159, 4
    %v3238 = vrot.slane %v3228, 4
    %v3239 = vrot.slane %v3230, 4
    %v3244 = vadd.f32 %v1914, %v3236
    %v3245 = vadd.f32 %v1916, %v3237
    %v3246 = vadd.f32 %v1991, %v3238
    %v3247 = vadd.f32 %v1993, %v3239
    %v3248 = vxor.u32 %v3244, 2147483648
    %v3249 = vxor.u32 %v3245, 2147483648
    %v3250 = vxor.u32 %v3246, 2147483648
    %v3251 = vmul.f32 %v3248, 1.442695
    %v3252 = vpow.pop %v3251
    %v3253 = vmul.f32 %v3249, 1.442695
    %v3254 = vpow.pop %v3253
    %v3255 = vmul.f32 %v3250, 1.442695
    %v3256 = vpow.pop %v3255
    %v3257 = vadd.f32 %v3252, 1.0
    %v3258 = vadd.f32 %v3254, 1.0
    %v3259 = vadd.f32 %v3256, 1.0
    %v3260 = vrcp.pop %v3257
    %v3261 = vmul.f32 1.0, %v3260
    %v3262 = vrcp.pop %v3258
    %v3263 = vmul.f32 1.0, %v3262
    %v3264 = vrcp.pop %v3259
    %v3265 = vmul.f32 1.0, %v3264
    %v3266 = vtanh.pop %v3247
    %v3268 = vrot.slane %v3084, 6
    %v3270 = vmul.f32 %v3263, %v3268
    %v3271 = vmul.f32 %v3261, %v3266
    %v3272 = vadd.f32 %v3270, %v3271
    %v3273 = vtanh.pop %v3272
    %v3274 = vmul.f32 %v3265, %v3273
    %v3276 = vrot.slane %v3274, 4
    %3278 = vmatprep.subr.mxu0 %v1418
    %3279 = vmatpush1.msra.mxu0 %v1417
    %3280 = vmatprep.subr.mxu0 %v1422
    %3281 = vmatpush1.msra.mxu0 %v1421
    %3282 = vmatprep.subr.mxu0 %v1426
    %3283 = vmatpush1.msra.mxu0 %v1425
    %3284 = vmatprep.subr.mxu0 %v1430
    %3285 = vmatpush1.msra.mxu0 %v1429
    %3286 = vmatprep.subr.mxu0 %v1434
    %3287 = vmatpush1.msra.mxu0 %v1433
    %3288 = vmatprep.subr.mxu0 %v1438
    %3289 = vmatpush1.msra.mxu0 %v1437
    %3290 = vmatprep.subr.mxu0 %v1442
    %3291 = vmatpush1.msra.mxu0 %v1441
    %3292 = vmatprep.subr.mxu0 %v1446
    %3293 = vmatpush1.msra.mxu0 %v1445
    %3294 = vmatprep.subr.mxu0 %v1450
    %3295 = vmatpush1.msra.mxu0 %v1449
    %3296 = vmatprep.subr.mxu0 %v1454
    %3297 = vmatpush1.msra.mxu0 %v1453
    %3298 = vmatprep.subr.mxu0 %v1458
    %3299 = vmatpush1.msra.mxu0 %v1457
    %3300 = vmatprep.subr.mxu0 %v1462
    %3301 = vmatpush1.msra.mxu0 %v1461
    %3302 = vmatprep.subr.mxu0 %v1466
    %3303 = vmatpush1.msra.mxu0 %v1465
    %3304 = vmatprep.subr.mxu0 %v1470
    %3305 = vmatpush1.msra.mxu0 %v1469
    %3306 = vmatprep.subr.mxu0 %v1474
    %3307 = vmatpush1.msra.mxu0 %v1473
    %3308 = vmatprep.subr.mxu0 %v1478
    %3309 = vmatpush1.msra.mxu0 %v1477
    %3310 = vmatprep.subr.mxu0 0.0
    %3311 = vmatpush1.msra.mxu0 0.0
    %3312 = vmatprep.subr.mxu0 0.0
    %3313 = vmatpush1.msra.mxu0 0.0
    %3314 = vmatprep.subr.mxu0 0.0
    %3315 = vmatpush1.msra.mxu0 0.0
    %3316 = vmatprep.subr.mxu0 0.0
    %3317 = vmatpush1.msra.mxu0 0.0
    %3318 = vmatprep.subr.mxu0 0.0
    %3319 = vmatpush1.msra.mxu0 0.0
    %3320 = vmatprep.subr.mxu0 0.0
    %3321 = vmatpush1.msra.mxu0 0.0
    %3322 = vmatprep.subr.mxu0 0.0
    %3323 = vmatpush1.msra.mxu0 0.0
    %3324 = vmatprep.subr.mxu0 0.0
    %3325 = vmatpush1.msra.mxu0 0.0
    %3326 = vmatprep.subr.mxu0 0.0
    %3327 = vmatpush1.msra.mxu0 0.0
    %3328 = vmatprep.subr.mxu0 0.0
    %3329 = vmatpush1.msra.mxu0 0.0
    %3330 = vmatprep.subr.mxu0 0.0
    %3331 = vmatpush1.msra.mxu0 0.0
    %3332 = vmatprep.subr.mxu0 0.0
    %3333 = vmatpush1.msra.mxu0 0.0
    %3334 = vmatprep.subr.mxu0 0.0
    %3335 = vmatpush1.msra.mxu0 0.0
    %3336 = vmatprep.subr.mxu0 0.0
    %3337 = vmatpush1.msra.mxu0 0.0
    %3338 = vmatprep.subr.mxu0 0.0
    %3339 = vmatpush1.msra.mxu0 0.0
    %3340 = vmatprep.subr.mxu0 0.0
    %3341 = vmatpush1.msra.mxu0 0.0
    %3342 = vmatprep.mubr.f32.mxu0 0.0
    %3343 = vmatmul.mubr.f32.gmra.mrb[0].mxu0 %v3276
    %v3344 = vpop.f32.mrb[0].mxu0
    %v3345 = vadd.f32 0.0, %v3344
    %v3346 = vpop.f32.mrb[0].mxu0
    %v3347 = vadd.f32 0.0, %v3346
    %3348 = vdwg.mxu0
    %3349 = vmatprep.subr.mxu0 %v1420
    %3350 = vmatpush1.msra.mxu0 %v1419
    %3351 = vmatprep.subr.mxu0 %v1424
    %3352 = vmatpush1.msra.mxu0 %v1423
    %3353 = vmatprep.subr.mxu0 %v1428
    %3354 = vmatpush1.msra.mxu0 %v1427
    %3355 = vmatprep.subr.mxu0 %v1432
    %3356 = vmatpush1.msra.mxu0 %v1431
    %3357 = vmatprep.subr.mxu0 %v1436
    %3358 = vmatpush1.msra.mxu0 %v1435
    %3359 = vmatprep.subr.mxu0 %v1440
    %3360 = vmatpush1.msra.mxu0 %v1439
    %3361 = vmatprep.subr.mxu0 %v1444
    %3362 = vmatpush1.msra.mxu0 %v1443
    %3363 = vmatprep.subr.mxu0 %v1448
    %3364 = vmatpush1.msra.mxu0 %v1447
    %3365 = vmatprep.subr.mxu0 %v1452
    %3366 = vmatpush1.msra.mxu0 %v1451
    %3367 = vmatprep.subr.mxu0 %v1456
    %3368 = vmatpush1.msra.mxu0 %v1455
    %3369 = vmatprep.subr.mxu0 %v1460
    %3370 = vmatpush1.msra.mxu0 %v1459
    %3371 = vmatprep.subr.mxu0 %v1464
    %3372 = vmatpush1.msra.mxu0 %v1463
    %3373 = vmatprep.subr.mxu0 %v1468
    %3374 = vmatpush1.msra.mxu0 %v1467
    %3375 = vmatprep.subr.mxu0 %v1472
    %3376 = vmatpush1.msra.mxu0 %v1471
    %3377 = vmatprep.subr.mxu0 %v1476
    %3378 = vmatpush1.msra.mxu0 %v1475
    %3379 = vmatprep.subr.mxu0 %v1480
    %3380 = vmatpush1.msra.mxu0 %v1479
    %3381 = vmatprep.subr.mxu0 0.0
    %3382 = vmatpush1.msra.mxu0 0.0
    %3383 = vmatprep.subr.mxu0 0.0
    %3384 = vmatpush1.msra.mxu0 0.0
    %3385 = vmatprep.subr.mxu0 0.0
    %3386 = vmatpush1.msra.mxu0 0.0
    %3387 = vmatprep.subr.mxu0 0.0
    %3388 = vmatpush1.msra.mxu0 0.0
    %3389 = vmatprep.subr.mxu0 0.0
    %3390 = vmatpush1.msra.mxu0 0.0
    %3391 = vmatprep.subr.mxu0 0.0
    %3392 = vmatpush1.msra.mxu0 0.0
    %3393 = vmatprep.subr.mxu0 0.0
    %3394 = vmatpush1.msra.mxu0 0.0
    %3395 = vmatprep.subr.mxu0 0.0
    %3396 = vmatpush1.msra.mxu0 0.0
    %3397 = vmatprep.subr.mxu0 0.0
    %3398 = vmatpush1.msra.mxu0 0.0
    %3399 = vmatprep.subr.mxu0 0.0
    %3400 = vmatpush1.msra.mxu0 0.0
    %3401 = vmatprep.subr.mxu0 0.0
    %3402 = vmatpush1.msra.mxu0 0.0
    %3403 = vmatprep.subr.mxu0 0.0
    %3404 = vmatpush1.msra.mxu0 0.0
    %3405 = vmatprep.subr.mxu0 0.0
    %3406 = vmatpush1.msra.mxu0 0.0
    %3407 = vmatprep.subr.mxu0 0.0
    %3408 = vmatpush1.msra.mxu0 0.0
    %3409 = vmatprep.subr.mxu0 0.0
    %3410 = vmatpush1.msra.mxu0 0.0
    %3411 = vmatprep.subr.mxu0 0.0
    %3412 = vmatpush1.msra.mxu0 0.0
    %3413 = vmatprep.mubr.f32.mxu0 0.0
    %3414 = vmatmul.mubr.f32.gmra.mrb[0].mxu0 %v3276
    %v3415 = vpop.f32.mrb[0].mxu0
    %v3416 = vadd.f32 0.0, %v3415
    %v3417 = vpop.f32.mrb[0].mxu0
    %v3418 = vadd.f32 0.0, %v3417
    %3419 = vdwg.mxu0
    %v3424 = vrot.slane %v3345, 2
    %v3425 = vrot.slane %v3347, 2
    %v3426 = vrot.slane %v3416, 2
    %v3427 = vrot.slane %v3418, 2
    %v3432 = vadd.f32 %v1914, %v3424
    %v3433 = vadd.f32 %v1916, %v3425
    %v3434 = vadd.f32 %v1991, %v3426
    %v3435 = vadd.f32 %v1993, %v3427
    %v3436 = vxor.u32 %v3432, 2147483648
    %v3437 = vxor.u32 %v3433, 2147483648
    %v3438 = vxor.u32 %v3434, 2147483648
    %v3439 = vmul.f32 %v3436, 1.442695
    %v3440 = vpow.pop %v3439
    %v3441 = vmul.f32 %v3437, 1.442695
    %v3442 = vpow.pop %v3441
    %v3443 = vmul.f32 %v3438, 1.442695
    %v3444 = vpow.pop %v3443
    %v3445 = vadd.f32 %v3440, 1.0
    %v3446 = vadd.f32 %v3442, 1.0
    %v3447 = vadd.f32 %v3444, 1.0
    %v3448 = vrcp.pop %v3445
    %v3449 = vmul.f32 1.0, %v3448
    %v3450 = vrcp.pop %v3446
    %v3451 = vmul.f32 1.0, %v3450
    %v3452 = vrcp.pop %v3447
    %v3453 = vmul.f32 1.0, %v3452
    %v3454 = vtanh.pop %v3435
    %v3456 = vrot.slane %v3272, 6
    %v3458 = vmul.f32 %v3451, %v3456
    %v3459 = vmul.f32 %v3449, %v3454
    %v3460 = vadd.f32 %v3458, %v3459
    %v3461 = vtanh.pop %v3460
    %v3462 = vmul.f32 %v3453, %v3461
    %3464 = vrot.lane.b32.xlu0 %v3462, 64
    %v3465 = vpop.permute.xlu0 %3464
    %v3467 = vadd.f32 %v3462, %v3465
    %vm3468 = vcmask 261126
    %3469 = vst.msk [vmem:[#allocation11 - $0x6] sm:$0xc0] %vm3468, %v3467
    %3471 = vrot.lane.b32.xlu0 %v3460, 64
    %v3472 = vpop.permute.xlu0 %3471
    %v3474 = vadd.f32 %v3460, %v3472
    %3475 = vst.msk [vmem:[#allocation13 - $0x6] sm:$0xc0] %vm3468, %v3474
    %v3476 = vsel %vm247, %v2164, %v2349
    %vm3477 = vcmask 1043456
    %v3478 = vsel %vm3477, %v3476, %v2537
    %vm3479 = vcmask 1045504
    %v3480 = vsel %vm3479, %v3478, %v2725
    %v3481 = vsel %vm247, %v2901, %v3086
    %v3482 = vsel %vm3477, %v3481, %v3274
    %v3483 = vsel %vm3479, %v3482, %v3462
    %v3484 = vld [vmem:[%s19] sm:$0xff]
    %v3485 = vld [vmem:[%s19 + $0x8] sm:$0xff]
    %v3486 = vld [vmem:[%s19 + $0x10] sm:$0xff]
    %v3487 = vld [vmem:[%s19 + $0x18] sm:$0xff]
    %v3488 = vld [vmem:[%s19 + $0x20] sm:$0xff]
    %v3489 = vld [vmem:[%s19 + $0x28] sm:$0xff]
    %v3490 = vld [vmem:[%s19 + $0x30] sm:$0xff]
    %v3491 = vld [vmem:[%s19 + $0x38] sm:$0xff]
    %v3492 = vld [vmem:[%s19 + $0x40] sm:$0xff]
    %v3493 = vld [vmem:[%s19 + $0x48] sm:$0xff]
    %v3494 = vld [vmem:[%s19 + $0x50] sm:$0xff]
    %v3495 = vld [vmem:[%s19 + $0x58] sm:$0xff]
    %v3496 = vld [vmem:[%s19 + $0x60] sm:$0xff]
    %v3497 = vld [vmem:[%s19 + $0x68] sm:$0xff]
    %v3498 = vld [vmem:[%s19 + $0x70] sm:$0xff]
    %v3499 = vld [vmem:[%s19 + $0x78] sm:$0xff]
    %3500 = vmatprep.subr.mxu0 0.0
    %3501 = vmatpush1.msra.mxu0 %v3484
    %3502 = vmatprep.subr.mxu0 0.0
    %3503 = vmatpush1.msra.mxu0 %v3485
    %3504 = vmatprep.subr.mxu0 0.0
    %3505 = vmatpush1.msra.mxu0 %v3486
    %3506 = vmatprep.subr.mxu0 0.0
    %3507 = vmatpush1.msra.mxu0 %v3487
    %3508 = vmatprep.subr.mxu0 0.0
    %3509 = vmatpush1.msra.mxu0 %v3488
    %3510 = vmatprep.subr.mxu0 0.0
    %3511 = vmatpush1.msra.mxu0 %v3489
    %3512 = vmatprep.subr.mxu0 0.0
    %3513 = vmatpush1.msra.mxu0 %v3490
    %3514 = vmatprep.subr.mxu0 0.0
    %3515 = vmatpush1.msra.mxu0 %v3491
    %3516 = vmatprep.subr.mxu0 0.0
    %3517 = vmatpush1.msra.mxu0 %v3492
    %3518 = vmatprep.subr.mxu0 0.0
    %3519 = vmatpush1.msra.mxu0 %v3493
    %3520 = vmatprep.subr.mxu0 0.0
    %3521 = vmatpush1.msra.mxu0 %v3494
    %3522 = vmatprep.subr.mxu0 0.0
    %3523 = vmatpush1.msra.mxu0 %v3495
    %3524 = vmatprep.subr.mxu0 0.0
    %3525 = vmatpush1.msra.mxu0 %v3496
    %3526 = vmatprep.subr.mxu0 0.0
    %3527 = vmatpush1.msra.mxu0 %v3497
    %3528 = vmatprep.subr.mxu0 0.0
    %3529 = vmatpush1.msra.mxu0 %v3498
    %3530 = vmatprep.subr.mxu0 0.0
    %3531 = vmatpush1.msra.mxu0 %v3499
    %3532 = vmatprep.subr.mxu0 0.0
    %3533 = vmatpush1.msra.mxu0 0.0
    %3534 = vmatprep.subr.mxu0 0.0
    %3535 = vmatpush1.msra.mxu0 0.0
    %3536 = vmatprep.subr.mxu0 0.0
    %3537 = vmatpush1.msra.mxu0 0.0
    %3538 = vmatprep.subr.mxu0 0.0
    %3539 = vmatpush1.msra.mxu0 0.0
    %3540 = vmatprep.subr.mxu0 0.0
    %3541 = vmatpush1.msra.mxu0 0.0
    %3542 = vmatprep.subr.mxu0 0.0
    %3543 = vmatpush1.msra.mxu0 0.0
    %3544 = vmatprep.subr.mxu0 0.0
    %3545 = vmatpush1.msra.mxu0 0.0
    %3546 = vmatprep.subr.mxu0 0.0
    %3547 = vmatpush1.msra.mxu0 0.0
    %3548 = vmatprep.subr.mxu0 0.0
    %3549 = vmatpush1.msra.mxu0 0.0
    %3550 = vmatprep.subr.mxu0 0.0
    %3551 = vmatpush1.msra.mxu0 0.0
    %3552 = vmatprep.subr.mxu0 0.0
    %3553 = vmatpush1.msra.mxu0 0.0
    %3554 = vmatprep.subr.mxu0 0.0
    %3555 = vmatpush1.msra.mxu0 0.0
    %3556 = vmatprep.subr.mxu0 0.0
    %3557 = vmatpush1.msra.mxu0 0.0
    %3558 = vmatprep.subr.mxu0 0.0
    %3559 = vmatpush1.msra.mxu0 0.0
    %3560 = vmatprep.subr.mxu0 0.0
    %3561 = vmatpush1.msra.mxu0 0.0
    %3562 = vmatprep.subr.mxu0 0.0
    %3563 = vmatpush1.msra.mxu0 0.0
    %3564 = vmatprep.mubr.f32.mxu0 0.0
    %3565 = vmatmul.mubr.f32.gmra.mrb[0].mxu0 %v3480
    %v3566 = vpop.f32.mrb[0].mxu0
    %v3567 = vadd.f32 0.0, %v3566
    %v3568 = vpop.f32.mrb[0].mxu0
    %3569 = vmatprep.mubr.f32.mxu0 0.0
    %3570 = vmatmul.mubr.f32.gmra.mrb[0].mxu0 %v3483
    %v3571 = vpop.f32.mrb[0].mxu0
    %v3572 = vadd.f32 0.0, %v3571
    %v3573 = vpop.f32.mrb[0].mxu0
    %3574 = vdwg.mxu0
    %v3575 = vld [vmem:[%s20] sm:$0xff]
    %v3576 = vld [vmem:[%s20 + $0x8] sm:$0xff]
    %v3577 = vld [vmem:[%s20 + $0x10] sm:$0xff]
    %v3578 = vld [vmem:[%s20 + $0x18] sm:$0xff]
    %v3579 = vld [vmem:[%s20 + $0x20] sm:$0xff]
    %v3580 = vld [vmem:[%s20 + $0x28] sm:$0xff]
    %v3581 = vld [vmem:[%s20 + $0x30] sm:$0xff]
    %v3582 = vld [vmem:[%s20 + $0x38] sm:$0xff]
    %v3583 = vld [vmem:[%s20 + $0x40] sm:$0xff]
    %v3584 = vld [vmem:[%s20 + $0x48] sm:$0xff]
    %v3585 = vld [vmem:[%s20 + $0x50] sm:$0xff]
    %v3586 = vld [vmem:[%s20 + $0x58] sm:$0xff]
    %v3587 = vld [vmem:[%s20 + $0x60] sm:$0xff]
    %v3588 = vld [vmem:[%s20 + $0x68] sm:$0xff]
    %v3589 = vld [vmem:[%s20 + $0x70] sm:$0xff]
    %v3590 = vld [vmem:[%s20 + $0x78] sm:$0xff]
    %3591 = vmatprep.subr.mxu0 0.0
    %3592 = vmatpush1.msra.mxu0 %v3575
    %3593 = vmatprep.subr.mxu0 0.0
    %3594 = vmatpush1.msra.mxu0 %v3576
    %3595 = vmatprep.subr.mxu0 0.0
    %3596 = vmatpush1.msra.mxu0 %v3577
    %3597 = vmatprep.subr.mxu0 0.0
    %3598 = vmatpush1.msra.mxu0 %v3578
    %3599 = vmatprep.subr.mxu0 0.0
    %3600 = vmatpush1.msra.mxu0 %v3579
    %3601 = vmatprep.subr.mxu0 0.0
    %3602 = vmatpush1.msra.mxu0 %v3580
    %3603 = vmatprep.subr.mxu0 0.0
    %3604 = vmatpush1.msra.mxu0 %v3581
    %3605 = vmatprep.subr.mxu0 0.0
    %3606 = vmatpush1.msra.mxu0 %v3582
    %3607 = vmatprep.subr.mxu0 0.0
    %3608 = vmatpush1.msra.mxu0 %v3583
    %3609 = vmatprep.subr.mxu0 0.0
    %3610 = vmatpush1.msra.mxu0 %v3584
    %3611 = vmatprep.subr.mxu0 0.0
    %3612 = vmatpush1.msra.mxu0 %v3585
    %3613 = vmatprep.subr.mxu0 0.0
    %3614 = vmatpush1.msra.mxu0 %v3586
    %3615 = vmatprep.subr.mxu0 0.0
    %3616 = vmatpush1.msra.mxu0 %v3587
    %3617 = vmatprep.subr.mxu0 0.0
    %3618 = vmatpush1.msra.mxu0 %v3588
    %3619 = vmatprep.subr.mxu0 0.0
    %3620 = vmatpush1.msra.mxu0 %v3589
    %3621 = vmatprep.subr.mxu0 0.0
    %3622 = vmatpush1.msra.mxu0 %v3590
    %3623 = vmatprep.subr.mxu0 0.0
    %3624 = vmatpush1.msra.mxu0 0.0
    %3625 = vmatprep.subr.mxu0 0.0
    %3626 = vmatpush1.msra.mxu0 0.0
    %3627 = vmatprep.subr.mxu0 0.0
    %3628 = vmatpush1.msra.mxu0 0.0
    %3629 = vmatprep.subr.mxu0 0.0
    %3630 = vmatpush1.msra.mxu0 0.0
    %3631 = vmatprep.subr.mxu0 0.0
    %3632 = vmatpush1.msra.mxu0 0.0
    %3633 = vmatprep.subr.mxu0 0.0
    %3634 = vmatpush1.msra.mxu0 0.0
    %3635 = vmatprep.subr.mxu0 0.0
    %3636 = vmatpush1.msra.mxu0 0.0
    %3637 = vmatprep.subr.mxu0 0.0
    %3638 = vmatpush1.msra.mxu0 0.0
    %3639 = vmatprep.subr.mxu0 0.0
    %3640 = vmatpush1.msra.mxu0 0.0
    %3641 = vmatprep.subr.mxu0 0.0
    %3642 = vmatpush1.msra.mxu0 0.0
    %3643 = vmatprep.subr.mxu0 0.0
    %3644 = vmatpush1.msra.mxu0 0.0
    %3645 = vmatprep.subr.mxu0 0.0
    %3646 = vmatpush1.msra.mxu0 0.0
    %3647 = vmatprep.subr.mxu0 0.0
    %3648 = vmatpush1.msra.mxu0 0.0
    %3649 = vmatprep.subr.mxu0 0.0
    %3650 = vmatpush1.msra.mxu0 0.0
    %3651 = vmatprep.subr.mxu0 0.0
    %3652 = vmatpush1.msra.mxu0 0.0
    %3653 = vmatprep.subr.mxu0 0.0
    %3654 = vmatpush1.msra.mxu0 0.0
    %3655 = vmatprep.mubr.f32.mxu0 0.0
    %3656 = vmatmul.mubr.f32.gmra.mrb[0].mxu0 %v3480
    %v3657 = vpop.f32.mrb[0].mxu0
    %v3658 = vadd.f32 0.0, %v3657
    %v3659 = vpop.f32.mrb[0].mxu0
    %3660 = vmatprep.mubr.f32.mxu0 0.0
    %3661 = vmatmul.mubr.f32.gmra.mrb[0].mxu0 %v3483
    %v3662 = vpop.f32.mrb[0].mxu0
    %v3663 = vadd.f32 0.0, %v3662
    %v3664 = vpop.f32.mrb[0].mxu0
    %3665 = vdwg.mxu0
    %v3666 = vld [vmem:[%s21] sm:$0x1]
    %v3668 = vrot.slane %v3663, 6
    %v3670 = vadd.f32 %v3567, %v3668
    %v3672 = vlaneseq
    %v3673 = vshrl.u32 %v3672, 7
    %v3674 = vsub.s32 0, %v3673
    %v3675 = vrot.slane %v3666, %v3674
    %v3677 = vadd.f32 %v3670, %v3675
    %v3678 = vrot.slane %v3663, 2
    %v3680 = vadd.f32 %v3567, %v3678
    %v3681 = vadd.f32 %v3680, %v3675
    %v3683 = vrot.slane %v3658, 6
    %v3685 = vadd.f32 %v3572, %v3683
    %v3686 = vadd.f32 %v3685, %v3675
    %v3687 = vrot.slane %v3658, 2
    %v3689 = vadd.f32 %v3572, %v3687
    %v3690 = vadd.f32 %v3689, %v3675
    %v3692 = vrot.slane %v3681, 2
    %3693 = vrot.lane.b32.xlu0 %v3692, 32
    %v3694 = vpop.permute.xlu0 %3693
    %v3697 = vrot.slane %v3677, 4
    %3698 = vrot.lane.b32.xlu0 %v3697, 64
    %v3699 = vpop.permute.xlu0 %3698
    %v3701 = vrot.slane %v3681, 6
    %3702 = vrot.lane.b32.xlu0 %v3701, 96
    %v3703 = vpop.permute.xlu0 %3702
    %v3706 = vrot.slane %v3690, 2
    %3707 = vrot.lane.b32.xlu0 %v3706, 32
    %v3708 = vpop.permute.xlu0 %3707
    %v3711 = vrot.slane %v3686, 4
    %3712 = vrot.lane.b32.xlu0 %v3711, 64
    %v3713 = vpop.permute.xlu0 %3712
    %v3715 = vrot.slane %v3690, 6
    %3716 = vrot.lane.b32.xlu0 %v3715, 96
    %v3717 = vpop.permute.xlu0 %3716
    %v3719 = vsel %vm337, %v3677, %v3694
    %v3720 = vsel %vm1221, %v3719, %v3699
    %vm3721 = vcmask 785408
    %v3722 = vsel %vm3721, %v3720, %v3703
    %v3723 = vsel %vm337, %v3686, %v3708
    %v3724 = vsel %vm1221, %v3723, %v3713
    %v3725 = vsel %vm3721, %v3724, %v3717
    %v3726 = vtanh.pop %v3722
    %v3727 = vtanh.pop %v3725
    %v3730 = vcombine.low %v3726, %v3727
    %v3732 = vunpack.c.l.s4 1983009808
    %v3733 = vunpack.c.0.s8 %v3732
    %v3734 = vlaneseq
    %v3735 = vshrl.u32 %v3734, 7
    %v3736 = vsub.s32 %v3733, %v3735
    %v3737 = vrot.slane %v3730, %v3736
    %3739 = vst [vmem:[%s22] sm:$0xf] %v3737
    %3741 = vrot.lane.b32.xlu0 %v1819, 64
    %v3742 = vpop.permute.xlu0 %3741
    %vm3744 = vcmask 254976
    %3745 = vst.msk [vmem:[#allocation14] sm:$0x3] %vm3744, %v3742
    // Predicated region
    $region106: #{encoder_forward.1} parent=1 // pred_check
      _
    $region107: #{encoder_forward.1} parent=1 // pred_check_branch
      %3747 = sbr.rel (0) target = $region109
    $region108: #{encoder_forward.1} parent=1 // pred_region
      _
    $region109: #{encoder_forward.1} parent=1 // pred_fallthru
      _
    // Predicated region
    $region110: #{encoder_forward.1} parent=1 // pred_check
      _
    $region111: #{encoder_forward.1} parent=1 // pred_check_branch
      %3749 = sbr.rel (0) target = $region113
    $region112: #{encoder_forward.1} parent=1 // pred_region
      %s3751 = ssub.s32 256, 256
      %3752 = vsyncadd [#allocation4], %s3751
      %s3753 = sshll.u32 [#allocation10], 4
      %s3754 = int_to_ptr.vmem [resolvable:$true] %s3753
      %3759 = dma.vmem_to_hbm [thread:$0]  %s3754, 256, %s23, [#allocation4], 128, 128, 8
    $region113: #{encoder_forward.1} parent=1 // pred_fallthru
      _
    // Predicated region
    $region114: #{encoder_forward.1} parent=1 // pred_check
      _
    $region115: #{encoder_forward.1} parent=1 // pred_check_branch
      %3761 = sbr.rel (0) target = $region117
    $region116: #{encoder_forward.1} parent=1 // pred_region
      %s3763 = ssub.s32 32, 32
      %3764 = vsyncadd [#allocation12], %s3763
      %s3766 = sshll.u32 [#allocation11], 4
      %s3767 = int_to_ptr.vmem [resolvable:$true] %s3766
      %3769 = dma.vmem_to_hbm [thread:$0]  %s3767, 32, %s24, [#allocation12]
    $region117: #{encoder_forward.1} parent=1 // pred_fallthru
      _
    // Predicated region
    $region118: #{encoder_forward.1} parent=1 // pred_check
      _
    $region119: #{encoder_forward.1} parent=1 // pred_check_branch
      %3771 = sbr.rel (0) target = $region121
    $region120: #{encoder_forward.1} parent=1 // pred_region
      %s3773 = ssub.s32 32, 32
      %3774 = vsyncadd [#allocation12], %s3773
      %s3776 = sshll.u32 [#allocation13], 4
      %s3777 = int_to_ptr.vmem [resolvable:$true] %s3776
      %3779 = dma.vmem_to_hbm [thread:$0]  %s3777, 32, %s25, [#allocation12]
    $region121: #{encoder_forward.1} parent=1 // pred_fallthru
      _
    // Predicated region
    $region122: #{encoder_forward.1} parent=1 // pred_check
      _
    $region123: #{encoder_forward.1} parent=1 // pred_check_branch
      %3781 = sbr.rel (0) target = $region125
    $region124: #{encoder_forward.1} parent=1 // pred_region
      %s3783 = ssub.s32 32, 32
      %3784 = vsyncadd [#allocation15], %s3783
      %s3786 = sshll.u32 [#allocation14], 4
      %s3787 = int_to_ptr.vmem [resolvable:$true] %s3786
      %3789 = dma.vmem_to_hbm [thread:$0]  %s3787, 32, %s26, [#allocation15]
    $region125: #{encoder_forward.1} parent=1 // pred_fallthru
      _
    // Predicated region
    $region126: #{encoder_forward.1} parent=1 // pred_check
      _
    $region127: #{encoder_forward.1} parent=1 // pred_check_branch
      %3791 = sbr.rel (0) target = $region129
    $region128: #{encoder_forward.1} parent=1 // pred_region
      _
    $region129: #{encoder_forward.1} parent=1 // pred_fallthru
      _
    // Predicated region
    $region130: #{encoder_forward.1} parent=1 // pred_check
      _
    $region131: #{encoder_forward.1} parent=1 // pred_check_branch
      %3793 = sbr.rel (0) target = $region133
    $region132: #{encoder_forward.1} parent=1 // pred_region
      %3794 = dma.done [#allocation4], 256
    $region133: #{encoder_forward.1} parent=1 // pred_fallthru
      _
    // Predicated region
    $region134: #{encoder_forward.1} parent=1 // pred_check
      _
    $region135: #{encoder_forward.1} parent=1 // pred_check_branch
      %3796 = sbr.rel (0) target = $region137
    $region136: #{encoder_forward.1} parent=1 // pred_region
      %3797 = dma.done [#allocation12], 32
    $region137: #{encoder_forward.1} parent=1 // pred_fallthru
      _
    // Predicated region
    $region138: #{encoder_forward.1} parent=1 // pred_check
      _
    $region139: #{encoder_forward.1} parent=1 // pred_check_branch
      %3799 = sbr.rel (0) target = $region141
    $region140: #{encoder_forward.1} parent=1 // pred_region
      %3800 = dma.done [#allocation12], 32
    $region141: #{encoder_forward.1} parent=1 // pred_fallthru
      _
    // Predicated region
    $region142: #{encoder_forward.1} parent=1 // pred_check
      _
    $region143: #{encoder_forward.1} parent=1 // pred_check_branch
      %3802 = sbr.rel (0) target = $region145
    $region144: #{encoder_forward.1} parent=1 // pred_region
      %3803 = dma.done [#allocation15], 32
    $region145: #{encoder_forward.1} parent=1 // pred_fallthru
      _
    %3804 = vsyncpa [#allocation3], 1
    %3805 = vsyncpa [#allocation6], 1
    %3806 = vsyncpa [#allocation9], 1
    %3807 = vsyncpa [#allocation4], 1
    %3808 = vsyncpa [#allocation12], 1
    %3809 = vsyncpa [#allocation15], 1

</llo_original>
